<compile_context>
chip_gen: v7x
topology: tpu7x:2x2x1
jax: 0.10.0
libtpu: 0.0.40
codegen_flags: <defaults>
</compile_context>

<pallas_src>
import functools

import jax
import jax.numpy as jnp
from jax.experimental import pallas as pl
from jax.experimental.pallas import tpu as pltpu


def _round_up(x, m):
    return ((x + m - 1) // m) * m


# ---------------------------------------------------------------------------
# Fused GEMM:  out = [relu](a) @ b + bias [relu]
# ---------------------------------------------------------------------------
def pallas_matmul(a, b, bias, *, pre_relu=False, post_relu=False,
                  out_dtype=jnp.bfloat16, tm=256, tn=256, tk=2048):
    M, K = a.shape
    K2, N = b.shape
    assert K2 == K

    tm = min(tm, _round_up(M, 8))
    Mp = _round_up(M, tm)

    # K: single full-dim block whenever it fits (no padding needed); else tile.
    if K <= tk:
        tk_, Kp, nk = K, K, 1
    else:
        tk_ = tk
        Kp = _round_up(K, tk_)
        nk = Kp // tk_

    # N: full-dim block when small (no padding, even if N < 128); else tile.
    if N <= tn:
        tn_, Np = N, N
    else:
        tn_ = tn
        Np = _round_up(N, tn_)

    a_p = a.astype(jnp.bfloat16)
    if (Mp, Kp) != (M, K):
        a_p = jnp.pad(a_p, ((0, Mp - M), (0, Kp - K)))
    b_p = b.astype(jnp.bfloat16)
    if (Kp, Np) != (K, N):
        b_p = jnp.pad(b_p, ((0, Kp - K), (0, Np - N)))
    bias_p = bias.reshape(1, N).astype(jnp.float32)
    if Np != N:
        bias_p = jnp.pad(bias_p, ((0, 0), (0, Np - N)))

    flops = 2 * Mp * Np * Kp
    bytes_accessed = (2 * (Mp * Kp + Kp * Np)
                      + Mp * Np * jnp.dtype(out_dtype).itemsize)
    cost = pl.CostEstimate(flops=flops, transcendentals=0,
                           bytes_accessed=bytes_accessed)

    if nk == 1:
        # -------- fast path: no accumulator scratch, direct store ----------
        def kernel(a_ref, b_ref, bias_ref, o_ref):
            a_t = a_ref[...]
            if pre_relu:
                a_t = jnp.maximum(a_t, 0)
            out = jnp.dot(a_t, b_ref[...], preferred_element_type=jnp.float32)
            out = out + bias_ref[...]
            if post_relu:
                out = jnp.maximum(out, 0.0)
            o_ref[...] = out.astype(o_ref.dtype)

        out = pl.pallas_call(
            kernel,
            out_shape=jax.ShapeDtypeStruct((Mp, Np), out_dtype),
            grid_spec=pltpu.PrefetchScalarGridSpec(
                num_scalar_prefetch=0,
                grid=(Mp // tm, Np // tn_),
                in_specs=[pl.BlockSpec((tm, Kp), lambda i, j: (i, 0)),
                          pl.BlockSpec((Kp, tn_), lambda i, j: (0, j)),
                          pl.BlockSpec((1, tn_), lambda i, j: (0, j))],
                out_specs=pl.BlockSpec((tm, tn_), lambda i, j: (i, j))),
            compiler_params=pltpu.CompilerParams(
                dimension_semantics=("parallel", "parallel"),
                vmem_limit_bytes=32 * 1024 * 1024),
            cost_estimate=cost,
        )(a_p, b_p, bias_p)
    else:
        # -------- general tiled-K path with f32 VMEM accumulator -----------
        def kernel(a_ref, b_ref, bias_ref, o_ref, acc_ref):
            k = pl.program_id(2)

            @pl.when(k == 0)
            def _():
                acc_ref[...] = jnp.zeros_like(acc_ref)

            a_t = a_ref[...]
            if pre_relu:
                a_t = jnp.maximum(a_t, 0)
            acc_ref[...] += jnp.dot(a_t, b_ref[...],
                                    preferred_element_type=jnp.float32)

            @pl.when(k == nk - 1)
            def _():
                out = acc_ref[...] + bias_ref[...]
                if post_relu:
                    out = jnp.maximum(out, 0.0)
                o_ref[...] = out.astype(o_ref.dtype)

        out = pl.pallas_call(
            kernel,
            out_shape=jax.ShapeDtypeStruct((Mp, Np), out_dtype),
            grid_spec=pltpu.PrefetchScalarGridSpec(
                num_scalar_prefetch=0,
                grid=(Mp // tm, Np // tn_, nk),
                in_specs=[pl.BlockSpec((tm, tk_), lambda i, j, k: (i, k)),
                          pl.BlockSpec((tk_, tn_), lambda i, j, k: (k, j)),
                          pl.BlockSpec((1, tn_), lambda i, j, k: (0, j))],
                out_specs=pl.BlockSpec((tm, tn_), lambda i, j, k: (i, j)),
                scratch_shapes=[pltpu.VMEM((tm, tn_), jnp.float32)]),
            compiler_params=pltpu.CompilerParams(
                dimension_semantics=("parallel", "parallel", "arbitrary"),
                vmem_limit_bytes=32 * 1024 * 1024),
            cost_estimate=cost,
        )(a_p, b_p, bias_p)

    if (Mp, Np) != (M, N):
        out = out[:M, :N]
    return out


# ---------------------------------------------------------------------------
# Fused ResidualLayer:  out = x + relu(relu(patches) @ W1) @ W2
# ---------------------------------------------------------------------------
def residual_layer_fused(x_flat, patches, w1mat, w2mat, *, tm=256):
    M, C = x_flat.shape
    K9 = patches.shape[1]
    Cr = w1mat.shape[1]
    tm = min(tm, _round_up(M, 8))
    Mp = _round_up(M, tm)
    if Mp != M:
        patches = jnp.pad(patches, ((0, Mp - M), (0, 0)))
        x_flat = jnp.pad(x_flat, ((0, Mp - M), (0, 0)))

    def kernel(p_ref, x_ref, w1_ref, w2_ref, o_ref):
        h = jnp.maximum(p_ref[...], 0)               # ReLU before conv3x3
        t = jnp.dot(h, w1_ref[...], preferred_element_type=jnp.float32)
        t = jnp.maximum(t, 0.0).astype(jnp.bfloat16)  # ReLU before conv1x1
        y = jnp.dot(t, w2_ref[...], preferred_element_type=jnp.float32)
        o_ref[...] = (x_ref[...].astype(jnp.float32) + y).astype(o_ref.dtype)

    out = pl.pallas_call(
        kernel,
        out_shape=jax.ShapeDtypeStruct((Mp, C), jnp.bfloat16),
        grid_spec=pltpu.PrefetchScalarGridSpec(
            num_scalar_prefetch=0,
            grid=(Mp // tm,),
            in_specs=[pl.BlockSpec((tm, K9), lambda i: (i, 0)),
                      pl.BlockSpec((tm, C), lambda i: (i, 0)),
                      pl.BlockSpec((K9, Cr), lambda i: (0, 0)),
                      pl.BlockSpec((Cr, C), lambda i: (0, 0))],
            out_specs=pl.BlockSpec((tm, C), lambda i: (i, 0))),
        compiler_params=pltpu.CompilerParams(
            dimension_semantics=("parallel",),
            vmem_limit_bytes=32 * 1024 * 1024),
    )(patches, x_flat, w1mat, w2mat)
    return out[:M] if Mp != M else out


# ---------------------------------------------------------------------------
# Fused [ReLU -> 1x1 pre-quant conv -> VectorQuantizer], tiled over M
# ---------------------------------------------------------------------------
def vq_pallas_fused(h_flat, pq_w_mat, pq_b, emb_pad, emb_t_bf16, emb_sq, beta,
                    *, tm=256):
    M, Ch = h_flat.shape
    NEp, D = emb_pad.shape
    tm = min(tm, _round_up(M, 8))
    Mp = _round_up(M, tm)
    nt = Mp // tm
    beta = float(beta)

    h_p = h_flat.astype(jnp.bfloat16)
    if Mp != M:
        h_p = jnp.pad(h_p, ((0, Mp - M), (0, 0)))

    def kernel(h_ref, pqw_ref, pqb_ref, et_ref, e_ref, esq_ref,
               zq_ref, loss_ref, ppl_ref, cnt_ref, sq_ref):
        i = pl.program_id(0)

        @pl.when(i == 0)
        def _():
            cnt_ref[...] = jnp.zeros_like(cnt_ref)
            sq_ref[...] = jnp.zeros_like(sq_ref)

        # trailing ReLU of the encoder ResidualStack + 1x1 pre-quant conv
        h = jnp.maximum(h_ref[...], 0)
        z = jnp.dot(h, pqw_ref[...],
                    preferred_element_type=jnp.float32) + pqb_ref[...]

        # d(i,j) = ||z_i||^2 + ||e_j||^2 - 2 z_i . e_j  (bf16 dot, f32 acc)
        z_sq = jnp.sum(z * z, axis=1, keepdims=True)
        dist = z_sq + esq_ref[...] - 2.0 * jnp.dot(
            z.astype(jnp.bfloat16), et_ref[...],
            preferred_element_type=jnp.float32)
        col = jax.lax.broadcasted_iota(jnp.int32, dist.shape, 1)
        dmin = jnp.min(dist, axis=1, keepdims=True)
        # first index achieving the minimum (matches torch.argmin)
        idx = jnp.min(jnp.where(dist <= dmin, col, NEp), axis=1, keepdims=True)
        onehot = (col == idx).astype(jnp.float32)

        # mask rows that are pure padding (global row >= M)
        row = i * tm + jax.lax.broadcasted_iota(jnp.int32, (tm, 1), 0)
        valid = (row < M).astype(jnp.float32)
        onehot = onehot * valid

        zq = jnp.dot(onehot, e_ref[...], preferred_element_type=jnp.float32)
        zq_ref[...] = zq.astype(zq_ref.dtype)

        diff = (zq - z) * valid
        sq_ref[...] += jnp.sum(jnp.sum(diff * diff, axis=1, keepdims=True),
                               axis=0, keepdims=True)
        cnt_ref[...] += jnp.sum(onehot, axis=0, keepdims=True)

        @pl.when(i == nt - 1)
        def _():
            loss_ref[...] = (1.0 + beta) * sq_ref[...] / float(M * D)
            e_mean = cnt_ref[...] / float(M)
            ent = jnp.sum(e_mean * jnp.log(e_mean + 1e-10), axis=1,
                          keepdims=True)
            ppl_ref[...] = jnp.exp(-ent)

    flops = 2 * Mp * (Ch * D + 2 * D * NEp)
    bytes_accessed = Mp * Ch * 2 + Mp * D * 2 + NEp * D * 6

    zq, loss, ppl = pl.pallas_call(
        kernel,
        out_shape=(jax.ShapeDtypeStruct((Mp, D), jnp.bfloat16),
                   jax.ShapeDtypeStruct((1, 1), jnp.float32),
                   jax.ShapeDtypeStruct((1, 1), jnp.float32)),
        grid_spec=pltpu.PrefetchScalarGridSpec(
            num_scalar_prefetch=0,
            grid=(nt,),
            in_specs=[
                pl.BlockSpec((tm, Ch), lambda i: (i, 0)),
                pl.BlockSpec((Ch, D), lambda i: (0, 0)),
                pl.BlockSpec((1, D), lambda i: (0, 0)),
                pl.BlockSpec((D, NEp), lambda i: (0, 0)),
                pl.BlockSpec((NEp, D), lambda i: (0, 0)),
                pl.BlockSpec((1, NEp), lambda i: (0, 0)),
            ],
            out_specs=(
                pl.BlockSpec((tm, D), lambda i: (i, 0)),
                pl.BlockSpec((1, 1), lambda i: (0, 0)),
                pl.BlockSpec((1, 1), lambda i: (0, 0)),
            ),
            scratch_shapes=[pltpu.VMEM((1, NEp), jnp.float32),
                            pltpu.VMEM((1, 1), jnp.float32)]),
        compiler_params=pltpu.CompilerParams(
            dimension_semantics=("arbitrary",),
            vmem_limit_bytes=32 * 1024 * 1024),
        cost_estimate=pl.CostEstimate(flops=flops, transcendentals=2 * NEp,
                                      bytes_accessed=bytes_accessed),
    )(h_p, pq_w_mat, pq_b, emb_t_bf16, emb_pad, emb_sq)
    zq = zq[:M] if Mp != M else zq
    return zq, loss[0, 0], ppl[0, 0]


# ---------------------------------------------------------------------------
# Conv glue (im2col in bf16; all matmuls in Pallas)
# ---------------------------------------------------------------------------
def _im2col(x, kh, kw, stride, pad):
    N, H, W, C = x.shape
    xp = jnp.pad(x, ((0, 0), (pad, pad), (pad, pad), (0, 0)))
    OH = (H + 2 * pad - kh) // stride + 1
    OW = (W + 2 * pad - kw) // stride + 1
    cols = []
    for i in range(kh):
        for j in range(kw):
            cols.append(xp[:, i:i + stride * OH:stride,
                           j:j + stride * OW:stride, :])
    patches = jnp.concatenate(cols, axis=-1).astype(jnp.bfloat16)
    return patches.reshape(N * OH * OW, kh * kw * C), (N, OH, OW)


def conv2d_nhwc(x, wmat, b, kh, kw, stride, pad, *, pre_relu=False,
                post_relu=False, out_dtype=jnp.bfloat16):
    a, (N, OH, OW) = _im2col(x, kh, kw, stride, pad)
    Cout = wmat.shape[1]
    out = pallas_matmul(a, wmat, b, pre_relu=pre_relu, post_relu=post_relu,
                        out_dtype=out_dtype)
    return out.reshape(N, OH, OW, Cout)


def conv_transpose2d_s2_nhwc(x, wmat, bias4, *, pre_relu=False,
                             post_relu=False, out_dtype=jnp.bfloat16):
    """ConvTranspose2d(k=4, stride=2, padding=1) via sub-pixel phase decomposition.
    One shared 3x3 im2col, one GEMM with the precombined (9*Cin, 4*Cout) weight,
    then pixel-shuffle of the four phases."""
    N, H, W, _ = x.shape
    Cout = wmat.shape[1] // 4
    patches, (_, OH, OW) = _im2col(x, 3, 3, 1, 1)
    out = pallas_matmul(patches, wmat, bias4, pre_relu=pre_relu,
                        post_relu=post_relu, out_dtype=out_dtype)
    out = out.reshape(N, H, W, 2, 2, Cout)
    out = jnp.transpose(out, (0, 1, 3, 2, 4, 5)).reshape(N, 2 * H, 2 * W, Cout)
    return out


def residual_stack(x, w1mat, w2mat, n_layers):
    """n_layers shared-weight ResidualLayers (PyTorch [layer]*n shares weights).
    Each layer is ONE fused Pallas kernel; the stack's trailing F.relu is fused
    into the next consumer (VQ kernel / next conv)."""
    N, H, W, C = x.shape
    for _ in range(n_layers):
        patches, _ = _im2col(x, 3, 3, 1, 1)
        x_flat = residual_layer_fused(x.reshape(N * H * W, C), patches,
                                      w1mat, w2mat)
        x = x_flat.reshape(N, H, W, C)
    return x


# ---------------------------------------------------------------------------
# Parameter init (deterministic, synthetic) and one-time weight preprocessing
# ---------------------------------------------------------------------------
def _uinit(key, shape, fan_in):
    bound = float(fan_in) ** -0.5
    return jax.random.uniform(key, shape, jnp.float32, -bound, bound)


def init_params(key, h_dim, res_h_dim, n_res_layers, n_embeddings, e_dim):
    ks = jax.random.split(key, 32)
    p = {}
    # Encoder
    p["enc_w1"] = _uinit(ks[0], (h_dim // 2, 3, 4, 4), 3 * 16)
    p["enc_b1"] = _uinit(ks[1], (h_dim // 2,), 3 * 16)
    p["enc_w2"] = _uinit(ks[2], (h_dim, h_dim // 2, 4, 4), h_dim // 2 * 16)
    p["enc_b2"] = _uinit(ks[3], (h_dim,), h_dim // 2 * 16)
    p["enc_w3"] = _uinit(ks[4], (h_dim, h_dim, 3, 3), h_dim * 9)
    p["enc_b3"] = _uinit(ks[5], (h_dim,), h_dim * 9)
    p["enc_res_w1"] = _uinit(ks[6], (res_h_dim, h_dim, 3, 3), h_dim * 9)
    p["enc_res_w2"] = _uinit(ks[7], (h_dim, res_h_dim, 1, 1), res_h_dim)
    # pre-quantization conv
    p["pq_w"] = _uinit(ks[8], (e_dim, h_dim, 1, 1), h_dim)
    p["pq_b"] = _uinit(ks[9], (e_dim,), h_dim)
    # codebook
    p["emb"] = jax.random.uniform(ks[10], (n_embeddings, e_dim), jnp.float32,
                                  -1.0 / n_embeddings, 1.0 / n_embeddings)
    # Decoder
    p["dec_w1"] = _uinit(ks[11], (e_dim, h_dim, 3, 3), e_dim * 9)
    p["dec_b1"] = _uinit(ks[12], (h_dim,), e_dim * 9)
    p["dec_res_w1"] = _uinit(ks[13], (res_h_dim, h_dim, 3, 3), h_dim * 9)
    p["dec_res_w2"] = _uinit(ks[14], (h_dim, res_h_dim, 1, 1), res_h_dim)
    p["dec_w2"] = _uinit(ks[15], (h_dim, h_dim // 2, 4, 4), h_dim * 16)
    p["dec_b2"] = _uinit(ks[16], (h_dim // 2,), h_dim * 16)
    p["dec_w3"] = _uinit(ks[17], (h_dim // 2, 3, 4, 4), h_dim // 2 * 16)
    p["dec_b3"] = _uinit(ks[18], (3,), h_dim // 2 * 16)
    return p


def prepare_weights(p):
    """One-time preprocessing: matmul-layout weights, flipped transpose-conv
    kernels, the stride-2 phase-combined weights, and VQ codebook tensors.
    Runs once outside the jitted forward (hoists dozens of tiny XLA ops)."""

    def conv_wmat(w):                       # (Cout, Cin, kh, kw) -> (kh*kw*Cin, Cout)
        Cout, Cin, kh, kw = w.shape
        return (jnp.transpose(w, (2, 3, 1, 0))
                .reshape(kh * kw * Cin, Cout).astype(jnp.bfloat16))

    def convT_s1_wmat(w):                   # (Cin, Cout, k, k), stride 1: flip kernel
        return conv_wmat(jnp.transpose(jnp.flip(w, axis=(2, 3)), (1, 0, 2, 3)))

    def convT_s2_mats(w, b):                # (Cin, Cout, 4, 4), stride 2, pad 1
        Cin, Cout, _, _ = w.shape
        wc = jnp.transpose(jnp.flip(w, axis=(2, 3)), (1, 0, 2, 3))   # (Cout,Cin,4,4)
        Wc = jnp.zeros((3, 3, Cin, 2, 2, Cout), jnp.float32)
        for a in range(2):
            for bb in range(2):
                for ti in range(2):
                    for tj in range(2):
                        pi, pj = a + ti, bb + tj
                        Wc = Wc.at[pi, pj, :, a, bb, :].set(
                            jnp.transpose(wc[:, :, 2 * pi - a, 2 * pj - bb]))
        return (Wc.reshape(9 * Cin, 4 * Cout).astype(jnp.bfloat16),
                jnp.tile(b.astype(jnp.float32), 4))

    w = {}
    w["enc1_w"], w["enc1_b"] = conv_wmat(p["enc_w1"]), p["enc_b1"].astype(jnp.float32)
    w["enc2_w"], w["enc2_b"] = conv_wmat(p["enc_w2"]), p["enc_b2"].astype(jnp.float32)
    w["enc3_w"], w["enc3_b"] = conv_wmat(p["enc_w3"]), p["enc_b3"].astype(jnp.float32)
    w["enc_res_w1"] = conv_wmat(p["enc_res_w1"])
    w["enc_res_w2"] = conv_wmat(p["enc_res_w2"])
    w["dec_res_w1"] = conv_wmat(p["dec_res_w1"])
    w["dec_res_w2"] = conv_wmat(p["dec_res_w2"])
    w["dec1_w"], w["dec1_b"] = convT_s1_wmat(p["dec_w1"]), p["dec_b1"].astype(jnp.float32)
    w["dec2_w"], w["dec2_b"] = convT_s2_mats(p["dec_w2"], p["dec_b2"])
    w["dec3_w"], w["dec3_b"] = convT_s2_mats(p["dec_w3"], p["dec_b3"])
    # VQ / pre-quantization
    w["pq_w"] = jnp.transpose(p["pq_w"][:, :, 0, 0]).astype(jnp.bfloat16)  # (h_dim,e_dim)
    w["pq_b"] = p["pq_b"].reshape(1, -1).astype(jnp.float32)
    emb = p["emb"].astype(jnp.float32)
    n_e, D = emb.shape
    NEp = _round_up(n_e, 128)
    emb_pad = jnp.pad(emb, ((0, NEp - n_e), (0, 0)))
    w["emb"] = emb_pad                                              # (NEp, D) f32
    w["emb_t"] = jnp.transpose(emb_pad).astype(jnp.bfloat16)        # (D, NEp) bf16
    w["emb_sq"] = jnp.pad(jnp.sum(emb * emb, axis=1), (0, NEp - n_e),
                          constant_values=1e9).reshape(1, NEp)      # padded never win
    return w


# ---------------------------------------------------------------------------
# VQVAE forward
# ---------------------------------------------------------------------------
def vqvae_forward(w, x_nchw, *, n_res_layers, beta):
    x = jnp.transpose(x_nchw, (0, 2, 3, 1)).astype(jnp.bfloat16)   # NCHW -> NHWC
    # ---- Encoder ----
    h = conv2d_nhwc(x, w["enc1_w"], w["enc1_b"], 4, 4, 2, 1, post_relu=True)
    h = conv2d_nhwc(h, w["enc2_w"], w["enc2_b"], 4, 4, 2, 1, post_relu=True)
    h = conv2d_nhwc(h, w["enc3_w"], w["enc3_b"], 3, 3, 1, 1)
    h = residual_stack(h, w["enc_res_w1"], w["enc_res_w2"], n_res_layers)
    # ---- fused: trailing ReLU + pre-quant 1x1 conv + vector quantization ----
    N, H, W, Ch = h.shape
    z_q_flat, emb_loss, perplexity = vq_pallas_fused(
        h.reshape(N * H * W, Ch), w["pq_w"], w["pq_b"],
        w["emb"], w["emb_t"], w["emb_sq"], beta)
    D = w["emb"].shape[1]
    z_q = z_q_flat.reshape(N, H, W, D)
    # ---- Decoder ----
    h = conv2d_nhwc(z_q, w["dec1_w"], w["dec1_b"], 3, 3, 1, 1)
    h = residual_stack(h, w["dec_res_w1"], w["dec_res_w2"], n_res_layers)
    h = conv_transpose2d_s2_nhwc(h, w["dec2_w"], w["dec2_b"],
                                 pre_relu=True, post_relu=True)
    x_hat = conv_transpose2d_s2_nhwc(h, w["dec3_w"], w["dec3_b"],
                                     out_dtype=jnp.float32)
    x_hat = jnp.transpose(x_hat, (0, 3, 1, 2))                     # NHWC -> NCHW
    return emb_loss, x_hat, perplexity


# ---------------------------------------------------------------------------
if __name__ == "__main__":
    h_dim = 32
    res_h_dim = 16
    n_res_layers = 2
    n_embeddings = 32
    embedding_dim = 16
    beta = 0.25

    key = jax.random.PRNGKey(0)
    kx, kp = jax.random.split(key)
    x = jax.random.normal(kx, (2, 3, 16, 16), jnp.float32)   # NCHW like PyTorch

    params = init_params(kp, h_dim, res_h_dim, n_res_layers,
                         n_embeddings, embedding_dim)
    prepared = prepare_weights(params)   # one-time weight preprocessing

    fwd = jax.jit(functools.partial(vqvae_forward,
                                    n_res_layers=n_res_layers, beta=beta))
    emb_loss, x_hat, perplexity = fwd(prepared, x)
    jax.block_until_ready((emb_loss, x_hat, perplexity))

    assert x_hat.shape == (2, 3, 16, 16)
    assert emb_loss.shape == () and perplexity.shape == ()
    assert bool(jnp.isfinite(emb_loss)) and bool(jnp.isfinite(perplexity))
    assert bool(jnp.all(jnp.isfinite(x_hat)))
    print("KERNEL_OK")
</pallas_src>

<mosaic_0001>
module attributes {stable_mosaic.version = 11 : i64} {
  func.func @kernel(%arg0: i32, %arg1: i32, %arg2: memref<128x48xbf16, #tpu.memory_space<vmem>>, %arg3: memref<48x16xbf16, #tpu.memory_space<vmem>>, %arg4: memref<1x16xf32, #tpu.memory_space<vmem>>, %arg5: memref<128x16xbf16, #tpu.memory_space<vmem>>) attributes {dimension_semantics = [#tpu.dimension_semantics<parallel>, #tpu.dimension_semantics<parallel>], iteration_bounds = array<i64: 1, 1>, scalar_prefetch = 0 : i64, scratch_operands = 0 : i64, tpu.core_type = #tpu.core_type<tc>, window_params = [{transform_indices = @transform_0, window_bounds = array<i64: 128, 48>}, {transform_indices = @transform_1, window_bounds = array<i64: 48, 16>}, {transform_indices = @transform_2, window_bounds = array<i64: 1, 16>}, {transform_indices = @transform_3, window_bounds = array<i64: 128, 16>}]} {
    %c0 = arith.constant 0 : index
    %c0_0 = arith.constant 0 : index
    %0 = vector.load %arg2[%c0, %c0_0] : memref<128x48xbf16, #tpu.memory_space<vmem>>, vector<128x48xbf16>
    %c0_1 = arith.constant 0 : index
    %c0_2 = arith.constant 0 : index
    %1 = vector.load %arg3[%c0_1, %c0_2] : memref<48x16xbf16, #tpu.memory_space<vmem>>, vector<48x16xbf16>
    %cst = arith.constant dense<0.000000e+00> : vector<128x16xf32>
    %2 = tpu.matmul %0, %1, %cst {dimension_numbers = #tpu.dot_dimension_numbers<[1], [0], [0], [1], [0, 0, 1, 1], [], []>} : vector<128x48xbf16>, vector<48x16xbf16>, vector<128x16xf32> -> vector<128x16xf32>
    %c0_3 = arith.constant 0 : index
    %c0_4 = arith.constant 0 : index
    %3 = vector.load %arg4[%c0_3, %c0_4] : memref<1x16xf32, #tpu.memory_space<vmem>>, vector<1x16xf32>
    %4 = vector.broadcast %3 : vector<1x16xf32> to vector<128x16xf32>
    %5 = arith.addf %2, %4 : vector<128x16xf32>
    %cst_5 = arith.constant 0.000000e+00 : f32
    %6 = vector.broadcast %cst_5 : f32 to vector<128x16xf32>
    %7 = arith.maximumf %5, %6 : vector<128x16xf32>
    %8 = arith.truncf %7 : vector<128x16xf32> to vector<128x16xbf16>
    %c0_6 = arith.constant 0 : index
    %c0_7 = arith.constant 0 : index
    %9 = vector.load %arg5[%c0_6, %c0_7] : memref<128x16xbf16, #tpu.memory_space<vmem>>, vector<128x16xbf16>
    tpu.vector_store %arg5[%c0_6, %c0_7], %8 {strides = array<i32>} : memref<128x16xbf16, #tpu.memory_space<vmem>>, vector<128x16xbf16>,
    return
  }
  func.func @transform_0(%arg0: i32, %arg1: i32) -> (i32, i32) {
    %c0_i32 = arith.constant 0 : i32
    %c0_i32_0 = arith.constant 0 : i32
    return %arg0, %c0_i32 : i32, i32
  }
  func.func @transform_1(%arg0: i32, %arg1: i32) -> (i32, i32) {
    %c0_i32 = arith.constant 0 : i32
    %c0_i32_0 = arith.constant 0 : i32
    return %c0_i32, %arg1 : i32, i32
  }
  func.func @transform_2(%arg0: i32, %arg1: i32) -> (i32, i32) {
    %c0_i32 = arith.constant 0 : i32
    %c0_i32_0 = arith.constant 0 : i32
    return %c0_i32, %arg1 : i32, i32
  }
  func.func @transform_3(%arg0: i32, %arg1: i32) -> (i32, i32) {
    %c0_i32 = arith.constant 0 : i32
    return %arg0, %arg1 : i32, i32
  }
}

module attributes {stable_mosaic.version = 11 : i64} {
  func.func @kernel(%arg0: i32, %arg1: i32, %arg2: memref<32x256xbf16, #tpu.memory_space<vmem>>, %arg3: memref<256x32xbf16, #tpu.memory_space<vmem>>, %arg4: memref<1x32xf32, #tpu.memory_space<vmem>>, %arg5: memref<32x32xbf16, #tpu.memory_space<vmem>>) attributes {dimension_semantics = [#tpu.dimension_semantics<parallel>, #tpu.dimension_semantics<parallel>], iteration_bounds = array<i64: 1, 1>, scalar_prefetch = 0 : i64, scratch_operands = 0 : i64, tpu.core_type = #tpu.core_type<tc>, window_params = [{transform_indices = @transform_0, window_bounds = array<i64: 32, 256>}, {transform_indices = @transform_1, window_bounds = array<i64: 256, 32>}, {transform_indices = @transform_2, window_bounds = array<i64: 1, 32>}, {transform_indices = @transform_3, window_bounds = array<i64: 32, 32>}]} {
    %c0 = arith.constant 0 : index
    %c0_0 = arith.constant 0 : index
    %0 = vector.load %arg2[%c0, %c0_0] : memref<32x256xbf16, #tpu.memory_space<vmem>>, vector<32x256xbf16>
    %c0_1 = arith.constant 0 : index
    %c0_2 = arith.constant 0 : index
    %1 = vector.load %arg3[%c0_1, %c0_2] : memref<256x32xbf16, #tpu.memory_space<vmem>>, vector<256x32xbf16>
    %cst = arith.constant dense<0.000000e+00> : vector<32x32xf32>
    %2 = tpu.matmul %0, %1, %cst {dimension_numbers = #tpu.dot_dimension_numbers<[1], [0], [0], [1], [0, 0, 1, 1], [], []>} : vector<32x256xbf16>, vector<256x32xbf16>, vector<32x32xf32> -> vector<32x32xf32>
    %c0_3 = arith.constant 0 : index
    %c0_4 = arith.constant 0 : index
    %3 = vector.load %arg4[%c0_3, %c0_4] : memref<1x32xf32, #tpu.memory_space<vmem>>, vector<1x32xf32>
    %4 = vector.broadcast %3 : vector<1x32xf32> to vector<32x32xf32>
    %5 = arith.addf %2, %4 : vector<32x32xf32>
    %cst_5 = arith.constant 0.000000e+00 : f32
    %6 = vector.broadcast %cst_5 : f32 to vector<32x32xf32>
    %7 = arith.maximumf %5, %6 : vector<32x32xf32>
    %8 = arith.truncf %7 : vector<32x32xf32> to vector<32x32xbf16>
    %c0_6 = arith.constant 0 : index
    %c0_7 = arith.constant 0 : index
    %9 = vector.load %arg5[%c0_6, %c0_7] : memref<32x32xbf16, #tpu.memory_space<vmem>>, vector<32x32xbf16>
    tpu.vector_store %arg5[%c0_6, %c0_7], %8 {strides = array<i32>} : memref<32x32xbf16, #tpu.memory_space<vmem>>, vector<32x32xbf16>,
    return
  }
  func.func @transform_0(%arg0: i32, %arg1: i32) -> (i32, i32) {
    %c0_i32 = arith.constant 0 : i32
    %c0_i32_0 = arith.constant 0 : i32
    return %arg0, %c0_i32 : i32, i32
  }
  func.func @transform_1(%arg0: i32, %arg1: i32) -> (i32, i32) {
    %c0_i32 = arith.constant 0 : i32
    %c0_i32_0 = arith.constant 0 : i32
    return %c0_i32, %arg1 : i32, i32
  }
  func.func @transform_2(%arg0: i32, %arg1: i32) -> (i32, i32) {
    %c0_i32 = arith.constant 0 : i32
    %c0_i32_0 = arith.constant 0 : i32
    return %c0_i32, %arg1 : i32, i32
  }
  func.func @transform_3(%arg0: i32, %arg1: i32) -> (i32, i32) {
    %c0_i32 = arith.constant 0 : i32
    return %arg0, %arg1 : i32, i32
  }
}

module attributes {stable_mosaic.version = 11 : i64} {
  func.func @kernel(%arg0: i32, %arg1: memref<32x288xbf16, #tpu.memory_space<vmem>>, %arg2: memref<32x32xbf16, #tpu.memory_space<vmem>>, %arg3: memref<288x16xbf16, #tpu.memory_space<vmem>>, %arg4: memref<16x32xbf16, #tpu.memory_space<vmem>>, %arg5: memref<32x32xbf16, #tpu.memory_space<vmem>>) attributes {dimension_semantics = [#tpu.dimension_semantics<parallel>], iteration_bounds = array<i64: 1>, scalar_prefetch = 0 : i64, scratch_operands = 0 : i64, tpu.core_type = #tpu.core_type<tc>, window_params = [{transform_indices = @transform_0, window_bounds = array<i64: 32, 288>}, {transform_indices = @transform_1, window_bounds = array<i64: 32, 32>}, {pipeline_mode = #tpu.pipeline_mode<synchronous>, transform_indices = @transform_2, window_bounds = array<i64: 288, 16>}, {pipeline_mode = #tpu.pipeline_mode<synchronous>, transform_indices = @transform_3, window_bounds = array<i64: 16, 32>}, {transform_indices = @transform_4, window_bounds = array<i64: 32, 32>}]} {
    %c0 = arith.constant 0 : index
    %c0_0 = arith.constant 0 : index
    %0 = vector.load %arg1[%c0, %c0_0] : memref<32x288xbf16, #tpu.memory_space<vmem>>, vector<32x288xbf16>
    %cst = arith.constant 0.000000e+00 : bf16
    %1 = vector.broadcast %cst : bf16 to vector<32x288xbf16>
    %2 = arith.maximumf %0, %1 : vector<32x288xbf16>
    %c0_1 = arith.constant 0 : index
    %c0_2 = arith.constant 0 : index
    %3 = vector.load %arg3[%c0_1, %c0_2] : memref<288x16xbf16, #tpu.memory_space<vmem>>, vector<288x16xbf16>
    %cst_3 = arith.constant dense<0.000000e+00> : vector<32x16xf32>
    %4 = tpu.matmul %2, %3, %cst_3 {dimension_numbers = #tpu.dot_dimension_numbers<[1], [0], [0], [1], [0, 0, 1, 1], [], []>} : vector<32x288xbf16>, vector<288x16xbf16>, vector<32x16xf32> -> vector<32x16xf32>
    %cst_4 = arith.constant 0.000000e+00 : f32
    %5 = vector.broadcast %cst_4 : f32 to vector<32x16xf32>
    %6 = arith.maximumf %4, %5 : vector<32x16xf32>
    %7 = arith.truncf %6 : vector<32x16xf32> to vector<32x16xbf16>
    %c0_5 = arith.constant 0 : index
    %c0_6 = arith.constant 0 : index
    %8 = vector.load %arg4[%c0_5, %c0_6] : memref<16x32xbf16, #tpu.memory_space<vmem>>, vector<16x32xbf16>
    %cst_7 = arith.constant dense<0.000000e+00> : vector<32x32xf32>
    %9 = tpu.matmul %7, %8, %cst_7 {dimension_numbers = #tpu.dot_dimension_numbers<[1], [0], [0], [1], [0, 0, 1, 1], [], []>} : vector<32x16xbf16>, vector<16x32xbf16>, vector<32x32xf32> -> vector<32x32xf32>
    %c0_8 = arith.constant 0 : index
    %c0_9 = arith.constant 0 : index
    %10 = vector.load %arg2[%c0_8, %c0_9] : memref<32x32xbf16, #tpu.memory_space<vmem>>, vector<32x32xbf16>
    %11 = arith.extf %10 : vector<32x32xbf16> to vector<32x32xf32>
    %12 = arith.addf %11, %9 : vector<32x32xf32>
    %13 = arith.truncf %12 : vector<32x32xf32> to vector<32x32xbf16>
    %c0_10 = arith.constant 0 : index
    %c0_11 = arith.constant 0 : index
    %14 = vector.load %arg5[%c0_10, %c0_11] : memref<32x32xbf16, #tpu.memory_space<vmem>>, vector<32x32xbf16>
    tpu.vector_store %arg5[%c0_10, %c0_11], %13 {strides = array<i32>} : memref<32x32xbf16, #tpu.memory_space<vmem>>, vector<32x32xbf16>,
    return
  }
  func.func @transform_0(%arg0: i32) -> (i32, i32) {
    %c0_i32 = arith.constant 0 : i32
    %c0_i32_0 = arith.constant 0 : i32
    return %arg0, %c0_i32 : i32, i32
  }
  func.func @transform_1(%arg0: i32) -> (i32, i32) {
    %c0_i32 = arith.constant 0 : i32
    %c0_i32_0 = arith.constant 0 : i32
    return %arg0, %c0_i32 : i32, i32
  }
  func.func @transform_2(%arg0: i32) -> (i32, i32) {
    %c0_i32 = arith.constant 0 : i32
    %c0_i32_0 = arith.constant 0 : i32
    %c0_i32_1 = arith.constant 0 : i32
    return %c0_i32, %c0_i32_0 : i32, i32
  }
  func.func @transform_3(%arg0: i32) -> (i32, i32) {
    %c0_i32 = arith.constant 0 : i32
    %c0_i32_0 = arith.constant 0 : i32
    %c0_i32_1 = arith.constant 0 : i32
    return %c0_i32, %c0_i32_0 : i32, i32
  }
  func.func @transform_4(%arg0: i32) -> (i32, i32) {
    %c0_i32 = arith.constant 0 : i32
    %c0_i32_0 = arith.constant 0 : i32
    return %arg0, %c0_i32 : i32, i32
  }
}

module attributes {stable_mosaic.version = 11 : i64} {
  func.func @kernel(%arg0: i32, %arg1: i32, %arg2: memref<32x288xbf16, #tpu.memory_space<vmem>>, %arg3: memref<288x32xbf16, #tpu.memory_space<vmem>>, %arg4: memref<1x32xf32, #tpu.memory_space<vmem>>, %arg5: memref<32x32xbf16, #tpu.memory_space<vmem>>) attributes {dimension_semantics = [#tpu.dimension_semantics<parallel>, #tpu.dimension_semantics<parallel>], iteration_bounds = array<i64: 1, 1>, scalar_prefetch = 0 : i64, scratch_operands = 0 : i64, tpu.core_type = #tpu.core_type<tc>, window_params = [{transform_indices = @transform_0, window_bounds = array<i64: 32, 288>}, {transform_indices = @transform_1, window_bounds = array<i64: 288, 32>}, {transform_indices = @transform_2, window_bounds = array<i64: 1, 32>}, {transform_indices = @transform_3, window_bounds = array<i64: 32, 32>}]} {
    %c0 = arith.constant 0 : index
    %c0_0 = arith.constant 0 : index
    %0 = vector.load %arg2[%c0, %c0_0] : memref<32x288xbf16, #tpu.memory_space<vmem>>, vector<32x288xbf16>
    %c0_1 = arith.constant 0 : index
    %c0_2 = arith.constant 0 : index
    %1 = vector.load %arg3[%c0_1, %c0_2] : memref<288x32xbf16, #tpu.memory_space<vmem>>, vector<288x32xbf16>
    %cst = arith.constant dense<0.000000e+00> : vector<32x32xf32>
    %2 = tpu.matmul %0, %1, %cst {dimension_numbers = #tpu.dot_dimension_numbers<[1], [0], [0], [1], [0, 0, 1, 1], [], []>} : vector<32x288xbf16>, vector<288x32xbf16>, vector<32x32xf32> -> vector<32x32xf32>
    %c0_3 = arith.constant 0 : index
    %c0_4 = arith.constant 0 : index
    %3 = vector.load %arg4[%c0_3, %c0_4] : memref<1x32xf32, #tpu.memory_space<vmem>>, vector<1x32xf32>
    %4 = vector.broadcast %3 : vector<1x32xf32> to vector<32x32xf32>
    %5 = arith.addf %2, %4 : vector<32x32xf32>
    %6 = arith.truncf %5 : vector<32x32xf32> to vector<32x32xbf16>
    %c0_5 = arith.constant 0 : index
    %c0_6 = arith.constant 0 : index
    %7 = vector.load %arg5[%c0_5, %c0_6] : memref<32x32xbf16, #tpu.memory_space<vmem>>, vector<32x32xbf16>
    tpu.vector_store %arg5[%c0_5, %c0_6], %6 {strides = array<i32>} : memref<32x32xbf16, #tpu.memory_space<vmem>>, vector<32x32xbf16>,
    return
  }
  func.func @transform_0(%arg0: i32, %arg1: i32) -> (i32, i32) {
    %c0_i32 = arith.constant 0 : i32
    %c0_i32_0 = arith.constant 0 : i32
    return %arg0, %c0_i32 : i32, i32
  }
  func.func @transform_1(%arg0: i32, %arg1: i32) -> (i32, i32) {
    %c0_i32 = arith.constant 0 : i32
    %c0_i32_0 = arith.constant 0 : i32
    return %c0_i32, %arg1 : i32, i32
  }
  func.func @transform_2(%arg0: i32, %arg1: i32) -> (i32, i32) {
    %c0_i32 = arith.constant 0 : i32
    %c0_i32_0 = arith.constant 0 : i32
    return %c0_i32, %arg1 : i32, i32
  }
  func.func @transform_3(%arg0: i32, %arg1: i32) -> (i32, i32) {
    %c0_i32 = arith.constant 0 : i32
    return %arg0, %arg1 : i32, i32
  }
}

module attributes {stable_mosaic.version = 11 : i64} {
  func.func @kernel(%arg0: i32, %arg1: memref<32x32xbf16, #tpu.memory_space<vmem>>, %arg2: memref<32x16xbf16, #tpu.memory_space<vmem>>, %arg3: memref<1x16xf32, #tpu.memory_space<vmem>>, %arg4: memref<16x128xbf16, #tpu.memory_space<vmem>>, %arg5: memref<128x16xf32, #tpu.memory_space<vmem>>, %arg6: memref<1x128xf32, #tpu.memory_space<vmem>>, %arg7: memref<32x16xbf16, #tpu.memory_space<vmem>>, %arg8: memref<1x1xf32, #tpu.memory_space<vmem>>, %arg9: memref<1x1xf32, #tpu.memory_space<vmem>>, %arg10: memref<1x128xf32, #tpu.memory_space<vmem>>, %arg11: memref<1x1xf32, #tpu.memory_space<vmem>>) attributes {dimension_semantics = [#tpu.dimension_semantics<arbitrary>], iteration_bounds = array<i64: 1>, scalar_prefetch = 0 : i64, scratch_operands = 2 : i64, tpu.core_type = #tpu.core_type<tc>, window_params = [{transform_indices = @transform_0, window_bounds = array<i64: 32, 32>}, {pipeline_mode = #tpu.pipeline_mode<synchronous>, transform_indices = @transform_1, window_bounds = array<i64: 32, 16>}, {pipeline_mode = #tpu.pipeline_mode<synchronous>, transform_indices = @transform_2, window_bounds = array<i64: 1, 16>}, {pipeline_mode = #tpu.pipeline_mode<synchronous>, transform_indices = @transform_3, window_bounds = array<i64: 16, 128>}, {pipeline_mode = #tpu.pipeline_mode<synchronous>, transform_indices = @transform_4, window_bounds = array<i64: 128, 16>}, {pipeline_mode = #tpu.pipeline_mode<synchronous>, transform_indices = @transform_5, window_bounds = array<i64: 1, 128>}, {transform_indices = @transform_6, window_bounds = array<i64: 32, 16>}, {pipeline_mode = #tpu.pipeline_mode<synchronous>, transform_indices = @transform_7, window_bounds = array<i64: 1, 1>}, {pipeline_mode = #tpu.pipeline_mode<synchronous>, transform_indices = @transform_8, window_bounds = array<i64: 1, 1>}]} {
    %c0_i32 = arith.constant 0 : i32
    %0 = arith.cmpi eq, %arg0, %c0_i32 : i32
    %1 = arith.extui %0 : i1 to i32
    %c0_i32_0 = arith.constant 0 : i32
    %2 = arith.cmpi ne, %1, %c0_i32_0 : i32
    scf.if %2 {
      %cst_35 = arith.constant 0.000000e+00 : f32
      %70 = vector.broadcast %cst_35 : f32 to vector<1x128xf32>
      %c0_36 = arith.constant 0 : index
      %c0_37 = arith.constant 0 : index
      %71 = vector.load %arg10[%c0_36, %c0_37] : memref<1x128xf32, #tpu.memory_space<vmem>>, vector<1x128xf32>
      tpu.vector_store %arg10[%c0_36, %c0_37], %70 {strides = array<i32>} : memref<1x128xf32, #tpu.memory_space<vmem>>, vector<1x128xf32>,
      %cst_38 = arith.constant 0.000000e+00 : f32
      %72 = vector.broadcast %cst_38 : f32 to vector<1x1xf32>
      %c0_39 = arith.constant 0 : index
      %c0_40 = arith.constant 0 : index
      %73 = vector.load %arg11[%c0_39, %c0_40] : memref<1x1xf32, #tpu.memory_space<vmem>>, vector<1x1xf32>
      tpu.vector_store %arg11[%c0_39, %c0_40], %72 {strides = array<i32>} : memref<1x1xf32, #tpu.memory_space<vmem>>, vector<1x1xf32>,
    } else {
    }
    %c0 = arith.constant 0 : index
    %c0_1 = arith.constant 0 : index
    %3 = vector.load %arg1[%c0, %c0_1] : memref<32x32xbf16, #tpu.memory_space<vmem>>, vector<32x32xbf16>
    %cst = arith.constant 0.000000e+00 : bf16
    %4 = vector.broadcast %cst : bf16 to vector<32x32xbf16>
    %5 = arith.maximumf %3, %4 : vector<32x32xbf16>
    %c0_2 = arith.constant 0 : index
    %c0_3 = arith.constant 0 : index
    %6 = vector.load %arg2[%c0_2, %c0_3] : memref<32x16xbf16, #tpu.memory_space<vmem>>, vector<32x16xbf16>
    %cst_4 = arith.constant dense<0.000000e+00> : vector<32x16xf32>
    %7 = tpu.matmul %5, %6, %cst_4 {dimension_numbers = #tpu.dot_dimension_numbers<[1], [0], [0], [1], [0, 0, 1, 1], [], []>} : vector<32x32xbf16>, vector<32x16xbf16>, vector<32x16xf32> -> vector<32x16xf32>
    %c0_5 = arith.constant 0 : index
    %c0_6 = arith.constant 0 : index
    %8 = vector.load %arg3[%c0_5, %c0_6] : memref<1x16xf32, #tpu.memory_space<vmem>>, vector<1x16xf32>
    %9 = vector.broadcast %8 : vector<1x16xf32> to vector<32x16xf32>
    %10 = arith.addf %7, %9 : vector<32x16xf32>
    %11 = arith.mulf %10, %10 : vector<32x16xf32>
    %cst_7 = arith.constant dense<0.000000e+00> : vector<32xf32>
    %12 = vector.multi_reduction <add>, %11, %cst_7 [1] : vector<32x16xf32> to vector<32xf32>
    %13 = vector.shape_cast %12 : vector<32xf32> to vector<32x1xf32>
    %c0_8 = arith.constant 0 : index
    %c0_9 = arith.constant 0 : index
    %14 = vector.load %arg6[%c0_8, %c0_9] : memref<1x128xf32, #tpu.memory_space<vmem>>, vector<1x128xf32>
    %15 = vector.broadcast %13 : vector<32x1xf32> to vector<32x128xf32>
    %16 = vector.broadcast %14 : vector<1x128xf32> to vector<32x128xf32>
    %17 = arith.addf %15, %16 : vector<32x128xf32>
    %18 = arith.truncf %10 : vector<32x16xf32> to vector<32x16xbf16>
    %c0_10 = arith.constant 0 : index
    %c0_11 = arith.constant 0 : index
    %19 = vector.load %arg4[%c0_10, %c0_11] : memref<16x128xbf16, #tpu.memory_space<vmem>>, vector<16x128xbf16>
    %cst_12 = arith.constant dense<0.000000e+00> : vector<32x128xf32>
    %20 = tpu.matmul %18, %19, %cst_12 {dimension_numbers = #tpu.dot_dimension_numbers<[1], [0], [0], [1], [0, 0, 1, 1], [], []>} : vector<32x16xbf16>, vector<16x128xbf16>, vector<32x128xf32> -> vector<32x128xf32>
    %cst_13 = arith.constant 2.000000e+00 : f32
    %21 = vector.broadcast %cst_13 : f32 to vector<32x128xf32>
    %22 = arith.mulf %21, %20 : vector<32x128xf32>
    %23 = arith.subf %17, %22 : vector<32x128xf32>
    %24 = tpu.iota {dimensions = array<i32: 1>} : vector<32x128xi32>
    %cst_14 = arith.constant dense<0x7F800000> : vector<32xf32>
    %25 = vector.multi_reduction <minimumf>, %23, %cst_14 [1] : vector<32x128xf32> to vector<32xf32>
    %26 = vector.shape_cast %25 : vector<32xf32> to vector<32x1xf32>
    %27 = vector.broadcast %26 : vector<32x1xf32> to vector<32x128xf32>
    %28 = arith.cmpf ole, %23, %27 : vector<32x128xf32>
    %c128_i32 = arith.constant 128 : i32
    %29 = vector.broadcast %c128_i32 : i32 to vector<32x128xi32>
    %30 = arith.select %28, %24, %29 : vector<32x128xi1>, vector<32x128xi32>
    %cst_15 = arith.constant dense<2147483647> : vector<32xi32>
    %31 = vector.multi_reduction <minsi>, %30, %cst_15 [1] : vector<32x128xi32> to vector<32xi32>
    %32 = vector.shape_cast %31 : vector<32xi32> to vector<32x1xi32>
    %33 = vector.broadcast %32 : vector<32x1xi32> to vector<32x128xi32>
    %34 = arith.cmpi eq, %24, %33 : vector<32x128xi32>
    %35 = arith.extui %34 : vector<32x128xi1> to vector<32x128xi32>
    %36 = arith.sitofp %35 : vector<32x128xi32> to vector<32x128xf32>
    %c32_i32 = arith.constant 32 : i32
    %37 = arith.muli %arg0, %c32_i32 : i32
    %38 = tpu.iota {dimensions = array<i32: 0>} : vector<32x1xi32>
    %39 = vector.broadcast %37 : i32 to vector<32x1xi32>
    %40 = arith.addi %39, %38 : vector<32x1xi32>
    %c32_i32_16 = arith.constant 32 : i32
    %41 = vector.broadcast %c32_i32_16 : i32 to vector<32x1xi32>
    %42 = arith.cmpi slt, %40, %41 : vector<32x1xi32>
    %43 = arith.extui %42 : vector<32x1xi1> to vector<32x1xi32>
    %44 = arith.sitofp %43 : vector<32x1xi32> to vector<32x1xf32>
    %45 = vector.broadcast %44 : vector<32x1xf32> to vector<32x128xf32>
    %46 = arith.mulf %36, %45 : vector<32x128xf32>
    %c0_17 = arith.constant 0 : index
    %c0_18 = arith.constant 0 : index
    %47 = vector.load %arg5[%c0_17, %c0_18] : memref<128x16xf32, #tpu.memory_space<vmem>>, vector<128x16xf32>
    %cst_19 = arith.constant dense<0.000000e+00> : vector<32x16xf32>
    %48 = tpu.matmul %46, %47, %cst_19 {dimension_numbers = #tpu.dot_dimension_numbers<[1], [0], [0], [1], [0, 0, 1, 1], [], []>} : vector<32x128xf32>, vector<128x16xf32>, vector<32x16xf32> -> vector<32x16xf32>
    %49 = arith.truncf %48 : vector<32x16xf32> to vector<32x16xbf16>
    %c0_20 = arith.constant 0 : index
    %c0_21 = arith.constant 0 : index
    %50 = vector.load %arg7[%c0_20, %c0_21] : memref<32x16xbf16, #tpu.memory_space<vmem>>, vector<32x16xbf16>
    tpu.vector_store %arg7[%c0_20, %c0_21], %49 {strides = array<i32>} : memref<32x16xbf16, #tpu.memory_space<vmem>>, vector<32x16xbf16>,
    %51 = arith.subf %48, %10 : vector<32x16xf32>
    %52 = vector.broadcast %44 : vector<32x1xf32> to vector<32x16xf32>
    %53 = arith.mulf %51, %52 : vector<32x16xf32>
    %c0_22 = arith.constant 0 : index
    %c0_23 = arith.constant 0 : index
    %54 = vector.load %arg11[%c0_22, %c0_23] : memref<1x1xf32, #tpu.memory_space<vmem>>, vector<1x1xf32>
    %55 = arith.mulf %53, %53 : vector<32x16xf32>
    %cst_24 = arith.constant dense<0.000000e+00> : vector<32xf32>
    %56 = vector.multi_reduction <add>, %55, %cst_24 [1] : vector<32x16xf32> to vector<32xf32>
    %57 = vector.shape_cast %56 : vector<32xf32> to vector<32x1xf32>
    %cst_25 = arith.constant dense<0.000000e+00> : vector<1xf32>
    %58 = vector.multi_reduction <add>, %57, %cst_25 [0] : vector<32x1xf32> to vector<1xf32>
    %59 = vector.shape_cast %58 : vector<1xf32> to vector<1x1xf32>
    %60 = arith.addf %54, %59 : vector<1x1xf32>
    %c0_26 = arith.constant 0 : index
    %c0_27 = arith.constant 0 : index
    %61 = vector.load %arg11[%c0_26, %c0_27] : memref<1x1xf32, #tpu.memory_space<vmem>>, vector<1x1xf32>
    tpu.vector_store %arg11[%c0_26, %c0_27], %60 {strides = array<i32>} : memref<1x1xf32, #tpu.memory_space<vmem>>, vector<1x1xf32>,
    %c0_28 = arith.constant 0 : index
    %c0_29 = arith.constant 0 : index
    %62 = vector.load %arg10[%c0_28, %c0_29] : memref<1x128xf32, #tpu.memory_space<vmem>>, vector<1x128xf32>
    %cst_30 = arith.constant dense<0.000000e+00> : vector<128xf32>
    %63 = vector.multi_reduction <add>, %46, %cst_30 [0] : vector<32x128xf32> to vector<128xf32>
    %64 = vector.shape_cast %63 : vector<128xf32> to vector<1x128xf32>
    %65 = arith.addf %62, %64 : vector<1x128xf32>
    %c0_31 = arith.constant 0 : index
    %c0_32 = arith.constant 0 : index
    %66 = vector.load %arg10[%c0_31, %c0_32] : memref<1x128xf32, #tpu.memory_space<vmem>>, vector<1x128xf32>
    tpu.vector_store %arg10[%c0_31, %c0_32], %65 {strides = array<i32>} : memref<1x128xf32, #tpu.memory_space<vmem>>, vector<1x128xf32>,
    %c0_i32_33 = arith.constant 0 : i32
    %67 = arith.cmpi eq, %arg0, %c0_i32_33 : i32
    %68 = arith.extui %67 : i1 to i32
    %c0_i32_34 = arith.constant 0 : i32
    %69 = arith.cmpi ne, %68, %c0_i32_34 : i32
    scf.if %69 {
      %c0_35 = arith.constant 0 : index
      %c0_36 = arith.constant 0 : index
      %70 = vector.load %arg11[%c0_35, %c0_36] : memref<1x1xf32, #tpu.memory_space<vmem>>, vector<1x1xf32>
      %cst_37 = arith.constant 1.250000e+00 : f32
      %71 = vector.broadcast %cst_37 : f32 to vector<1x1xf32>
      %72 = arith.mulf %71, %70 : vector<1x1xf32>
      %cst_38 = arith.constant 5.120000e+02 : f32
      %73 = vector.broadcast %cst_38 : f32 to vector<1x1xf32>
      %74 = arith.divf %72, %73 : vector<1x1xf32>
      %c0_39 = arith.constant 0 : index
      %c0_40 = arith.constant 0 : index
      %75 = vector.load %arg8[%c0_39, %c0_40] : memref<1x1xf32, #tpu.memory_space<vmem>>, vector<1x1xf32>
      tpu.vector_store %arg8[%c0_39, %c0_40], %74 {strides = array<i32>} : memref<1x1xf32, #tpu.memory_space<vmem>>, vector<1x1xf32>,
      %c0_41 = arith.constant 0 : index
      %c0_42 = arith.constant 0 : index
      %76 = vector.load %arg10[%c0_41, %c0_42] : memref<1x128xf32, #tpu.memory_space<vmem>>, vector<1x128xf32>
      %cst_43 = arith.constant 3.200000e+01 : f32
      %77 = vector.broadcast %cst_43 : f32 to vector<1x128xf32>
      %78 = arith.divf %76, %77 : vector<1x128xf32>
      %cst_44 = arith.constant 1.000000e-10 : f32
      %79 = vector.broadcast %cst_44 : f32 to vector<1x128xf32>
      %80 = arith.addf %78, %79 : vector<1x128xf32>
      %81 = math.log %80 : vector<1x128xf32>
      %82 = arith.mulf %78, %81 : vector<1x128xf32>
      %cst_45 = arith.constant dense<0.000000e+00> : vector<1xf32>
      %83 = vector.multi_reduction <add>, %82, %cst_45 [1] : vector<1x128xf32> to vector<1xf32>
      %84 = vector.shape_cast %83 : vector<1xf32> to vector<1x1xf32>
      %cst_46 = arith.constant 0.000000e+00 : f32
      %85 = vector.broadcast %cst_46 : f32 to vector<1x1xf32>
      %86 = arith.subf %85, %84 : vector<1x1xf32>
      %87 = math.exp %86 : vector<1x1xf32>
      %c0_47 = arith.constant 0 : index
      %c0_48 = arith.constant 0 : index
      %88 = vector.load %arg9[%c0_47, %c0_48] : memref<1x1xf32, #tpu.memory_space<vmem>>, vector<1x1xf32>
      tpu.vector_store %arg9[%c0_47, %c0_48], %87 {strides = array<i32>} : memref<1x1xf32, #tpu.memory_space<vmem>>, vector<1x1xf32>,
    } else {
    }
    return
  }
  func.func @transform_0(%arg0: i32) -> (i32, i32) {
    %c0_i32 = arith.constant 0 : i32
    %c0_i32_0 = arith.constant 0 : i32
    return %arg0, %c0_i32 : i32, i32
  }
  func.func @transform_1(%arg0: i32) -> (i32, i32) {
    %c0_i32 = arith.constant 0 : i32
    %c0_i32_0 = arith.constant 0 : i32
    %c0_i32_1 = arith.constant 0 : i32
    return %c0_i32, %c0_i32_0 : i32, i32
  }
  func.func @transform_2(%arg0: i32) -> (i32, i32) {
    %c0_i32 = arith.constant 0 : i32
    %c0_i32_0 = arith.constant 0 : i32
    %c0_i32_1 = arith.constant 0 : i32
    return %c0_i32, %c0_i32_0 : i32, i32
  }
  func.func @transform_3(%arg0: i32) -> (i32, i32) {
    %c0_i32 = arith.constant 0 : i32
    %c0_i32_0 = arith.constant 0 : i32
    %c0_i32_1 = arith.constant 0 : i32
    return %c0_i32, %c0_i32_0 : i32, i32
  }
  func.func @transform_4(%arg0: i32) -> (i32, i32) {
    %c0_i32 = arith.constant 0 : i32
    %c0_i32_0 = arith.constant 0 : i32
    %c0_i32_1 = arith.constant 0 : i32
    return %c0_i32, %c0_i32_0 : i32, i32
  }
  func.func @transform_5(%arg0: i32) -> (i32, i32) {
    %c0_i32 = arith.constant 0 : i32
    %c0_i32_0 = arith.constant 0 : i32
    %c0_i32_1 = arith.constant 0 : i32
    return %c0_i32, %c0_i32_0 : i32, i32
  }
  func.func @transform_6(%arg0: i32) -> (i32, i32) {
    %c0_i32 = arith.constant 0 : i32
    %c0_i32_0 = arith.constant 0 : i32
    return %arg0, %c0_i32 : i32, i32
  }
  func.func @transform_7(%arg0: i32) -> (i32, i32) {
    %c0_i32 = arith.constant 0 : i32
    %c0_i32_0 = arith.constant 0 : i32
    %c0_i32_1 = arith.constant 0 : i32
    return %c0_i32, %c0_i32_0 : i32, i32
  }
  func.func @transform_8(%arg0: i32) -> (i32, i32) {
    %c0_i32 = arith.constant 0 : i32
    %c0_i32_0 = arith.constant 0 : i32
    %c0_i32_1 = arith.constant 0 : i32
    return %c0_i32, %c0_i32_0 : i32, i32
  }
}

module attributes {stable_mosaic.version = 11 : i64} {
  func.func @kernel(%arg0: i32, %arg1: i32, %arg2: memref<32x144xbf16, #tpu.memory_space<vmem>>, %arg3: memref<144x32xbf16, #tpu.memory_space<vmem>>, %arg4: memref<1x32xf32, #tpu.memory_space<vmem>>, %arg5: memref<32x32xbf16, #tpu.memory_space<vmem>>) attributes {dimension_semantics = [#tpu.dimension_semantics<parallel>, #tpu.dimension_semantics<parallel>], iteration_bounds = array<i64: 1, 1>, scalar_prefetch = 0 : i64, scratch_operands = 0 : i64, tpu.core_type = #tpu.core_type<tc>, window_params = [{transform_indices = @transform_0, window_bounds = array<i64: 32, 144>}, {transform_indices = @transform_1, window_bounds = array<i64: 144, 32>}, {transform_indices = @transform_2, window_bounds = array<i64: 1, 32>}, {transform_indices = @transform_3, window_bounds = array<i64: 32, 32>}]} {
    %c0 = arith.constant 0 : index
    %c0_0 = arith.constant 0 : index
    %0 = vector.load %arg2[%c0, %c0_0] : memref<32x144xbf16, #tpu.memory_space<vmem>>, vector<32x144xbf16>
    %c0_1 = arith.constant 0 : index
    %c0_2 = arith.constant 0 : index
    %1 = vector.load %arg3[%c0_1, %c0_2] : memref<144x32xbf16, #tpu.memory_space<vmem>>, vector<144x32xbf16>
    %cst = arith.constant dense<0.000000e+00> : vector<32x32xf32>
    %2 = tpu.matmul %0, %1, %cst {dimension_numbers = #tpu.dot_dimension_numbers<[1], [0], [0], [1], [0, 0, 1, 1], [], []>} : vector<32x144xbf16>, vector<144x32xbf16>, vector<32x32xf32> -> vector<32x32xf32>
    %c0_3 = arith.constant 0 : index
    %c0_4 = arith.constant 0 : index
    %3 = vector.load %arg4[%c0_3, %c0_4] : memref<1x32xf32, #tpu.memory_space<vmem>>, vector<1x32xf32>
    %4 = vector.broadcast %3 : vector<1x32xf32> to vector<32x32xf32>
    %5 = arith.addf %2, %4 : vector<32x32xf32>
    %6 = arith.truncf %5 : vector<32x32xf32> to vector<32x32xbf16>
    %c0_5 = arith.constant 0 : index
    %c0_6 = arith.constant 0 : index
    %7 = vector.load %arg5[%c0_5, %c0_6] : memref<32x32xbf16, #tpu.memory_space<vmem>>, vector<32x32xbf16>
    tpu.vector_store %arg5[%c0_5, %c0_6], %6 {strides = array<i32>} : memref<32x32xbf16, #tpu.memory_space<vmem>>, vector<32x32xbf16>,
    return
  }
  func.func @transform_0(%arg0: i32, %arg1: i32) -> (i32, i32) {
    %c0_i32 = arith.constant 0 : i32
    %c0_i32_0 = arith.constant 0 : i32
    return %arg0, %c0_i32 : i32, i32
  }
  func.func @transform_1(%arg0: i32, %arg1: i32) -> (i32, i32) {
    %c0_i32 = arith.constant 0 : i32
    %c0_i32_0 = arith.constant 0 : i32
    return %c0_i32, %arg1 : i32, i32
  }
  func.func @transform_2(%arg0: i32, %arg1: i32) -> (i32, i32) {
    %c0_i32 = arith.constant 0 : i32
    %c0_i32_0 = arith.constant 0 : i32
    return %c0_i32, %arg1 : i32, i32
  }
  func.func @transform_3(%arg0: i32, %arg1: i32) -> (i32, i32) {
    %c0_i32 = arith.constant 0 : i32
    return %arg0, %arg1 : i32, i32
  }
}

module attributes {stable_mosaic.version = 11 : i64} {
  func.func @kernel(%arg0: i32, %arg1: i32, %arg2: memref<32x288xbf16, #tpu.memory_space<vmem>>, %arg3: memref<288x64xbf16, #tpu.memory_space<vmem>>, %arg4: memref<1x64xf32, #tpu.memory_space<vmem>>, %arg5: memref<32x64xbf16, #tpu.memory_space<vmem>>) attributes {dimension_semantics = [#tpu.dimension_semantics<parallel>, #tpu.dimension_semantics<parallel>], iteration_bounds = array<i64: 1, 1>, scalar_prefetch = 0 : i64, scratch_operands = 0 : i64, tpu.core_type = #tpu.core_type<tc>, window_params = [{transform_indices = @transform_0, window_bounds = array<i64: 32, 288>}, {transform_indices = @transform_1, window_bounds = array<i64: 288, 64>}, {transform_indices = @transform_2, window_bounds = array<i64: 1, 64>}, {transform_indices = @transform_3, window_bounds = array<i64: 32, 64>}]} {
    %c0 = arith.constant 0 : index
    %c0_0 = arith.constant 0 : index
    %0 = vector.load %arg2[%c0, %c0_0] : memref<32x288xbf16, #tpu.memory_space<vmem>>, vector<32x288xbf16>
    %cst = arith.constant 0.000000e+00 : bf16
    %1 = vector.broadcast %cst : bf16 to vector<32x288xbf16>
    %2 = arith.maximumf %0, %1 : vector<32x288xbf16>
    %c0_1 = arith.constant 0 : index
    %c0_2 = arith.constant 0 : index
    %3 = vector.load %arg3[%c0_1, %c0_2] : memref<288x64xbf16, #tpu.memory_space<vmem>>, vector<288x64xbf16>
    %cst_3 = arith.constant dense<0.000000e+00> : vector<32x64xf32>
    %4 = tpu.matmul %2, %3, %cst_3 {dimension_numbers = #tpu.dot_dimension_numbers<[1], [0], [0], [1], [0, 0, 1, 1], [], []>} : vector<32x288xbf16>, vector<288x64xbf16>, vector<32x64xf32> -> vector<32x64xf32>
    %c0_4 = arith.constant 0 : index
    %c0_5 = arith.constant 0 : index
    %5 = vector.load %arg4[%c0_4, %c0_5] : memref<1x64xf32, #tpu.memory_space<vmem>>, vector<1x64xf32>
    %6 = vector.broadcast %5 : vector<1x64xf32> to vector<32x64xf32>
    %7 = arith.addf %4, %6 : vector<32x64xf32>
    %cst_6 = arith.constant 0.000000e+00 : f32
    %8 = vector.broadcast %cst_6 : f32 to vector<32x64xf32>
    %9 = arith.maximumf %7, %8 : vector<32x64xf32>
    %10 = arith.truncf %9 : vector<32x64xf32> to vector<32x64xbf16>
    %c0_7 = arith.constant 0 : index
    %c0_8 = arith.constant 0 : index
    %11 = vector.load %arg5[%c0_7, %c0_8] : memref<32x64xbf16, #tpu.memory_space<vmem>>, vector<32x64xbf16>
    tpu.vector_store %arg5[%c0_7, %c0_8], %10 {strides = array<i32>} : memref<32x64xbf16, #tpu.memory_space<vmem>>, vector<32x64xbf16>,
    return
  }
  func.func @transform_0(%arg0: i32, %arg1: i32) -> (i32, i32) {
    %c0_i32 = arith.constant 0 : i32
    %c0_i32_0 = arith.constant 0 : i32
    return %arg0, %c0_i32 : i32, i32
  }
  func.func @transform_1(%arg0: i32, %arg1: i32) -> (i32, i32) {
    %c0_i32 = arith.constant 0 : i32
    %c0_i32_0 = arith.constant 0 : i32
    return %c0_i32, %arg1 : i32, i32
  }
  func.func @transform_2(%arg0: i32, %arg1: i32) -> (i32, i32) {
    %c0_i32 = arith.constant 0 : i32
    %c0_i32_0 = arith.constant 0 : i32
    return %c0_i32, %arg1 : i32, i32
  }
  func.func @transform_3(%arg0: i32, %arg1: i32) -> (i32, i32) {
    %c0_i32 = arith.constant 0 : i32
    return %arg0, %arg1 : i32, i32
  }
}

module attributes {stable_mosaic.version = 11 : i64} {
  func.func @kernel(%arg0: i32, %arg1: i32, %arg2: memref<128x144xbf16, #tpu.memory_space<vmem>>, %arg3: memref<144x12xbf16, #tpu.memory_space<vmem>>, %arg4: memref<1x12xf32, #tpu.memory_space<vmem>>, %arg5: memref<128x12xf32, #tpu.memory_space<vmem>>) attributes {dimension_semantics = [#tpu.dimension_semantics<parallel>, #tpu.dimension_semantics<parallel>], iteration_bounds = array<i64: 1, 1>, scalar_prefetch = 0 : i64, scratch_operands = 0 : i64, tpu.core_type = #tpu.core_type<tc>, window_params = [{transform_indices = @transform_0, window_bounds = array<i64: 128, 144>}, {transform_indices = @transform_1, window_bounds = array<i64: 144, 12>}, {transform_indices = @transform_2, window_bounds = array<i64: 1, 12>}, {transform_indices = @transform_3, window_bounds = array<i64: 128, 12>}]} {
    %c0 = arith.constant 0 : index
    %c0_0 = arith.constant 0 : index
    %0 = vector.load %arg2[%c0, %c0_0] : memref<128x144xbf16, #tpu.memory_space<vmem>>, vector<128x144xbf16>
    %c0_1 = arith.constant 0 : index
    %c0_2 = arith.constant 0 : index
    %1 = vector.load %arg3[%c0_1, %c0_2] : memref<144x12xbf16, #tpu.memory_space<vmem>>, vector<144x12xbf16>
    %cst = arith.constant dense<0.000000e+00> : vector<128x12xf32>
    %2 = tpu.matmul %0, %1, %cst {dimension_numbers = #tpu.dot_dimension_numbers<[1], [0], [0], [1], [0, 0, 1, 1], [], []>} : vector<128x144xbf16>, vector<144x12xbf16>, vector<128x12xf32> -> vector<128x12xf32>
    %c0_3 = arith.constant 0 : index
    %c0_4 = arith.constant 0 : index
    %3 = vector.load %arg4[%c0_3, %c0_4] : memref<1x12xf32, #tpu.memory_space<vmem>>, vector<1x12xf32>
    %4 = vector.broadcast %3 : vector<1x12xf32> to vector<128x12xf32>
    %5 = arith.addf %2, %4 : vector<128x12xf32>
    %c0_5 = arith.constant 0 : index
    %c0_6 = arith.constant 0 : index
    %6 = vector.load %arg5[%c0_5, %c0_6] : memref<128x12xf32, #tpu.memory_space<vmem>>, vector<128x12xf32>
    tpu.vector_store %arg5[%c0_5, %c0_6], %5 {strides = array<i32>} : memref<128x12xf32, #tpu.memory_space<vmem>>, vector<128x12xf32>,
    return
  }
  func.func @transform_0(%arg0: i32, %arg1: i32) -> (i32, i32) {
    %c0_i32 = arith.constant 0 : i32
    %c0_i32_0 = arith.constant 0 : i32
    return %arg0, %c0_i32 : i32, i32
  }
  func.func @transform_1(%arg0: i32, %arg1: i32) -> (i32, i32) {
    %c0_i32 = arith.constant 0 : i32
    %c0_i32_0 = arith.constant 0 : i32
    return %c0_i32, %arg1 : i32, i32
  }
  func.func @transform_2(%arg0: i32, %arg1: i32) -> (i32, i32) {
    %c0_i32 = arith.constant 0 : i32
    %c0_i32_0 = arith.constant 0 : i32
    return %c0_i32, %arg1 : i32, i32
  }
  func.func @transform_3(%arg0: i32, %arg1: i32) -> (i32, i32) {
    %c0_i32 = arith.constant 0 : i32
    return %arg0, %arg1 : i32, i32
  }
}

</mosaic_0001>

<llo_original>
// kernel: vqvae_forward.11
$region0: #{vqvae_forward.11}
  #allocation0 [shape = 'u32[]', space=smem, size = 0x4, offset = 0x4, fixed_abs, tag = 'smem constant byte address 0x4 - core index']
  #allocation1 [shape = 'u32[144,128]{1,0:T(1,128)}', space=vmem, size = 0x12000, scoped, tag = 'internal scratch']
  %s0 = inlined_call_operand.vmem [shape: bf16[128,48], index: 0, kind: input, shape index: {}]
  %s1 = inlined_call_operand.vmem [shape: bf16[48,16], index: 1, kind: input, shape index: {}]
  %s2 = inlined_call_operand.vmem [shape: f32[1,16], index: 2, kind: input, shape index: {}]
  %s3 = inlined_call_operand.vmem [shape: bf16[128,16], index: 3, kind: output, shape index: {}]
  %s4 = sld [smem:[#allocation0]]
  $region22: #{vqvae_forward.11} parent=0
    _
  %s6 = ssub.s32 1, %s4
  %s7 = scalar_select 0, %s6, %s4
  // Predicated region
  $region2: #{vqvae_forward.11} parent=0 // pred_check
    _
  $region3: #{vqvae_forward.11} parent=0 // pred_check_branch
    %9 = sbr.rel (0) target = $region5
  $region4: #{vqvae_forward.11} parent=0 // pred_region
    _
  $region5: #{vqvae_forward.11} parent=0 // pred_fallthru
    _
  // Predicated region
  $region6: #{vqvae_forward.11} parent=0 // pred_check
    _
  $region7: #{vqvae_forward.11} parent=0 // pred_check_branch
    %11 = sbr.rel (0) target = $region9
  $region8: #{vqvae_forward.11} parent=0 // pred_region
    _
  $region9: #{vqvae_forward.11} parent=0 // pred_fallthru
    _
  // Predicated region
  $region10: #{vqvae_forward.11} parent=0 // pred_check
    _
  $region11: #{vqvae_forward.11} parent=0 // pred_check_branch
    %13 = sbr.rel (0) target = $region13
  $region12: #{vqvae_forward.11} parent=0 // pred_region
    _
  $region13: #{vqvae_forward.11} parent=0 // pred_fallthru
    _
  %v15 = vld [vmem:[%s0] sm:$0xf]
  %v16 = vld [vmem:[%s0 + $0x4] sm:$0xf]
  %v17 = vld [vmem:[%s0 + $0x8] sm:$0xf]
  %v18 = vld [vmem:[%s0 + $0xc] sm:$0xf]
  %v19 = vld [vmem:[%s0 + $0x10] sm:$0xf]
  %v20 = vld [vmem:[%s0 + $0x14] sm:$0xf]
  %v21 = vld [vmem:[%s0 + $0x18] sm:$0xf]
  %v22 = vld [vmem:[%s0 + $0x1c] sm:$0xf]
  %v23 = vld [vmem:[%s0 + $0x20] sm:$0xf]
  %v24 = vld [vmem:[%s0 + $0x24] sm:$0xf]
  %v25 = vld [vmem:[%s0 + $0x28] sm:$0xf]
  %v26 = vld [vmem:[%s0 + $0x2c] sm:$0xf]
  %v27 = vld [vmem:[%s0 + $0x30] sm:$0xf]
  %v28 = vld [vmem:[%s0 + $0x34] sm:$0xf]
  %v29 = vld [vmem:[%s0 + $0x38] sm:$0xf]
  %v30 = vld [vmem:[%s0 + $0x3c] sm:$0xf]
  %v31 = vld [vmem:[%s1] sm:$0xf]
  %v32 = vld [vmem:[%s1 + $0x4] sm:$0xf]
  %v33 = vld [vmem:[%s1 + $0x8] sm:$0xf]
  %v34 = vld [vmem:[%s1 + $0xc] sm:$0xf]
  %v35 = vld [vmem:[%s1 + $0x10] sm:$0xf]
  %v36 = vld [vmem:[%s1 + $0x14] sm:$0xf]
  %v37 = vld [vmem:[%s2] sm:$0x1]
  %v39 = vlaneseq
  %v40 = vshrl.u32 %v39, 7
  %v41 = vsub.s32 0, %v40
  %v42 = vrot.slane %v37, %v41
  %v60 = vunpack.c.l.b16 %v15
  %v61 = vunpack.c.l.b16 %v16
  %v62 = vunpack.c.l.b16 %v17
  %v63 = vunpack.c.l.b16 %v18
  %v64 = vunpack.c.l.b16 %v19
  %v65 = vunpack.c.l.b16 %v20
  %v66 = vunpack.c.l.b16 %v21
  %v67 = vunpack.c.l.b16 %v22
  %v68 = vunpack.c.l.b16 %v23
  %v69 = vunpack.c.l.b16 %v24
  %v70 = vunpack.c.l.b16 %v25
  %v71 = vunpack.c.l.b16 %v26
  %v72 = vunpack.c.l.b16 %v27
  %v73 = vunpack.c.l.b16 %v28
  %v74 = vunpack.c.l.b16 %v29
  %v75 = vunpack.c.l.b16 %v30
  %v76 = vpack.c.b16 %v61, %v60
  %v77 = vpack.c.b16 %v63, %v62
  %v78 = vpack.c.b16 %v65, %v64
  %v79 = vpack.c.b16 %v67, %v66
  %v80 = vpack.c.b16 %v69, %v68
  %v81 = vpack.c.b16 %v71, %v70
  %v82 = vpack.c.b16 %v73, %v72
  %v83 = vpack.c.b16 %v75, %v74
  %v90 = vunpack.c.l.b16 %v31
  %v91 = vunpack.c.l.b16 %v32
  %v92 = vunpack.c.l.b16 %v33
  %v93 = vunpack.c.l.b16 %v34
  %v94 = vunpack.c.l.b16 %v35
  %v95 = vunpack.c.l.b16 %v36
  %v96 = vpack.c.b16 %v91, %v90
  %v97 = vpack.c.b16 %v93, %v92
  %v98 = vpack.c.b16 %v95, %v94
  %vm102 = vcmask 392192
  %v104 = vsel %vm102, %v76, 0
  %v107 = vsel %vm102, %v77, 0
  %v110 = vsel %vm102, %v78, 0
  %v113 = vsel %vm102, %v79, 0
  %v116 = vsel %vm102, %v80, 0
  %v119 = vsel %vm102, %v81, 0
  %v122 = vsel %vm102, %v82, 0
  %v125 = vsel %vm102, %v83, 0
  %127 = vmatprep.subr.bf16.mxu0 0
  %128 = vmatpush1.bf16.msra.mxu0 %v96
  %129 = vmatprep.subr.bf16.mxu0 0
  %130 = vmatpush1.bf16.msra.mxu0 %v97
  %131 = vmatprep.subr.bf16.mxu0 0
  %132 = vmatpush1.bf16.msra.mxu0 %v98
  %133 = vmatprep.subr.bf16.mxu0 0
  %134 = vmatpush1.bf16.msra.mxu0 0
  %135 = vmatprep.subr.bf16.mxu0 0
  %136 = vmatpush1.bf16.msra.mxu0 0
  %137 = vmatprep.subr.bf16.mxu0 0
  %138 = vmatpush1.bf16.msra.mxu0 0
  %139 = vmatprep.subr.bf16.mxu0 0
  %140 = vmatpush1.bf16.msra.mxu0 0
  %141 = vmatprep.subr.bf16.mxu0 0
  %142 = vmatpush1.bf16.msra.mxu0 0
  %143 = vmatprep.subr.bf16.mxu0 0
  %144 = vmatpush1.bf16.msra.mxu0 0
  %145 = vmatprep.subr.bf16.mxu0 0
  %146 = vmatpush1.bf16.msra.mxu0 0
  %147 = vmatprep.subr.bf16.mxu0 0
  %148 = vmatpush1.bf16.msra.mxu0 0
  %149 = vmatprep.subr.bf16.mxu0 0
  %150 = vmatpush1.bf16.msra.mxu0 0
  %151 = vmatprep.subr.bf16.mxu0 0
  %152 = vmatpush1.bf16.msra.mxu0 0
  %153 = vmatprep.subr.bf16.mxu0 0
  %154 = vmatpush1.bf16.msra.mxu0 0
  %155 = vmatprep.subr.bf16.mxu0 0
  %156 = vmatpush1.bf16.msra.mxu0 0
  %157 = vmatprep.subr.bf16.mxu0 0
  %158 = vmatpush1.bf16.msra.mxu0 0
  %159 = vmatprep.mubr.bf16.mxu0 0
  %160 = vmatmul.mubr.bf16.gmra.mrb[0].mxu0 %v104
  %v161 = vpop.f32.mrb[0].mxu0
  %v162 = vadd.f32 %v42, %v161
  %v163 = vpop.f32.mrb[0].mxu0
  %v164 = vpop.f32.mrb[0].mxu0
  %v165 = vadd.f32 %v42, %v164
  %v166 = vpop.f32.mrb[0].mxu0
  %167 = vmatprep.mubr.bf16.mxu0 0
  %168 = vmatmul.mubr.bf16.gmra.mrb[0].mxu0 %v107
  %v169 = vpop.f32.mrb[0].mxu0
  %v170 = vadd.f32 %v42, %v169
  %v171 = vpop.f32.mrb[0].mxu0
  %v172 = vpop.f32.mrb[0].mxu0
  %v173 = vadd.f32 %v42, %v172
  %v174 = vpop.f32.mrb[0].mxu0
  %175 = vmatprep.mubr.bf16.mxu0 0
  %176 = vmatmul.mubr.bf16.gmra.mrb[0].mxu0 %v110
  %v177 = vpop.f32.mrb[0].mxu0
  %v178 = vadd.f32 %v42, %v177
  %v179 = vpop.f32.mrb[0].mxu0
  %v180 = vpop.f32.mrb[0].mxu0
  %v181 = vadd.f32 %v42, %v180
  %v182 = vpop.f32.mrb[0].mxu0
  %183 = vmatprep.mubr.bf16.mxu0 0
  %184 = vmatmul.mubr.bf16.gmra.mrb[0].mxu0 %v113
  %v185 = vpop.f32.mrb[0].mxu0
  %v186 = vadd.f32 %v42, %v185
  %v187 = vpop.f32.mrb[0].mxu0
  %v188 = vpop.f32.mrb[0].mxu0
  %v189 = vadd.f32 %v42, %v188
  %v190 = vpop.f32.mrb[0].mxu0
  %191 = vmatprep.mubr.bf16.mxu0 0
  %192 = vmatmul.mubr.bf16.gmra.mrb[0].mxu0 %v116
  %v193 = vpop.f32.mrb[0].mxu0
  %v194 = vadd.f32 %v42, %v193
  %v195 = vpop.f32.mrb[0].mxu0
  %v196 = vpop.f32.mrb[0].mxu0
  %v197 = vadd.f32 %v42, %v196
  %v198 = vpop.f32.mrb[0].mxu0
  %199 = vmatprep.mubr.bf16.mxu0 0
  %200 = vmatmul.mubr.bf16.gmra.mrb[0].mxu0 %v119
  %v201 = vpop.f32.mrb[0].mxu0
  %v202 = vadd.f32 %v42, %v201
  %v203 = vpop.f32.mrb[0].mxu0
  %v204 = vpop.f32.mrb[0].mxu0
  %v205 = vadd.f32 %v42, %v204
  %v206 = vpop.f32.mrb[0].mxu0
  %207 = vmatprep.mubr.bf16.mxu0 0
  %208 = vmatmul.mubr.bf16.gmra.mrb[0].mxu0 %v122
  %v209 = vpop.f32.mrb[0].mxu0
  %v210 = vadd.f32 %v42, %v209
  %v211 = vpop.f32.mrb[0].mxu0
  %v212 = vpop.f32.mrb[0].mxu0
  %v213 = vadd.f32 %v42, %v212
  %v214 = vpop.f32.mrb[0].mxu0
  %215 = vmatprep.mubr.bf16.mxu0 0
  %216 = vmatmul.mubr.bf16.gmra.mrb[0].mxu0 %v125
  %v217 = vpop.f32.mrb[0].mxu0
  %v218 = vadd.f32 %v42, %v217
  %v219 = vpop.f32.mrb[0].mxu0
  %v220 = vpop.f32.mrb[0].mxu0
  %v221 = vadd.f32 %v42, %v220
  %v222 = vpop.f32.mrb[0].mxu0
  %223 = vdwg.mxu0
  %v224 = vmax.f32 %v162, 0.0
  %v225 = vmax.f32 %v165, 0.0
  %v226 = vmax.f32 %v170, 0.0
  %v227 = vmax.f32 %v173, 0.0
  %v228 = vmax.f32 %v178, 0.0
  %v229 = vmax.f32 %v181, 0.0
  %v230 = vmax.f32 %v186, 0.0
  %v231 = vmax.f32 %v189, 0.0
  %v232 = vmax.f32 %v194, 0.0
  %v233 = vmax.f32 %v197, 0.0
  %v234 = vmax.f32 %v202, 0.0
  %v235 = vmax.f32 %v205, 0.0
  %v236 = vmax.f32 %v210, 0.0
  %v237 = vmax.f32 %v213, 0.0
  %v238 = vmax.f32 %v218, 0.0
  %v239 = vmax.f32 %v221, 0.0
  %v240 = vpack.c.bf16 %v225, %v224
  %v241 = vpack.c.bf16 %v227, %v226
  %v242 = vpack.c.bf16 %v229, %v228
  %v243 = vpack.c.bf16 %v231, %v230
  %v244 = vpack.c.bf16 %v233, %v232
  %v245 = vpack.c.bf16 %v235, %v234
  %v246 = vpack.c.bf16 %v237, %v236
  %v247 = vpack.c.bf16 %v239, %v238
  %v256 = vunpack.c.l.b16 %v240
  %v257 = vunpack.c.h.b16 %v240
  %v258 = vunpack.c.l.b16 %v241
  %v259 = vunpack.c.h.b16 %v241
  %v260 = vunpack.c.l.b16 %v242
  %v261 = vunpack.c.h.b16 %v242
  %v262 = vunpack.c.l.b16 %v243
  %v263 = vunpack.c.h.b16 %v243
  %v264 = vunpack.c.l.b16 %v244
  %v265 = vunpack.c.h.b16 %v244
  %v266 = vunpack.c.l.b16 %v245
  %v267 = vunpack.c.h.b16 %v245
  %v268 = vunpack.c.l.b16 %v246
  %v269 = vunpack.c.h.b16 %v246
  %v270 = vunpack.c.l.b16 %v247
  %v271 = vunpack.c.h.b16 %v247
  %v272 = vpack.c.b16 %v256, %v256
  %v273 = vpack.c.b16 %v257, %v257
  %v274 = vpack.c.b16 %v258, %v258
  %v275 = vpack.c.b16 %v259, %v259
  %v276 = vpack.c.b16 %v260, %v260
  %v277 = vpack.c.b16 %v261, %v261
  %v278 = vpack.c.b16 %v262, %v262
  %v279 = vpack.c.b16 %v263, %v263
  %v280 = vpack.c.b16 %v264, %v264
  %v281 = vpack.c.b16 %v265, %v265
  %v282 = vpack.c.b16 %v266, %v266
  %v283 = vpack.c.b16 %v267, %v267
  %v284 = vpack.c.b16 %v268, %v268
  %v285 = vpack.c.b16 %v269, %v269
  %v286 = vpack.c.b16 %v270, %v270
  %v287 = vpack.c.b16 %v271, %v271
  %vm304 = vcmask 125952
  %305 = vst.msk [vmem:[%s3] sm:$0xf] %vm304, %v272
  %306 = vst.msk [vmem:[%s3 + $0x4] sm:$0xf] %vm304, %v273
  %307 = vst.msk [vmem:[%s3 + $0x8] sm:$0xf] %vm304, %v274
  %308 = vst.msk [vmem:[%s3 + $0xc] sm:$0xf] %vm304, %v275
  %309 = vst.msk [vmem:[%s3 + $0x10] sm:$0xf] %vm304, %v276
  %310 = vst.msk [vmem:[%s3 + $0x14] sm:$0xf] %vm304, %v277
  %311 = vst.msk [vmem:[%s3 + $0x18] sm:$0xf] %vm304, %v278
  %312 = vst.msk [vmem:[%s3 + $0x1c] sm:$0xf] %vm304, %v279
  %313 = vst.msk [vmem:[%s3 + $0x20] sm:$0xf] %vm304, %v280
  %314 = vst.msk [vmem:[%s3 + $0x24] sm:$0xf] %vm304, %v281
  %315 = vst.msk [vmem:[%s3 + $0x28] sm:$0xf] %vm304, %v282
  %316 = vst.msk [vmem:[%s3 + $0x2c] sm:$0xf] %vm304, %v283
  %317 = vst.msk [vmem:[%s3 + $0x30] sm:$0xf] %vm304, %v284
  %318 = vst.msk [vmem:[%s3 + $0x34] sm:$0xf] %vm304, %v285
  %319 = vst.msk [vmem:[%s3 + $0x38] sm:$0xf] %vm304, %v286
  %320 = vst.msk [vmem:[%s3 + $0x3c] sm:$0xf] %vm304, %v287
  // Predicated region
  $region14: #{vqvae_forward.11} parent=0 // pred_check
    _
  $region15: #{vqvae_forward.11} parent=0 // pred_check_branch
    %322 = sbr.rel (0) target = $region17
  $region16: #{vqvae_forward.11} parent=0 // pred_region
    _
  $region17: #{vqvae_forward.11} parent=0 // pred_fallthru
    _
  // Predicated region
  $region18: #{vqvae_forward.11} parent=0 // pred_check
    _
  $region19: #{vqvae_forward.11} parent=0 // pred_check_branch
    %324 = sbr.rel (0) target = $region21
  $region20: #{vqvae_forward.11} parent=0 // pred_region
    _
  $region21: #{vqvae_forward.11} parent=0 // pred_fallthru
    _

// kernel: vqvae_forward.12
$region0: #{vqvae_forward.12}
  #allocation0 [shape = 'u32[]', space=smem, size = 0x4, offset = 0x4, fixed_abs, tag = 'smem constant byte address 0x4 - core index']
  #allocation1 [shape = 'u32[144,128]{1,0:T(1,128)}', space=vmem, size = 0x12000, scoped, tag = 'internal scratch']
  %s0 = inlined_call_operand.vmem [shape: bf16[32,256], index: 0, kind: input, shape index: {}]
  %s1 = inlined_call_operand.vmem [shape: bf16[256,32], index: 1, kind: input, shape index: {}]
  %s2 = inlined_call_operand.vmem [shape: f32[1,32], index: 2, kind: input, shape index: {}]
  %s3 = inlined_call_operand.vmem [shape: bf16[32,32], index: 3, kind: output, shape index: {}]
  %s4 = sld [smem:[#allocation0]]
  $region22: #{vqvae_forward.12} parent=0
    _
  %s6 = ssub.s32 1, %s4
  %s7 = scalar_select 0, %s6, %s4
  // Predicated region
  $region2: #{vqvae_forward.12} parent=0 // pred_check
    _
  $region3: #{vqvae_forward.12} parent=0 // pred_check_branch
    %9 = sbr.rel (0) target = $region5
  $region4: #{vqvae_forward.12} parent=0 // pred_region
    _
  $region5: #{vqvae_forward.12} parent=0 // pred_fallthru
    _
  // Predicated region
  $region6: #{vqvae_forward.12} parent=0 // pred_check
    _
  $region7: #{vqvae_forward.12} parent=0 // pred_check_branch
    %11 = sbr.rel (0) target = $region9
  $region8: #{vqvae_forward.12} parent=0 // pred_region
    _
  $region9: #{vqvae_forward.12} parent=0 // pred_fallthru
    _
  // Predicated region
  $region10: #{vqvae_forward.12} parent=0 // pred_check
    _
  $region11: #{vqvae_forward.12} parent=0 // pred_check_branch
    %13 = sbr.rel (0) target = $region13
  $region12: #{vqvae_forward.12} parent=0 // pred_region
    _
  $region13: #{vqvae_forward.12} parent=0 // pred_fallthru
    _
  %v15 = vld [vmem:[%s0] sm:$0xff]
  %v16 = vld [vmem:[%s0 + $0x8] sm:$0xff]
  %v17 = vld [vmem:[%s0 + $0x10] sm:$0xff]
  %v18 = vld [vmem:[%s0 + $0x18] sm:$0xff]
  %v19 = vld [vmem:[%s1] sm:$0xf]
  %v20 = vld [vmem:[%s1 + $0x4] sm:$0xf]
  %v21 = vld [vmem:[%s1 + $0x8] sm:$0xf]
  %v22 = vld [vmem:[%s1 + $0xc] sm:$0xf]
  %v23 = vld [vmem:[%s1 + $0x10] sm:$0xf]
  %v24 = vld [vmem:[%s1 + $0x14] sm:$0xf]
  %v25 = vld [vmem:[%s1 + $0x18] sm:$0xf]
  %v26 = vld [vmem:[%s1 + $0x1c] sm:$0xf]
  %v27 = vld [vmem:[%s1 + $0x20] sm:$0xf]
  %v28 = vld [vmem:[%s1 + $0x24] sm:$0xf]
  %v29 = vld [vmem:[%s1 + $0x28] sm:$0xf]
  %v30 = vld [vmem:[%s1 + $0x2c] sm:$0xf]
  %v31 = vld [vmem:[%s1 + $0x30] sm:$0xf]
  %v32 = vld [vmem:[%s1 + $0x34] sm:$0xf]
  %v33 = vld [vmem:[%s1 + $0x38] sm:$0xf]
  %v34 = vld [vmem:[%s1 + $0x3c] sm:$0xf]
  %v35 = vld [vmem:[%s1 + $0x40] sm:$0xf]
  %v36 = vld [vmem:[%s1 + $0x44] sm:$0xf]
  %v37 = vld [vmem:[%s1 + $0x48] sm:$0xf]
  %v38 = vld [vmem:[%s1 + $0x4c] sm:$0xf]
  %v39 = vld [vmem:[%s1 + $0x50] sm:$0xf]
  %v40 = vld [vmem:[%s1 + $0x54] sm:$0xf]
  %v41 = vld [vmem:[%s1 + $0x58] sm:$0xf]
  %v42 = vld [vmem:[%s1 + $0x5c] sm:$0xf]
  %v43 = vld [vmem:[%s1 + $0x60] sm:$0xf]
  %v44 = vld [vmem:[%s1 + $0x64] sm:$0xf]
  %v45 = vld [vmem:[%s1 + $0x68] sm:$0xf]
  %v46 = vld [vmem:[%s1 + $0x6c] sm:$0xf]
  %v47 = vld [vmem:[%s1 + $0x70] sm:$0xf]
  %v48 = vld [vmem:[%s1 + $0x74] sm:$0xf]
  %v49 = vld [vmem:[%s1 + $0x78] sm:$0xf]
  %v50 = vld [vmem:[%s1 + $0x7c] sm:$0xf]
  %v51 = vld [vmem:[%s2] sm:$0x1]
  %v53 = vlaneseq
  %v54 = vshrl.u32 %v53, 7
  %v55 = vsub.s32 0, %v54
  %v56 = vrot.slane %v51, %v55
  %v62 = vunpack.c.l.b16 %v15
  %v63 = vunpack.c.h.b16 %v15
  %v64 = vunpack.c.l.b16 %v16
  %v65 = vunpack.c.h.b16 %v16
  %v66 = vunpack.c.l.b16 %v17
  %v67 = vunpack.c.h.b16 %v17
  %v68 = vunpack.c.l.b16 %v18
  %v69 = vunpack.c.h.b16 %v18
  %v70 = vpack.c.b16 %v64, %v62
  %v71 = vpack.c.b16 %v65, %v63
  %v72 = vpack.c.b16 %v68, %v66
  %v73 = vpack.c.b16 %v69, %v67
  %v110 = vunpack.c.l.b16 %v19
  %v111 = vunpack.c.l.b16 %v20
  %v112 = vunpack.c.l.b16 %v21
  %v113 = vunpack.c.l.b16 %v22
  %v114 = vunpack.c.l.b16 %v23
  %v115 = vunpack.c.l.b16 %v24
  %v116 = vunpack.c.l.b16 %v25
  %v117 = vunpack.c.l.b16 %v26
  %v118 = vunpack.c.l.b16 %v27
  %v119 = vunpack.c.l.b16 %v28
  %v120 = vunpack.c.l.b16 %v29
  %v121 = vunpack.c.l.b16 %v30
  %v122 = vunpack.c.l.b16 %v31
  %v123 = vunpack.c.l.b16 %v32
  %v124 = vunpack.c.l.b16 %v33
  %v125 = vunpack.c.l.b16 %v34
  %v126 = vunpack.c.l.b16 %v35
  %v127 = vunpack.c.l.b16 %v36
  %v128 = vunpack.c.l.b16 %v37
  %v129 = vunpack.c.l.b16 %v38
  %v130 = vunpack.c.l.b16 %v39
  %v131 = vunpack.c.l.b16 %v40
  %v132 = vunpack.c.l.b16 %v41
  %v133 = vunpack.c.l.b16 %v42
  %v134 = vunpack.c.l.b16 %v43
  %v135 = vunpack.c.l.b16 %v44
  %v136 = vunpack.c.l.b16 %v45
  %v137 = vunpack.c.l.b16 %v46
  %v138 = vunpack.c.l.b16 %v47
  %v139 = vunpack.c.l.b16 %v48
  %v140 = vunpack.c.l.b16 %v49
  %v141 = vunpack.c.l.b16 %v50
  %v142 = vpack.c.b16 %v111, %v110
  %v143 = vpack.c.b16 %v113, %v112
  %v144 = vpack.c.b16 %v115, %v114
  %v145 = vpack.c.b16 %v117, %v116
  %v146 = vpack.c.b16 %v119, %v118
  %v147 = vpack.c.b16 %v121, %v120
  %v148 = vpack.c.b16 %v123, %v122
  %v149 = vpack.c.b16 %v125, %v124
  %v150 = vpack.c.b16 %v127, %v126
  %v151 = vpack.c.b16 %v129, %v128
  %v152 = vpack.c.b16 %v131, %v130
  %v153 = vpack.c.b16 %v133, %v132
  %v154 = vpack.c.b16 %v135, %v134
  %v155 = vpack.c.b16 %v137, %v136
  %v156 = vpack.c.b16 %v139, %v138
  %v157 = vpack.c.b16 %v141, %v140
  %174 = vmatprep.subr.bf16.mxu0 0
  %175 = vmatpush1.bf16.msra.mxu0 %v142
  %176 = vmatprep.subr.bf16.mxu0 0
  %177 = vmatpush1.bf16.msra.mxu0 %v143
  %178 = vmatprep.subr.bf16.mxu0 0
  %179 = vmatpush1.bf16.msra.mxu0 %v144
  %180 = vmatprep.subr.bf16.mxu0 0
  %181 = vmatpush1.bf16.msra.mxu0 %v145
  %182 = vmatprep.subr.bf16.mxu0 0
  %183 = vmatpush1.bf16.msra.mxu0 %v146
  %184 = vmatprep.subr.bf16.mxu0 0
  %185 = vmatpush1.bf16.msra.mxu0 %v147
  %186 = vmatprep.subr.bf16.mxu0 0
  %187 = vmatpush1.bf16.msra.mxu0 %v148
  %188 = vmatprep.subr.bf16.mxu0 0
  %189 = vmatpush1.bf16.msra.mxu0 %v149
  %190 = vmatprep.subr.bf16.mxu0 0
  %191 = vmatpush1.bf16.msra.mxu0 %v150
  %192 = vmatprep.subr.bf16.mxu0 0
  %193 = vmatpush1.bf16.msra.mxu0 %v151
  %194 = vmatprep.subr.bf16.mxu0 0
  %195 = vmatpush1.bf16.msra.mxu0 %v152
  %196 = vmatprep.subr.bf16.mxu0 0
  %197 = vmatpush1.bf16.msra.mxu0 %v153
  %198 = vmatprep.subr.bf16.mxu0 0
  %199 = vmatpush1.bf16.msra.mxu0 %v154
  %200 = vmatprep.subr.bf16.mxu0 0
  %201 = vmatpush1.bf16.msra.mxu0 %v155
  %202 = vmatprep.subr.bf16.mxu0 0
  %203 = vmatpush1.bf16.msra.mxu0 %v156
  %204 = vmatprep.subr.bf16.mxu0 0
  %205 = vmatpush1.bf16.msra.mxu0 %v157
  %206 = vmatprep.mubr.bf16.mxu0 %v71
  %207 = vmatmul.mubr.bf16.gmra.mrb[0].mxu0 %v70
  %v208 = vpop.f32.mrb[0].mxu0
  %v209 = vadd.f32 %v56, %v208
  %v210 = vpop.f32.mrb[0].mxu0
  %v211 = vpop.f32.mrb[0].mxu0
  %v212 = vadd.f32 %v56, %v211
  %v213 = vpop.f32.mrb[0].mxu0
  %214 = vmatprep.mubr.bf16.mxu0 %v73
  %215 = vmatmul.mubr.bf16.gmra.mrb[0].mxu0 %v72
  %v216 = vpop.f32.mrb[0].mxu0
  %v217 = vadd.f32 %v56, %v216
  %v218 = vpop.f32.mrb[0].mxu0
  %v219 = vpop.f32.mrb[0].mxu0
  %v220 = vadd.f32 %v56, %v219
  %v221 = vpop.f32.mrb[0].mxu0
  %222 = vdwg.mxu0
  %v223 = vmax.f32 %v209, 0.0
  %v224 = vmax.f32 %v212, 0.0
  %v225 = vmax.f32 %v217, 0.0
  %v226 = vmax.f32 %v220, 0.0
  %v227 = vpack.c.bf16 %v224, %v223
  %v228 = vpack.c.bf16 %v226, %v225
  %v231 = vunpack.c.l.b16 %v227
  %v232 = vunpack.c.h.b16 %v227
  %v233 = vunpack.c.l.b16 %v228
  %v234 = vunpack.c.h.b16 %v228
  %v235 = vpack.c.b16 %v231, %v231
  %v236 = vpack.c.b16 %v232, %v232
  %v237 = vpack.c.b16 %v233, %v233
  %v238 = vpack.c.b16 %v234, %v234
  %vm243 = vcmask 257024
  %244 = vst.msk [vmem:[%s3] sm:$0xf] %vm243, %v235
  %245 = vst.msk [vmem:[%s3 + $0x4] sm:$0xf] %vm243, %v236
  %246 = vst.msk [vmem:[%s3 + $0x8] sm:$0xf] %vm243, %v237
  %247 = vst.msk [vmem:[%s3 + $0xc] sm:$0xf] %vm243, %v238
  // Predicated region
  $region14: #{vqvae_forward.12} parent=0 // pred_check
    _
  $region15: #{vqvae_forward.12} parent=0 // pred_check_branch
    %249 = sbr.rel (0) target = $region17
  $region16: #{vqvae_forward.12} parent=0 // pred_region
    _
  $region17: #{vqvae_forward.12} parent=0 // pred_fallthru
    _
  // Predicated region
  $region18: #{vqvae_forward.12} parent=0 // pred_check
    _
  $region19: #{vqvae_forward.12} parent=0 // pred_check_branch
    %251 = sbr.rel (0) target = $region21
  $region20: #{vqvae_forward.12} parent=0 // pred_region
    _
  $region21: #{vqvae_forward.12} parent=0 // pred_fallthru
    _

// kernel: vqvae_forward.13
$region0: #{vqvae_forward.13}
  #allocation0 [shape = 'u32[]', space=smem, size = 0x4, offset = 0x4, fixed_abs, tag = 'smem constant byte address 0x4 - core index']
  #allocation1 [shape = 'u32[144,128]{1,0:T(1,128)}', space=vmem, size = 0x12000, scoped, tag = 'internal scratch']
  %s0 = inlined_call_operand.vmem [shape: bf16[32,288], index: 0, kind: input, shape index: {}]
  %s1 = inlined_call_operand.vmem [shape: bf16[288,32], index: 1, kind: input, shape index: {}]
  %s2 = inlined_call_operand.vmem [shape: f32[1,32], index: 2, kind: input, shape index: {}]
  %s3 = inlined_call_operand.vmem [shape: bf16[32,32], index: 3, kind: output, shape index: {}]
  %s4 = sld [smem:[#allocation0]]
  $region22: #{vqvae_forward.13} parent=0
    _
  %s6 = ssub.s32 1, %s4
  %s7 = scalar_select 0, %s6, %s4
  // Predicated region
  $region2: #{vqvae_forward.13} parent=0 // pred_check
    _
  $region3: #{vqvae_forward.13} parent=0 // pred_check_branch
    %9 = sbr.rel (0) target = $region5
  $region4: #{vqvae_forward.13} parent=0 // pred_region
    _
  $region5: #{vqvae_forward.13} parent=0 // pred_fallthru
    _
  // Predicated region
  $region6: #{vqvae_forward.13} parent=0 // pred_check
    _
  $region7: #{vqvae_forward.13} parent=0 // pred_check_branch
    %11 = sbr.rel (0) target = $region9
  $region8: #{vqvae_forward.13} parent=0 // pred_region
    _
  $region9: #{vqvae_forward.13} parent=0 // pred_fallthru
    _
  // Predicated region
  $region10: #{vqvae_forward.13} parent=0 // pred_check
    _
  $region11: #{vqvae_forward.13} parent=0 // pred_check_branch
    %13 = sbr.rel (0) target = $region13
  $region12: #{vqvae_forward.13} parent=0 // pred_region
    _
  $region13: #{vqvae_forward.13} parent=0 // pred_fallthru
    _
  %v15 = vld [vmem:[%s0] sm:$0xff]
  %v16 = vld [vmem:[%s0 + $0x8] sm:$0xf]
  %v17 = vld [vmem:[%s0 + $0xc] sm:$0xff]
  %v18 = vld [vmem:[%s0 + $0x14] sm:$0xf]
  %v19 = vld [vmem:[%s0 + $0x18] sm:$0xff]
  %v20 = vld [vmem:[%s0 + $0x20] sm:$0xf]
  %v21 = vld [vmem:[%s0 + $0x24] sm:$0xff]
  %v22 = vld [vmem:[%s0 + $0x2c] sm:$0xf]
  %v23 = vld [vmem:[%s1] sm:$0xf]
  %v24 = vld [vmem:[%s1 + $0x4] sm:$0xf]
  %v25 = vld [vmem:[%s1 + $0x8] sm:$0xf]
  %v26 = vld [vmem:[%s1 + $0xc] sm:$0xf]
  %v27 = vld [vmem:[%s1 + $0x10] sm:$0xf]
  %v28 = vld [vmem:[%s1 + $0x14] sm:$0xf]
  %v29 = vld [vmem:[%s1 + $0x18] sm:$0xf]
  %v30 = vld [vmem:[%s1 + $0x1c] sm:$0xf]
  %v31 = vld [vmem:[%s1 + $0x20] sm:$0xf]
  %v32 = vld [vmem:[%s1 + $0x24] sm:$0xf]
  %v33 = vld [vmem:[%s1 + $0x28] sm:$0xf]
  %v34 = vld [vmem:[%s1 + $0x2c] sm:$0xf]
  %v35 = vld [vmem:[%s1 + $0x30] sm:$0xf]
  %v36 = vld [vmem:[%s1 + $0x34] sm:$0xf]
  %v37 = vld [vmem:[%s1 + $0x38] sm:$0xf]
  %v38 = vld [vmem:[%s1 + $0x3c] sm:$0xf]
  %v39 = vld [vmem:[%s1 + $0x40] sm:$0xf]
  %v40 = vld [vmem:[%s1 + $0x44] sm:$0xf]
  %v41 = vld [vmem:[%s1 + $0x48] sm:$0xf]
  %v42 = vld [vmem:[%s1 + $0x4c] sm:$0xf]
  %v43 = vld [vmem:[%s1 + $0x50] sm:$0xf]
  %v44 = vld [vmem:[%s1 + $0x54] sm:$0xf]
  %v45 = vld [vmem:[%s1 + $0x58] sm:$0xf]
  %v46 = vld [vmem:[%s1 + $0x5c] sm:$0xf]
  %v47 = vld [vmem:[%s1 + $0x60] sm:$0xf]
  %v48 = vld [vmem:[%s1 + $0x64] sm:$0xf]
  %v49 = vld [vmem:[%s1 + $0x68] sm:$0xf]
  %v50 = vld [vmem:[%s1 + $0x6c] sm:$0xf]
  %v51 = vld [vmem:[%s1 + $0x70] sm:$0xf]
  %v52 = vld [vmem:[%s1 + $0x74] sm:$0xf]
  %v53 = vld [vmem:[%s1 + $0x78] sm:$0xf]
  %v54 = vld [vmem:[%s1 + $0x7c] sm:$0xf]
  %v55 = vld [vmem:[%s1 + $0x80] sm:$0xf]
  %v56 = vld [vmem:[%s1 + $0x84] sm:$0xf]
  %v57 = vld [vmem:[%s1 + $0x88] sm:$0xf]
  %v58 = vld [vmem:[%s1 + $0x8c] sm:$0xf]
  %v59 = vld [vmem:[%s2] sm:$0x1]
  %v61 = vlaneseq
  %v62 = vshrl.u32 %v61, 7
  %v63 = vsub.s32 0, %v62
  %v64 = vrot.slane %v59, %v63
  %v74 = vunpack.c.l.b16 %v15
  %v75 = vunpack.c.h.b16 %v15
  %v76 = vunpack.c.l.b16 %v16
  %v77 = vunpack.c.l.b16 %v17
  %v78 = vunpack.c.h.b16 %v17
  %v79 = vunpack.c.l.b16 %v18
  %v80 = vunpack.c.l.b16 %v19
  %v81 = vunpack.c.h.b16 %v19
  %v82 = vunpack.c.l.b16 %v20
  %v83 = vunpack.c.l.b16 %v21
  %v84 = vunpack.c.h.b16 %v21
  %v85 = vunpack.c.l.b16 %v22
  %v86 = vpack.c.b16 %v77, %v74
  %v87 = vpack.c.b16 %v78, %v75
  %v88 = vpack.c.b16 %v79, %v76
  %v89 = vpack.c.b16 %v83, %v80
  %v90 = vpack.c.b16 %v84, %v81
  %v91 = vpack.c.b16 %v85, %v82
  %v132 = vunpack.c.l.b16 %v23
  %v133 = vunpack.c.l.b16 %v24
  %v134 = vunpack.c.l.b16 %v25
  %v135 = vunpack.c.l.b16 %v26
  %v136 = vunpack.c.l.b16 %v27
  %v137 = vunpack.c.l.b16 %v28
  %v138 = vunpack.c.l.b16 %v29
  %v139 = vunpack.c.l.b16 %v30
  %v140 = vunpack.c.l.b16 %v31
  %v141 = vunpack.c.l.b16 %v32
  %v142 = vunpack.c.l.b16 %v33
  %v143 = vunpack.c.l.b16 %v34
  %v144 = vunpack.c.l.b16 %v35
  %v145 = vunpack.c.l.b16 %v36
  %v146 = vunpack.c.l.b16 %v37
  %v147 = vunpack.c.l.b16 %v38
  %v148 = vunpack.c.l.b16 %v39
  %v149 = vunpack.c.l.b16 %v40
  %v150 = vunpack.c.l.b16 %v41
  %v151 = vunpack.c.l.b16 %v42
  %v152 = vunpack.c.l.b16 %v43
  %v153 = vunpack.c.l.b16 %v44
  %v154 = vunpack.c.l.b16 %v45
  %v155 = vunpack.c.l.b16 %v46
  %v156 = vunpack.c.l.b16 %v47
  %v157 = vunpack.c.l.b16 %v48
  %v158 = vunpack.c.l.b16 %v49
  %v159 = vunpack.c.l.b16 %v50
  %v160 = vunpack.c.l.b16 %v51
  %v161 = vunpack.c.l.b16 %v52
  %v162 = vunpack.c.l.b16 %v53
  %v163 = vunpack.c.l.b16 %v54
  %v164 = vunpack.c.l.b16 %v55
  %v165 = vunpack.c.l.b16 %v56
  %v166 = vunpack.c.l.b16 %v57
  %v167 = vunpack.c.l.b16 %v58
  %v168 = vpack.c.b16 %v133, %v132
  %v169 = vpack.c.b16 %v135, %v134
  %v170 = vpack.c.b16 %v137, %v136
  %v171 = vpack.c.b16 %v139, %v138
  %v172 = vpack.c.b16 %v141, %v140
  %v173 = vpack.c.b16 %v143, %v142
  %v174 = vpack.c.b16 %v145, %v144
  %v175 = vpack.c.b16 %v147, %v146
  %v176 = vpack.c.b16 %v149, %v148
  %v177 = vpack.c.b16 %v151, %v150
  %v178 = vpack.c.b16 %v153, %v152
  %v179 = vpack.c.b16 %v155, %v154
  %v180 = vpack.c.b16 %v157, %v156
  %v181 = vpack.c.b16 %v159, %v158
  %v182 = vpack.c.b16 %v161, %v160
  %v183 = vpack.c.b16 %v163, %v162
  %v184 = vpack.c.b16 %v165, %v164
  %v185 = vpack.c.b16 %v167, %v166
  %vm204 = vcmask 261120
  %v206 = vsel %vm204, %v88, 0
  %v209 = vsel %vm204, %v91, 0
  %211 = vmatprep.subr.bf16.mxu0 0
  %212 = vmatpush1.bf16.msra.mxu0 %v168
  %213 = vmatprep.subr.bf16.mxu0 0
  %214 = vmatpush1.bf16.msra.mxu0 %v169
  %215 = vmatprep.subr.bf16.mxu0 0
  %216 = vmatpush1.bf16.msra.mxu0 %v170
  %217 = vmatprep.subr.bf16.mxu0 0
  %218 = vmatpush1.bf16.msra.mxu0 %v171
  %219 = vmatprep.subr.bf16.mxu0 0
  %220 = vmatpush1.bf16.msra.mxu0 %v172
  %221 = vmatprep.subr.bf16.mxu0 0
  %222 = vmatpush1.bf16.msra.mxu0 %v173
  %223 = vmatprep.subr.bf16.mxu0 0
  %224 = vmatpush1.bf16.msra.mxu0 %v174
  %225 = vmatprep.subr.bf16.mxu0 0
  %226 = vmatpush1.bf16.msra.mxu0 %v175
  %227 = vmatprep.subr.bf16.mxu0 0
  %228 = vmatpush1.bf16.msra.mxu0 %v176
  %229 = vmatprep.subr.bf16.mxu0 0
  %230 = vmatpush1.bf16.msra.mxu0 %v177
  %231 = vmatprep.subr.bf16.mxu0 0
  %232 = vmatpush1.bf16.msra.mxu0 %v178
  %233 = vmatprep.subr.bf16.mxu0 0
  %234 = vmatpush1.bf16.msra.mxu0 %v179
  %235 = vmatprep.subr.bf16.mxu0 0
  %236 = vmatpush1.bf16.msra.mxu0 %v180
  %237 = vmatprep.subr.bf16.mxu0 0
  %238 = vmatpush1.bf16.msra.mxu0 %v181
  %239 = vmatprep.subr.bf16.mxu0 0
  %240 = vmatpush1.bf16.msra.mxu0 %v182
  %241 = vmatprep.subr.bf16.mxu0 0
  %242 = vmatpush1.bf16.msra.mxu0 %v183
  %243 = vmatprep.mubr.bf16.mxu0 %v87
  %244 = vmatmul.mubr.bf16.gmra.mrb[0].mxu0 %v86
  %v245 = vpop.f32.mrb[0].mxu0
  %v246 = vadd.f32 %v64, %v245
  %v247 = vpop.f32.mrb[0].mxu0
  %v248 = vpop.f32.mrb[0].mxu0
  %v249 = vadd.f32 %v64, %v248
  %v250 = vpop.f32.mrb[0].mxu0
  %251 = vmatprep.mubr.bf16.mxu0 %v90
  %252 = vmatmul.mubr.bf16.gmra.mrb[0].mxu0 %v89
  %v253 = vpop.f32.mrb[0].mxu0
  %v254 = vadd.f32 %v64, %v253
  %v255 = vpop.f32.mrb[0].mxu0
  %v256 = vpop.f32.mrb[0].mxu0
  %v257 = vadd.f32 %v64, %v256
  %v258 = vpop.f32.mrb[0].mxu0
  %259 = vdwg.mxu0
  %260 = vmatprep.subr.bf16.mxu0 0
  %261 = vmatpush1.bf16.msra.mxu0 %v184
  %262 = vmatprep.subr.bf16.mxu0 0
  %263 = vmatpush1.bf16.msra.mxu0 %v185
  %264 = vmatprep.subr.bf16.mxu0 0
  %265 = vmatpush1.bf16.msra.mxu0 0
  %266 = vmatprep.subr.bf16.mxu0 0
  %267 = vmatpush1.bf16.msra.mxu0 0
  %268 = vmatprep.subr.bf16.mxu0 0
  %269 = vmatpush1.bf16.msra.mxu0 0
  %270 = vmatprep.subr.bf16.mxu0 0
  %271 = vmatpush1.bf16.msra.mxu0 0
  %272 = vmatprep.subr.bf16.mxu0 0
  %273 = vmatpush1.bf16.msra.mxu0 0
  %274 = vmatprep.subr.bf16.mxu0 0
  %275 = vmatpush1.bf16.msra.mxu0 0
  %276 = vmatprep.subr.bf16.mxu0 0
  %277 = vmatpush1.bf16.msra.mxu0 0
  %278 = vmatprep.subr.bf16.mxu0 0
  %279 = vmatpush1.bf16.msra.mxu0 0
  %280 = vmatprep.subr.bf16.mxu0 0
  %281 = vmatpush1.bf16.msra.mxu0 0
  %282 = vmatprep.subr.bf16.mxu0 0
  %283 = vmatpush1.bf16.msra.mxu0 0
  %284 = vmatprep.subr.bf16.mxu0 0
  %285 = vmatpush1.bf16.msra.mxu0 0
  %286 = vmatprep.subr.bf16.mxu0 0
  %287 = vmatpush1.bf16.msra.mxu0 0
  %288 = vmatprep.subr.bf16.mxu0 0
  %289 = vmatpush1.bf16.msra.mxu0 0
  %290 = vmatprep.subr.bf16.mxu0 0
  %291 = vmatpush1.bf16.msra.mxu0 0
  %292 = vmatprep.mubr.bf16.mxu0 0
  %293 = vmatmul.mubr.bf16.gmra.mrb[0].mxu0 %v206
  %v294 = vpop.f32.mrb[0].mxu0
  %v295 = vadd.f32 %v246, %v294
  %v296 = vpop.f32.mrb[0].mxu0
  %v297 = vpop.f32.mrb[0].mxu0
  %v298 = vadd.f32 %v249, %v297
  %v299 = vpop.f32.mrb[0].mxu0
  %300 = vmatprep.mubr.bf16.mxu0 0
  %301 = vmatmul.mubr.bf16.gmra.mrb[0].mxu0 %v209
  %v302 = vpop.f32.mrb[0].mxu0
  %v303 = vadd.f32 %v254, %v302
  %v304 = vpop.f32.mrb[0].mxu0
  %v305 = vpop.f32.mrb[0].mxu0
  %v306 = vadd.f32 %v257, %v305
  %v307 = vpop.f32.mrb[0].mxu0
  %308 = vdwg.mxu0
  %v309 = vpack.c.bf16 %v298, %v295
  %v310 = vpack.c.bf16 %v306, %v303
  %v313 = vunpack.c.l.b16 %v309
  %v314 = vunpack.c.h.b16 %v309
  %v315 = vunpack.c.l.b16 %v310
  %v316 = vunpack.c.h.b16 %v310
  %v317 = vpack.c.b16 %v313, %v313
  %v318 = vpack.c.b16 %v314, %v314
  %v319 = vpack.c.b16 %v315, %v315
  %v320 = vpack.c.b16 %v316, %v316
  %vm325 = vcmask 257024
  %326 = vst.msk [vmem:[%s3] sm:$0xf] %vm325, %v317
  %327 = vst.msk [vmem:[%s3 + $0x4] sm:$0xf] %vm325, %v318
  %328 = vst.msk [vmem:[%s3 + $0x8] sm:$0xf] %vm325, %v319
  %329 = vst.msk [vmem:[%s3 + $0xc] sm:$0xf] %vm325, %v320
  // Predicated region
  $region14: #{vqvae_forward.13} parent=0 // pred_check
    _
  $region15: #{vqvae_forward.13} parent=0 // pred_check_branch
    %331 = sbr.rel (0) target = $region17
  $region16: #{vqvae_forward.13} parent=0 // pred_region
    _
  $region17: #{vqvae_forward.13} parent=0 // pred_fallthru
    _
  // Predicated region
  $region18: #{vqvae_forward.13} parent=0 // pred_check
    _
  $region19: #{vqvae_forward.13} parent=0 // pred_check_branch
    %333 = sbr.rel (0) target = $region21
  $region20: #{vqvae_forward.13} parent=0 // pred_region
    _
  $region21: #{vqvae_forward.13} parent=0 // pred_fallthru
    _

// kernel: vqvae_forward.14
$region0: #{vqvae_forward.14}
  #allocation0 [shape = 'u32[]', space=smem, size = 0x4, offset = 0x4, fixed_abs, tag = 'smem constant byte address 0x4 - core index']
  #allocation1 [shape = 'u32[144,128]{1,0:T(1,128)}', space=vmem, size = 0x12000, scoped, tag = 'internal scratch']
  %s0 = inlined_call_operand.vmem [shape: bf16[32,288], index: 0, kind: input, shape index: {}]
  %s1 = inlined_call_operand.vmem [shape: bf16[32,32], index: 1, kind: input, shape index: {}]
  %s2 = inlined_call_operand.vmem [shape: bf16[288,16], index: 2, kind: input, shape index: {}]
  %s3 = inlined_call_operand.vmem [shape: bf16[16,32], index: 3, kind: input, shape index: {}]
  %s4 = inlined_call_operand.vmem [shape: bf16[32,32], index: 4, kind: output, shape index: {}]
  %s5 = sld [smem:[#allocation0]]
  $region26: #{vqvae_forward.14} parent=0
    _
  %s7 = ssub.s32 1, %s5
  %s8 = scalar_select 0, %s7, %s5
  // Predicated region
  $region2: #{vqvae_forward.14} parent=0 // pred_check
    _
  $region3: #{vqvae_forward.14} parent=0 // pred_check_branch
    %10 = sbr.rel (0) target = $region5
  $region4: #{vqvae_forward.14} parent=0 // pred_region
    _
  $region5: #{vqvae_forward.14} parent=0 // pred_fallthru
    _
  // Predicated region
  $region6: #{vqvae_forward.14} parent=0 // pred_check
    _
  $region7: #{vqvae_forward.14} parent=0 // pred_check_branch
    %12 = sbr.rel (0) target = $region9
  $region8: #{vqvae_forward.14} parent=0 // pred_region
    _
  $region9: #{vqvae_forward.14} parent=0 // pred_fallthru
    _
  // Predicated region
  $region10: #{vqvae_forward.14} parent=0 // pred_check
    _
  $region11: #{vqvae_forward.14} parent=0 // pred_check_branch
    %14 = sbr.rel (0) target = $region13
  $region12: #{vqvae_forward.14} parent=0 // pred_region
    _
  $region13: #{vqvae_forward.14} parent=0 // pred_fallthru
    _
  // Predicated region
  $region14: #{vqvae_forward.14} parent=0 // pred_check
    _
  $region15: #{vqvae_forward.14} parent=0 // pred_check_branch
    %16 = sbr.rel (0) target = $region17
  $region16: #{vqvae_forward.14} parent=0 // pred_region
    _
  $region17: #{vqvae_forward.14} parent=0 // pred_fallthru
    _
  %v18 = vld [vmem:[%s0] sm:$0xff]
  %v19 = vld [vmem:[%s0 + $0x8] sm:$0xf]
  %v20 = vld [vmem:[%s0 + $0xc] sm:$0xff]
  %v21 = vld [vmem:[%s0 + $0x14] sm:$0xf]
  %v22 = vld [vmem:[%s0 + $0x18] sm:$0xff]
  %v23 = vld [vmem:[%s0 + $0x20] sm:$0xf]
  %v24 = vld [vmem:[%s0 + $0x24] sm:$0xff]
  %v25 = vld [vmem:[%s0 + $0x2c] sm:$0xf]
  %v26 = vmax.bf16 %v18, 0
  %v27 = vmax.bf16 %v19, 0
  %v28 = vmax.bf16 %v20, 0
  %v29 = vmax.bf16 %v21, 0
  %v30 = vmax.bf16 %v22, 0
  %v31 = vmax.bf16 %v23, 0
  %v32 = vmax.bf16 %v24, 0
  %v33 = vmax.bf16 %v25, 0
  %v34 = vld [vmem:[%s2] sm:$0xf]
  %v35 = vld [vmem:[%s2 + $0x4] sm:$0xf]
  %v36 = vld [vmem:[%s2 + $0x8] sm:$0xf]
  %v37 = vld [vmem:[%s2 + $0xc] sm:$0xf]
  %v38 = vld [vmem:[%s2 + $0x10] sm:$0xf]
  %v39 = vld [vmem:[%s2 + $0x14] sm:$0xf]
  %v40 = vld [vmem:[%s2 + $0x18] sm:$0xf]
  %v41 = vld [vmem:[%s2 + $0x1c] sm:$0xf]
  %v42 = vld [vmem:[%s2 + $0x20] sm:$0xf]
  %v43 = vld [vmem:[%s2 + $0x24] sm:$0xf]
  %v44 = vld [vmem:[%s2 + $0x28] sm:$0xf]
  %v45 = vld [vmem:[%s2 + $0x2c] sm:$0xf]
  %v46 = vld [vmem:[%s2 + $0x30] sm:$0xf]
  %v47 = vld [vmem:[%s2 + $0x34] sm:$0xf]
  %v48 = vld [vmem:[%s2 + $0x38] sm:$0xf]
  %v49 = vld [vmem:[%s2 + $0x3c] sm:$0xf]
  %v50 = vld [vmem:[%s2 + $0x40] sm:$0xf]
  %v51 = vld [vmem:[%s2 + $0x44] sm:$0xf]
  %v52 = vld [vmem:[%s2 + $0x48] sm:$0xf]
  %v53 = vld [vmem:[%s2 + $0x4c] sm:$0xf]
  %v54 = vld [vmem:[%s2 + $0x50] sm:$0xf]
  %v55 = vld [vmem:[%s2 + $0x54] sm:$0xf]
  %v56 = vld [vmem:[%s2 + $0x58] sm:$0xf]
  %v57 = vld [vmem:[%s2 + $0x5c] sm:$0xf]
  %v58 = vld [vmem:[%s2 + $0x60] sm:$0xf]
  %v59 = vld [vmem:[%s2 + $0x64] sm:$0xf]
  %v60 = vld [vmem:[%s2 + $0x68] sm:$0xf]
  %v61 = vld [vmem:[%s2 + $0x6c] sm:$0xf]
  %v62 = vld [vmem:[%s2 + $0x70] sm:$0xf]
  %v63 = vld [vmem:[%s2 + $0x74] sm:$0xf]
  %v64 = vld [vmem:[%s2 + $0x78] sm:$0xf]
  %v65 = vld [vmem:[%s2 + $0x7c] sm:$0xf]
  %v66 = vld [vmem:[%s2 + $0x80] sm:$0xf]
  %v67 = vld [vmem:[%s2 + $0x84] sm:$0xf]
  %v68 = vld [vmem:[%s2 + $0x88] sm:$0xf]
  %v69 = vld [vmem:[%s2 + $0x8c] sm:$0xf]
  %v78 = vunpack.c.l.b16 %v26
  %v79 = vunpack.c.h.b16 %v26
  %v80 = vunpack.c.l.b16 %v27
  %v81 = vunpack.c.l.b16 %v28
  %v82 = vunpack.c.h.b16 %v28
  %v83 = vunpack.c.l.b16 %v29
  %v84 = vunpack.c.l.b16 %v30
  %v85 = vunpack.c.h.b16 %v30
  %v86 = vunpack.c.l.b16 %v31
  %v87 = vunpack.c.l.b16 %v32
  %v88 = vunpack.c.h.b16 %v32
  %v89 = vunpack.c.l.b16 %v33
  %v90 = vpack.c.b16 %v81, %v78
  %v91 = vpack.c.b16 %v82, %v79
  %v92 = vpack.c.b16 %v83, %v80
  %v93 = vpack.c.b16 %v87, %v84
  %v94 = vpack.c.b16 %v88, %v85
  %v95 = vpack.c.b16 %v89, %v86
  %v136 = vunpack.c.l.b16 %v34
  %v137 = vunpack.c.l.b16 %v35
  %v138 = vunpack.c.l.b16 %v36
  %v139 = vunpack.c.l.b16 %v37
  %v140 = vunpack.c.l.b16 %v38
  %v141 = vunpack.c.l.b16 %v39
  %v142 = vunpack.c.l.b16 %v40
  %v143 = vunpack.c.l.b16 %v41
  %v144 = vunpack.c.l.b16 %v42
  %v145 = vunpack.c.l.b16 %v43
  %v146 = vunpack.c.l.b16 %v44
  %v147 = vunpack.c.l.b16 %v45
  %v148 = vunpack.c.l.b16 %v46
  %v149 = vunpack.c.l.b16 %v47
  %v150 = vunpack.c.l.b16 %v48
  %v151 = vunpack.c.l.b16 %v49
  %v152 = vunpack.c.l.b16 %v50
  %v153 = vunpack.c.l.b16 %v51
  %v154 = vunpack.c.l.b16 %v52
  %v155 = vunpack.c.l.b16 %v53
  %v156 = vunpack.c.l.b16 %v54
  %v157 = vunpack.c.l.b16 %v55
  %v158 = vunpack.c.l.b16 %v56
  %v159 = vunpack.c.l.b16 %v57
  %v160 = vunpack.c.l.b16 %v58
  %v161 = vunpack.c.l.b16 %v59
  %v162 = vunpack.c.l.b16 %v60
  %v163 = vunpack.c.l.b16 %v61
  %v164 = vunpack.c.l.b16 %v62
  %v165 = vunpack.c.l.b16 %v63
  %v166 = vunpack.c.l.b16 %v64
  %v167 = vunpack.c.l.b16 %v65
  %v168 = vunpack.c.l.b16 %v66
  %v169 = vunpack.c.l.b16 %v67
  %v170 = vunpack.c.l.b16 %v68
  %v171 = vunpack.c.l.b16 %v69
  %v172 = vpack.c.b16 %v137, %v136
  %v173 = vpack.c.b16 %v139, %v138
  %v174 = vpack.c.b16 %v141, %v140
  %v175 = vpack.c.b16 %v143, %v142
  %v176 = vpack.c.b16 %v145, %v144
  %v177 = vpack.c.b16 %v147, %v146
  %v178 = vpack.c.b16 %v149, %v148
  %v179 = vpack.c.b16 %v151, %v150
  %v180 = vpack.c.b16 %v153, %v152
  %v181 = vpack.c.b16 %v155, %v154
  %v182 = vpack.c.b16 %v157, %v156
  %v183 = vpack.c.b16 %v159, %v158
  %v184 = vpack.c.b16 %v161, %v160
  %v185 = vpack.c.b16 %v163, %v162
  %v186 = vpack.c.b16 %v165, %v164
  %v187 = vpack.c.b16 %v167, %v166
  %v188 = vpack.c.b16 %v169, %v168
  %v189 = vpack.c.b16 %v171, %v170
  %vm208 = vcmask 261120
  %v210 = vsel %vm208, %v92, 0
  %v213 = vsel %vm208, %v95, 0
  %215 = vmatprep.subr.bf16.mxu0 0
  %216 = vmatpush1.bf16.msra.mxu0 %v172
  %217 = vmatprep.subr.bf16.mxu0 0
  %218 = vmatpush1.bf16.msra.mxu0 %v173
  %219 = vmatprep.subr.bf16.mxu0 0
  %220 = vmatpush1.bf16.msra.mxu0 %v174
  %221 = vmatprep.subr.bf16.mxu0 0
  %222 = vmatpush1.bf16.msra.mxu0 %v175
  %223 = vmatprep.subr.bf16.mxu0 0
  %224 = vmatpush1.bf16.msra.mxu0 %v176
  %225 = vmatprep.subr.bf16.mxu0 0
  %226 = vmatpush1.bf16.msra.mxu0 %v177
  %227 = vmatprep.subr.bf16.mxu0 0
  %228 = vmatpush1.bf16.msra.mxu0 %v178
  %229 = vmatprep.subr.bf16.mxu0 0
  %230 = vmatpush1.bf16.msra.mxu0 %v179
  %231 = vmatprep.subr.bf16.mxu0 0
  %232 = vmatpush1.bf16.msra.mxu0 %v180
  %233 = vmatprep.subr.bf16.mxu0 0
  %234 = vmatpush1.bf16.msra.mxu0 %v181
  %235 = vmatprep.subr.bf16.mxu0 0
  %236 = vmatpush1.bf16.msra.mxu0 %v182
  %237 = vmatprep.subr.bf16.mxu0 0
  %238 = vmatpush1.bf16.msra.mxu0 %v183
  %239 = vmatprep.subr.bf16.mxu0 0
  %240 = vmatpush1.bf16.msra.mxu0 %v184
  %241 = vmatprep.subr.bf16.mxu0 0
  %242 = vmatpush1.bf16.msra.mxu0 %v185
  %243 = vmatprep.subr.bf16.mxu0 0
  %244 = vmatpush1.bf16.msra.mxu0 %v186
  %245 = vmatprep.subr.bf16.mxu0 0
  %246 = vmatpush1.bf16.msra.mxu0 %v187
  %247 = vmatprep.mubr.bf16.mxu0 %v91
  %248 = vmatmul.mubr.bf16.gmra.mrb[0].mxu0 %v90
  %v249 = vpop.f32.mrb[0].mxu0
  %v250 = vadd.f32 0.0, %v249
  %v251 = vpop.f32.mrb[0].mxu0
  %v252 = vpop.f32.mrb[0].mxu0
  %v253 = vadd.f32 0.0, %v252
  %v254 = vpop.f32.mrb[0].mxu0
  %255 = vmatprep.mubr.bf16.mxu0 %v94
  %256 = vmatmul.mubr.bf16.gmra.mrb[0].mxu0 %v93
  %v257 = vpop.f32.mrb[0].mxu0
  %v258 = vadd.f32 0.0, %v257
  %v259 = vpop.f32.mrb[0].mxu0
  %v260 = vpop.f32.mrb[0].mxu0
  %v261 = vadd.f32 0.0, %v260
  %v262 = vpop.f32.mrb[0].mxu0
  %263 = vdwg.mxu0
  %264 = vmatprep.subr.bf16.mxu0 0
  %265 = vmatpush1.bf16.msra.mxu0 %v188
  %266 = vmatprep.subr.bf16.mxu0 0
  %267 = vmatpush1.bf16.msra.mxu0 %v189
  %268 = vmatprep.subr.bf16.mxu0 0
  %269 = vmatpush1.bf16.msra.mxu0 0
  %270 = vmatprep.subr.bf16.mxu0 0
  %271 = vmatpush1.bf16.msra.mxu0 0
  %272 = vmatprep.subr.bf16.mxu0 0
  %273 = vmatpush1.bf16.msra.mxu0 0
  %274 = vmatprep.subr.bf16.mxu0 0
  %275 = vmatpush1.bf16.msra.mxu0 0
  %276 = vmatprep.subr.bf16.mxu0 0
  %277 = vmatpush1.bf16.msra.mxu0 0
  %278 = vmatprep.subr.bf16.mxu0 0
  %279 = vmatpush1.bf16.msra.mxu0 0
  %280 = vmatprep.subr.bf16.mxu0 0
  %281 = vmatpush1.bf16.msra.mxu0 0
  %282 = vmatprep.subr.bf16.mxu0 0
  %283 = vmatpush1.bf16.msra.mxu0 0
  %284 = vmatprep.subr.bf16.mxu0 0
  %285 = vmatpush1.bf16.msra.mxu0 0
  %286 = vmatprep.subr.bf16.mxu0 0
  %287 = vmatpush1.bf16.msra.mxu0 0
  %288 = vmatprep.subr.bf16.mxu0 0
  %289 = vmatpush1.bf16.msra.mxu0 0
  %290 = vmatprep.subr.bf16.mxu0 0
  %291 = vmatpush1.bf16.msra.mxu0 0
  %292 = vmatprep.subr.bf16.mxu0 0
  %293 = vmatpush1.bf16.msra.mxu0 0
  %294 = vmatprep.subr.bf16.mxu0 0
  %295 = vmatpush1.bf16.msra.mxu0 0
  %296 = vmatprep.mubr.bf16.mxu0 0
  %297 = vmatmul.mubr.bf16.gmra.mrb[0].mxu0 %v210
  %v298 = vpop.f32.mrb[0].mxu0
  %v299 = vadd.f32 %v250, %v298
  %v300 = vpop.f32.mrb[0].mxu0
  %v301 = vpop.f32.mrb[0].mxu0
  %v302 = vadd.f32 %v253, %v301
  %v303 = vpop.f32.mrb[0].mxu0
  %304 = vmatprep.mubr.bf16.mxu0 0
  %305 = vmatmul.mubr.bf16.gmra.mrb[0].mxu0 %v213
  %v306 = vpop.f32.mrb[0].mxu0
  %v307 = vadd.f32 %v258, %v306
  %v308 = vpop.f32.mrb[0].mxu0
  %v309 = vpop.f32.mrb[0].mxu0
  %v310 = vadd.f32 %v261, %v309
  %v311 = vpop.f32.mrb[0].mxu0
  %312 = vdwg.mxu0
  %v313 = vmax.f32 %v299, 0.0
  %v314 = vmax.f32 %v302, 0.0
  %v315 = vmax.f32 %v307, 0.0
  %v316 = vmax.f32 %v310, 0.0
  %v317 = vpack.c.bf16 %v314, %v313
  %v318 = vpack.c.bf16 %v316, %v315
  %v319 = vld [vmem:[%s3] sm:$0xf]
  %v320 = vld [vmem:[%s3 + $0x4] sm:$0xf]
  %v323 = vunpack.c.l.b16 %v319
  %v324 = vunpack.c.l.b16 %v320
  %v325 = vpack.c.b16 %v324, %v323
  %vm327 = vcmask 130048
  %v329 = vsel %vm327, %v317, 0
  %v332 = vsel %vm327, %v318, 0
  %334 = vmatprep.subr.bf16.mxu0 0
  %335 = vmatpush1.bf16.msra.mxu0 %v325
  %336 = vmatprep.subr.bf16.mxu0 0
  %337 = vmatpush1.bf16.msra.mxu0 0
  %338 = vmatprep.subr.bf16.mxu0 0
  %339 = vmatpush1.bf16.msra.mxu0 0
  %340 = vmatprep.subr.bf16.mxu0 0
  %341 = vmatpush1.bf16.msra.mxu0 0
  %342 = vmatprep.subr.bf16.mxu0 0
  %343 = vmatpush1.bf16.msra.mxu0 0
  %344 = vmatprep.subr.bf16.mxu0 0
  %345 = vmatpush1.bf16.msra.mxu0 0
  %346 = vmatprep.subr.bf16.mxu0 0
  %347 = vmatpush1.bf16.msra.mxu0 0
  %348 = vmatprep.subr.bf16.mxu0 0
  %349 = vmatpush1.bf16.msra.mxu0 0
  %350 = vmatprep.subr.bf16.mxu0 0
  %351 = vmatpush1.bf16.msra.mxu0 0
  %352 = vmatprep.subr.bf16.mxu0 0
  %353 = vmatpush1.bf16.msra.mxu0 0
  %354 = vmatprep.subr.bf16.mxu0 0
  %355 = vmatpush1.bf16.msra.mxu0 0
  %356 = vmatprep.subr.bf16.mxu0 0
  %357 = vmatpush1.bf16.msra.mxu0 0
  %358 = vmatprep.subr.bf16.mxu0 0
  %359 = vmatpush1.bf16.msra.mxu0 0
  %360 = vmatprep.subr.bf16.mxu0 0
  %361 = vmatpush1.bf16.msra.mxu0 0
  %362 = vmatprep.subr.bf16.mxu0 0
  %363 = vmatpush1.bf16.msra.mxu0 0
  %364 = vmatprep.subr.bf16.mxu0 0
  %365 = vmatpush1.bf16.msra.mxu0 0
  %366 = vmatprep.mubr.bf16.mxu0 0
  %367 = vmatmul.mubr.bf16.gmra.mrb[0].mxu0 %v329
  %v368 = vpop.f32.mrb[0].mxu0
  %v369 = vadd.f32 0.0, %v368
  %v370 = vpop.f32.mrb[0].mxu0
  %v371 = vpop.f32.mrb[0].mxu0
  %v372 = vadd.f32 0.0, %v371
  %v373 = vpop.f32.mrb[0].mxu0
  %374 = vmatprep.mubr.bf16.mxu0 0
  %375 = vmatmul.mubr.bf16.gmra.mrb[0].mxu0 %v332
  %v376 = vpop.f32.mrb[0].mxu0
  %v377 = vadd.f32 0.0, %v376
  %v378 = vpop.f32.mrb[0].mxu0
  %v379 = vpop.f32.mrb[0].mxu0
  %v380 = vadd.f32 0.0, %v379
  %v381 = vpop.f32.mrb[0].mxu0
  %382 = vdwg.mxu0
  %v383 = vld [vmem:[%s1] sm:$0xf]
  %v384 = vld [vmem:[%s1 + $0x4] sm:$0xf]
  %v385 = vld [vmem:[%s1 + $0x8] sm:$0xf]
  %v386 = vld [vmem:[%s1 + $0xc] sm:$0xf]
  %v387 = vunpack.c.l.bf16 %v383
  %v388 = vunpack.c.l.bf16 %v384
  %v389 = vunpack.c.l.bf16 %v385
  %v390 = vunpack.c.l.bf16 %v386
  %v391 = vadd.f32 %v387, %v369
  %v392 = vadd.f32 %v388, %v372
  %v393 = vadd.f32 %v389, %v377
  %v394 = vadd.f32 %v390, %v380
  %v395 = vpack.c.bf16 %v392, %v391
  %v396 = vpack.c.bf16 %v394, %v393
  %v399 = vunpack.c.l.b16 %v395
  %v400 = vunpack.c.h.b16 %v395
  %v401 = vunpack.c.l.b16 %v396
  %v402 = vunpack.c.h.b16 %v396
  %v403 = vpack.c.b16 %v399, %v399
  %v404 = vpack.c.b16 %v400, %v400
  %v405 = vpack.c.b16 %v401, %v401
  %v406 = vpack.c.b16 %v402, %v402
  %vm411 = vcmask 257024
  %412 = vst.msk [vmem:[%s4] sm:$0xf] %vm411, %v403
  %413 = vst.msk [vmem:[%s4 + $0x4] sm:$0xf] %vm411, %v404
  %414 = vst.msk [vmem:[%s4 + $0x8] sm:$0xf] %vm411, %v405
  %415 = vst.msk [vmem:[%s4 + $0xc] sm:$0xf] %vm411, %v406
  // Predicated region
  $region18: #{vqvae_forward.14} parent=0 // pred_check
    _
  $region19: #{vqvae_forward.14} parent=0 // pred_check_branch
    %417 = sbr.rel (0) target = $region21
  $region20: #{vqvae_forward.14} parent=0 // pred_region
    _
  $region21: #{vqvae_forward.14} parent=0 // pred_fallthru
    _
  // Predicated region
  $region22: #{vqvae_forward.14} parent=0 // pred_check
    _
  $region23: #{vqvae_forward.14} parent=0 // pred_check_branch
    %419 = sbr.rel (0) target = $region25
  $region24: #{vqvae_forward.14} parent=0 // pred_region
    _
  $region25: #{vqvae_forward.14} parent=0 // pred_fallthru
    _

// kernel: vqvae_forward.16
$region0: #{vqvae_forward.16}
  #allocation0 [shape = 'u32[]', space=smem, size = 0x4, offset = 0x4, fixed_abs, tag = 'smem constant byte address 0x4 - core index']
  #allocation1 [shape = 'u32[144,128]{1,0:T(1,128)}', space=vmem, size = 0x12000, scoped, tag = 'internal scratch']
  #allocation2 [shape = 'f32[1,128]{1,0:T(1,128)}', space=vmem, size = 0x200, scoped, tag = 'scratch operand']
  #allocation3 [shape = 'f32[1,1]{1,0:T(1,128)}', space=vmem, size = 0x200, scoped, tag = 'scratch operand']
  %s0 = inlined_call_operand.vmem [shape: bf16[32,32], index: 0, kind: input, shape index: {}]
  %s1 = inlined_call_operand.vmem [shape: bf16[32,16], index: 1, kind: input, shape index: {}]
  %s2 = inlined_call_operand.vmem [shape: f32[1,16], index: 2, kind: input, shape index: {}]
  %s3 = inlined_call_operand.vmem [shape: bf16[16,128], index: 3, kind: input, shape index: {}]
  %s4 = inlined_call_operand.vmem [shape: f32[128,16], index: 4, kind: input, shape index: {}]
  %s5 = inlined_call_operand.vmem [shape: f32[1,128], index: 5, kind: input, shape index: {}]
  %s6 = inlined_call_operand.vmem [shape: bf16[32,16], index: 6, kind: output, shape index: {0}]
  %s7 = inlined_call_operand.hbm [shape: f32[1,1], index: 7, kind: output, shape index: {1}]
  %s8 = inlined_call_operand.hbm [shape: f32[1,1], index: 8, kind: output, shape index: {2}]
  %9 = xla_tuple %s6, %s7, %s8
  %s10 = sld [smem:[#allocation0]]
  $region58: #{vqvae_forward.16} parent=0
    _
  %s12 = ssub.s32 1, %s10
  %s13 = scalar_select 0, %s12, %s10
  $region1: #{vqvae_forward.16} parent=0
    #allocation4 [shape = 'u8[512]{0}', space=vmem, size = 0x400, scoped, tag = 'output window, operand 1, single buffered']
    #allocation5 [shape = 's32[1]{0}', space=sflag, size = 0x4, scoped, tag = 'scoped memory for vqvae_forward.16']
    #allocation6 [shape = 'u8[512]{0}', space=vmem, size = 0x400, scoped, tag = 'output window, operand 2, single buffered']
    #allocation7 [shape = 's32[1]{0}', space=sflag, size = 0x4, scoped, tag = 'scoped memory for vqvae_forward.16']
    %14 = vsyncpa [#allocation5], 0
    %15 = vsyncpa [#allocation7], 0
    // Predicated region
    $region2: #{vqvae_forward.16} parent=1 // pred_check
      _
    $region3: #{vqvae_forward.16} parent=1 // pred_check_branch
      %17 = sbr.rel (0) target = $region5
    $region4: #{vqvae_forward.16} parent=1 // pred_region
      _
    $region5: #{vqvae_forward.16} parent=1 // pred_fallthru
      _
    // Predicated region
    $region6: #{vqvae_forward.16} parent=1 // pred_check
      _
    $region7: #{vqvae_forward.16} parent=1 // pred_check_branch
      %19 = sbr.rel (0) target = $region9
    $region8: #{vqvae_forward.16} parent=1 // pred_region
      _
    $region9: #{vqvae_forward.16} parent=1 // pred_fallthru
      _
    // Predicated region
    $region10: #{vqvae_forward.16} parent=1 // pred_check
      _
    $region11: #{vqvae_forward.16} parent=1 // pred_check_branch
      %21 = sbr.rel (0) target = $region13
    $region12: #{vqvae_forward.16} parent=1 // pred_region
      _
    $region13: #{vqvae_forward.16} parent=1 // pred_fallthru
      _
    // Predicated region
    $region14: #{vqvae_forward.16} parent=1 // pred_check
      _
    $region15: #{vqvae_forward.16} parent=1 // pred_check_branch
      %23 = sbr.rel (0) target = $region17
    $region16: #{vqvae_forward.16} parent=1 // pred_region
      _
    $region17: #{vqvae_forward.16} parent=1 // pred_fallthru
      _
    // Predicated region
    $region18: #{vqvae_forward.16} parent=1 // pred_check
      _
    $region19: #{vqvae_forward.16} parent=1 // pred_check_branch
      %25 = sbr.rel (0) target = $region21
    $region20: #{vqvae_forward.16} parent=1 // pred_region
      _
    $region21: #{vqvae_forward.16} parent=1 // pred_fallthru
      _
    // Predicated region
    $region22: #{vqvae_forward.16} parent=1 // pred_check
      _
    $region23: #{vqvae_forward.16} parent=1 // pred_check_branch
      %27 = sbr.rel (0) target = $region25
    $region24: #{vqvae_forward.16} parent=1 // pred_region
      _
    $region25: #{vqvae_forward.16} parent=1 // pred_fallthru
      _
    %p29 = scmp.eq.s32.totalorder 0, 0
    // Predicated region
    $region26: #{vqvae_forward.16} parent=1 // pred_check
      %p30 = pneg %p29
    $region27: #{vqvae_forward.16} parent=1 // pred_check_branch
      %32 = sbr.rel (%p30) target = $region29
    $region28: #{vqvae_forward.16} parent=1 // pred_region
      %33 = vst [vmem:[#allocation2] sm:$0x1] 0.0
      %vm34 = vcmask 0
      %35 = vst.msk [vmem:[#allocation3] sm:$0x1] %vm34, 0.0
    $region29: #{vqvae_forward.16} parent=1 // pred_fallthru
      _
    %v36 = vld [vmem:[%s0] sm:$0xf]
    %v37 = vld [vmem:[%s0 + $0x4] sm:$0xf]
    %v38 = vld [vmem:[%s0 + $0x8] sm:$0xf]
    %v39 = vld [vmem:[%s0 + $0xc] sm:$0xf]
    %v40 = vmax.bf16 %v36, 0
    %v41 = vmax.bf16 %v37, 0
    %v42 = vmax.bf16 %v38, 0
    %v43 = vmax.bf16 %v39, 0
    %v44 = vld [vmem:[%s1] sm:$0xf]
    %v45 = vld [vmem:[%s1 + $0x4] sm:$0xf]
    %v46 = vld [vmem:[%s1 + $0x8] sm:$0xf]
    %v47 = vld [vmem:[%s1 + $0xc] sm:$0xf]
    %v48 = vld [vmem:[%s2] sm:$0x1]
    %v50 = vlaneseq
    %v51 = vshrl.u32 %v50, 7
    %v52 = vsub.s32 0, %v51
    %v53 = vrot.slane %v48, %v52
    %v59 = vunpack.c.l.b16 %v40
    %v60 = vunpack.c.l.b16 %v41
    %v61 = vunpack.c.l.b16 %v42
    %v62 = vunpack.c.l.b16 %v43
    %v63 = vpack.c.b16 %v60, %v59
    %v64 = vpack.c.b16 %v62, %v61
    %v69 = vunpack.c.l.b16 %v44
    %v70 = vunpack.c.l.b16 %v45
    %v71 = vunpack.c.l.b16 %v46
    %v72 = vunpack.c.l.b16 %v47
    %v73 = vpack.c.b16 %v70, %v69
    %v74 = vpack.c.b16 %v72, %v71
    %vm77 = vcmask 261120
    %v79 = vsel %vm77, %v63, 0
    %v82 = vsel %vm77, %v64, 0
    %84 = vmatprep.subr.bf16.mxu0 0
    %85 = vmatpush1.bf16.msra.mxu0 %v73
    %86 = vmatprep.subr.bf16.mxu0 0
    %87 = vmatpush1.bf16.msra.mxu0 %v74
    %88 = vmatprep.subr.bf16.mxu0 0
    %89 = vmatpush1.bf16.msra.mxu0 0
    %90 = vmatprep.subr.bf16.mxu0 0
    %91 = vmatpush1.bf16.msra.mxu0 0
    %92 = vmatprep.subr.bf16.mxu0 0
    %93 = vmatpush1.bf16.msra.mxu0 0
    %94 = vmatprep.subr.bf16.mxu0 0
    %95 = vmatpush1.bf16.msra.mxu0 0
    %96 = vmatprep.subr.bf16.mxu0 0
    %97 = vmatpush1.bf16.msra.mxu0 0
    %98 = vmatprep.subr.bf16.mxu0 0
    %99 = vmatpush1.bf16.msra.mxu0 0
    %100 = vmatprep.subr.bf16.mxu0 0
    %101 = vmatpush1.bf16.msra.mxu0 0
    %102 = vmatprep.subr.bf16.mxu0 0
    %103 = vmatpush1.bf16.msra.mxu0 0
    %104 = vmatprep.subr.bf16.mxu0 0
    %105 = vmatpush1.bf16.msra.mxu0 0
    %106 = vmatprep.subr.bf16.mxu0 0
    %107 = vmatpush1.bf16.msra.mxu0 0
    %108 = vmatprep.subr.bf16.mxu0 0
    %109 = vmatpush1.bf16.msra.mxu0 0
    %110 = vmatprep.subr.bf16.mxu0 0
    %111 = vmatpush1.bf16.msra.mxu0 0
    %112 = vmatprep.subr.bf16.mxu0 0
    %113 = vmatpush1.bf16.msra.mxu0 0
    %114 = vmatprep.subr.bf16.mxu0 0
    %115 = vmatpush1.bf16.msra.mxu0 0
    %116 = vmatprep.mubr.bf16.mxu0 0
    %117 = vmatmul.mubr.bf16.gmra.mrb[0].mxu0 %v79
    %v118 = vpop.f32.mrb[0].mxu0
    %v119 = vadd.f32 %v53, %v118
    %v120 = vpop.f32.mrb[0].mxu0
    %v121 = vpop.f32.mrb[0].mxu0
    %v122 = vadd.f32 %v53, %v121
    %v123 = vpop.f32.mrb[0].mxu0
    %124 = vmatprep.mubr.bf16.mxu0 0
    %125 = vmatmul.mubr.bf16.gmra.mrb[0].mxu0 %v82
    %v126 = vpop.f32.mrb[0].mxu0
    %v127 = vadd.f32 %v53, %v126
    %v128 = vpop.f32.mrb[0].mxu0
    %v129 = vpop.f32.mrb[0].mxu0
    %v130 = vadd.f32 %v53, %v129
    %v131 = vpop.f32.mrb[0].mxu0
    %132 = vdwg.mxu0
    %v133 = vmul.f32 %v119, %v119
    %v134 = vmul.f32 %v122, %v122
    %v135 = vmul.f32 %v127, %v127
    %v136 = vmul.f32 %v130, %v130
    %vm137 = vcmask 130048
    %v138 = vsel %vm137, %v133, 0.0
    %139 = vadd.xlane.f32.xlu0 %v138
    %v140 = vpop.xlane.xlu0 %139
    %v141 = vsel %vm137, %v134, 0.0
    %142 = vadd.xlane.f32.xlu0 %v141
    %v143 = vpop.xlane.xlu0 %142
    %v144 = vsel %vm137, %v135, 0.0
    %145 = vadd.xlane.f32.xlu0 %v144
    %v146 = vpop.xlane.xlu0 %145
    %v147 = vsel %vm137, %v136, 0.0
    %148 = vadd.xlane.f32.xlu0 %v147
    %v149 = vpop.xlane.xlu0 %148
    %v150 = vld [vmem:[%s5] sm:$0x1]
    %v152 = vlaneseq
    %v153 = vshrl.u32 %v152, 7
    %v154 = vsub.s32 0, %v153
    %v155 = vrot.slane %v150, %v154
    %v157 = vadd.f32 %v140, %v155
    %v158 = vadd.f32 %v143, %v155
    %v159 = vadd.f32 %v146, %v155
    %v160 = vadd.f32 %v149, %v155
    %v161 = vpack.c.bf16 %v122, %v119
    %v162 = vpack.c.bf16 %v130, %v127
    %v163 = vld [vmem:[%s3] sm:$0xf]
    %v164 = vld [vmem:[%s3 + $0x4] sm:$0xf]
    %v167 = vunpack.c.l.b16 %v163
    %v168 = vunpack.c.l.b16 %v164
    %v169 = vpack.c.b16 %v168, %v167
    %v172 = vsel %vm137, %v161, 0
    %v175 = vsel %vm137, %v162, 0
    %177 = vmatprep.subr.bf16.mxu0 0
    %178 = vmatpush1.bf16.msra.mxu0 %v169
    %179 = vmatprep.subr.bf16.mxu0 0
    %180 = vmatpush1.bf16.msra.mxu0 0
    %181 = vmatprep.subr.bf16.mxu0 0
    %182 = vmatpush1.bf16.msra.mxu0 0
    %183 = vmatprep.subr.bf16.mxu0 0
    %184 = vmatpush1.bf16.msra.mxu0 0
    %185 = vmatprep.subr.bf16.mxu0 0
    %186 = vmatpush1.bf16.msra.mxu0 0
    %187 = vmatprep.subr.bf16.mxu0 0
    %188 = vmatpush1.bf16.msra.mxu0 0
    %189 = vmatprep.subr.bf16.mxu0 0
    %190 = vmatpush1.bf16.msra.mxu0 0
    %191 = vmatprep.subr.bf16.mxu0 0
    %192 = vmatpush1.bf16.msra.mxu0 0
    %193 = vmatprep.subr.bf16.mxu0 0
    %194 = vmatpush1.bf16.msra.mxu0 0
    %195 = vmatprep.subr.bf16.mxu0 0
    %196 = vmatpush1.bf16.msra.mxu0 0
    %197 = vmatprep.subr.bf16.mxu0 0
    %198 = vmatpush1.bf16.msra.mxu0 0
    %199 = vmatprep.subr.bf16.mxu0 0
    %200 = vmatpush1.bf16.msra.mxu0 0
    %201 = vmatprep.subr.bf16.mxu0 0
    %202 = vmatpush1.bf16.msra.mxu0 0
    %203 = vmatprep.subr.bf16.mxu0 0
    %204 = vmatpush1.bf16.msra.mxu0 0
    %205 = vmatprep.subr.bf16.mxu0 0
    %206 = vmatpush1.bf16.msra.mxu0 0
    %207 = vmatprep.subr.bf16.mxu0 0
    %208 = vmatpush1.bf16.msra.mxu0 0
    %209 = vmatprep.mubr.bf16.mxu0 0
    %210 = vmatmul.mubr.bf16.gmra.mrb[0].mxu0 %v172
    %v211 = vpop.f32.mrb[0].mxu0
    %v212 = vadd.f32 0.0, %v211
    %v213 = vpop.f32.mrb[0].mxu0
    %v214 = vpop.f32.mrb[0].mxu0
    %v215 = vadd.f32 0.0, %v214
    %v216 = vpop.f32.mrb[0].mxu0
    %217 = vmatprep.mubr.bf16.mxu0 0
    %218 = vmatmul.mubr.bf16.gmra.mrb[0].mxu0 %v175
    %v219 = vpop.f32.mrb[0].mxu0
    %v220 = vadd.f32 0.0, %v219
    %v221 = vpop.f32.mrb[0].mxu0
    %v222 = vpop.f32.mrb[0].mxu0
    %v223 = vadd.f32 0.0, %v222
    %v224 = vpop.f32.mrb[0].mxu0
    %225 = vdwg.mxu0
    %v226 = vmul.f32 %v212, 2.0
    %v227 = vmul.f32 %v215, 2.0
    %v228 = vmul.f32 %v220, 2.0
    %v229 = vmul.f32 %v223, 2.0
    %v230 = vsub.f32 %v157, %v226
    %v231 = vsub.f32 %v158, %v227
    %v232 = vsub.f32 %v159, %v228
    %v233 = vsub.f32 %v160, %v229
    %v234 = vlaneseq
    %v235 = vand.u32 %v234, 127
    %236 = vmin.xlane.f32.xlu0 %v230
    %v237 = vpop.xlane.xlu0 %236
    %238 = vmin.xlane.f32.xlu0 %v231
    %v239 = vpop.xlane.xlu0 %238
    %240 = vmin.xlane.f32.xlu0 %v232
    %v241 = vpop.xlane.xlu0 %240
    %242 = vmin.xlane.f32.xlu0 %v233
    %v243 = vpop.xlane.xlu0 %242
    %vm244 = vcmp.le.f32.partialorder %v230, %v237
    %vm245 = vcmp.le.f32.partialorder %v231, %v239
    %vm246 = vcmp.le.f32.partialorder %v232, %v241
    %vm247 = vcmp.le.f32.partialorder %v233, %v243
    %v248 = vsel %vm244, %v235, 128
    %v249 = vsel %vm245, %v235, 128
    %v250 = vsel %vm246, %v235, 128
    %v251 = vsel %vm247, %v235, 128
    %v252 = vand.u32 %v248, 65535
    %v253 = vshra.s32 %v248, 16
    %v254 = vcvt.s32.f32 %v252
    %v255 = vcvt.s32.f32 %v253
    %256 = vmin.xlane.f32.xlu0 %v255
    %v257 = vpop.xlane.xlu0 %256
    %vm258 = vcmp.eq.f32.partialorder %v255, %v257
    %v259 = vsel %vm258, %v254, inf
    %260 = vmin.xlane.f32.xlu0 %v259
    %v261 = vpop.xlane.xlu0 %260
    %v262 = vcvt.f32.s32 %v261
    %v263 = vcvt.f32.s32 %v257
    %v264 = vshll.u32 %v263, 16
    %v265 = vadd.s32 %v264, %v262
    %v266 = vand.u32 %v249, 65535
    %v267 = vshra.s32 %v249, 16
    %v268 = vcvt.s32.f32 %v266
    %v269 = vcvt.s32.f32 %v267
    %270 = vmin.xlane.f32.xlu0 %v269
    %v271 = vpop.xlane.xlu0 %270
    %vm272 = vcmp.eq.f32.partialorder %v269, %v271
    %v273 = vsel %vm272, %v268, inf
    %274 = vmin.xlane.f32.xlu0 %v273
    %v275 = vpop.xlane.xlu0 %274
    %v276 = vcvt.f32.s32 %v275
    %v277 = vcvt.f32.s32 %v271
    %v278 = vshll.u32 %v277, 16
    %v279 = vadd.s32 %v278, %v276
    %v280 = vand.u32 %v250, 65535
    %v281 = vshra.s32 %v250, 16
    %v282 = vcvt.s32.f32 %v280
    %v283 = vcvt.s32.f32 %v281
    %284 = vmin.xlane.f32.xlu0 %v283
    %v285 = vpop.xlane.xlu0 %284
    %vm286 = vcmp.eq.f32.partialorder %v283, %v285
    %v287 = vsel %vm286, %v282, inf
    %288 = vmin.xlane.f32.xlu0 %v287
    %v289 = vpop.xlane.xlu0 %288
    %v290 = vcvt.f32.s32 %v289
    %v291 = vcvt.f32.s32 %v285
    %v292 = vshll.u32 %v291, 16
    %v293 = vadd.s32 %v292, %v290
    %v294 = vand.u32 %v251, 65535
    %v295 = vshra.s32 %v251, 16
    %v296 = vcvt.s32.f32 %v294
    %v297 = vcvt.s32.f32 %v295
    %298 = vmin.xlane.f32.xlu0 %v297
    %v299 = vpop.xlane.xlu0 %298
    %vm300 = vcmp.eq.f32.partialorder %v297, %v299
    %v301 = vsel %vm300, %v296, inf
    %302 = vmin.xlane.f32.xlu0 %v301
    %v303 = vpop.xlane.xlu0 %302
    %v304 = vcvt.f32.s32 %v303
    %v305 = vcvt.f32.s32 %v299
    %v306 = vshll.u32 %v305, 16
    %v307 = vadd.s32 %v306, %v304
    %vm308 = vcmp.eq.s32.totalorder %v235, %v265
    %vm309 = vcmp.eq.s32.totalorder %v235, %v279
    %vm310 = vcmp.eq.s32.totalorder %v235, %v293
    %vm311 = vcmp.eq.s32.totalorder %v235, %v307
    %v312 = vsel %vm308, 1, 0
    %v313 = vsel %vm309, 1, 0
    %v314 = vsel %vm310, 1, 0
    %v315 = vsel %vm311, 1, 0
    %v316 = vcvt.s32.f32 %v312
    %v317 = vcvt.s32.f32 %v313
    %v318 = vcvt.s32.f32 %v314
    %v319 = vcvt.s32.f32 %v315
    %s320 = smul.u32 0, 32
    %v321 = vlaneseq
    %v322 = vshrl.u32 %v321, 7
    %v323 = vadd.s32 %v322, 8
    %v324 = vadd.s32 %v322, 16
    %v325 = vadd.s32 %v322, 24
    %v326 = vstv %s320
    %v327 = vadd.s32 %v326, %v322
    %v328 = vadd.s32 %v326, %v323
    %v329 = vadd.s32 %v326, %v324
    %v330 = vadd.s32 %v326, %v325
    %vm331 = vcmp.lt.s32.totalorder %v327, 32
    %vm332 = vcmp.lt.s32.totalorder %v328, 32
    %vm333 = vcmp.lt.s32.totalorder %v329, 32
    %vm334 = vcmp.lt.s32.totalorder %v330, 32
    %v335 = vsel %vm331, 1, 0
    %v336 = vsel %vm332, 1, 0
    %v337 = vsel %vm333, 1, 0
    %v338 = vsel %vm334, 1, 0
    %v339 = vcvt.s32.f32 %v335
    %v340 = vcvt.s32.f32 %v336
    %v341 = vcvt.s32.f32 %v337
    %v342 = vcvt.s32.f32 %v338
    %v343 = vmul.f32 %v316, %v339
    %v344 = vmul.f32 %v317, %v340
    %v345 = vmul.f32 %v318, %v341
    %v346 = vmul.f32 %v319, %v342
    %v347 = vld [vmem:[%s4] sm:$0xff]
    %v348 = vld [vmem:[%s4 + $0x8] sm:$0xff]
    %v349 = vld [vmem:[%s4 + $0x10] sm:$0xff]
    %v350 = vld [vmem:[%s4 + $0x18] sm:$0xff]
    %v351 = vld [vmem:[%s4 + $0x20] sm:$0xff]
    %v352 = vld [vmem:[%s4 + $0x28] sm:$0xff]
    %v353 = vld [vmem:[%s4 + $0x30] sm:$0xff]
    %v354 = vld [vmem:[%s4 + $0x38] sm:$0xff]
    %v355 = vld [vmem:[%s4 + $0x40] sm:$0xff]
    %v356 = vld [vmem:[%s4 + $0x48] sm:$0xff]
    %v357 = vld [vmem:[%s4 + $0x50] sm:$0xff]
    %v358 = vld [vmem:[%s4 + $0x58] sm:$0xff]
    %v359 = vld [vmem:[%s4 + $0x60] sm:$0xff]
    %v360 = vld [vmem:[%s4 + $0x68] sm:$0xff]
    %v361 = vld [vmem:[%s4 + $0x70] sm:$0xff]
    %v362 = vld [vmem:[%s4 + $0x78] sm:$0xff]
    %363 = vmatprep.subr.mxu0 0.0
    %364 = vmatpush1.msra.mxu0 %v347
    %365 = vmatprep.subr.mxu0 0.0
    %366 = vmatpush1.msra.mxu0 %v348
    %367 = vmatprep.subr.mxu0 0.0
    %368 = vmatpush1.msra.mxu0 %v349
    %369 = vmatprep.subr.mxu0 0.0
    %370 = vmatpush1.msra.mxu0 %v350
    %371 = vmatprep.subr.mxu0 0.0
    %372 = vmatpush1.msra.mxu0 %v351
    %373 = vmatprep.subr.mxu0 0.0
    %374 = vmatpush1.msra.mxu0 %v352
    %375 = vmatprep.subr.mxu0 0.0
    %376 = vmatpush1.msra.mxu0 %v353
    %377 = vmatprep.subr.mxu0 0.0
    %378 = vmatpush1.msra.mxu0 %v354
    %379 = vmatprep.subr.mxu0 0.0
    %380 = vmatpush1.msra.mxu0 %v355
    %381 = vmatprep.subr.mxu0 0.0
    %382 = vmatpush1.msra.mxu0 %v356
    %383 = vmatprep.subr.mxu0 0.0
    %384 = vmatpush1.msra.mxu0 %v357
    %385 = vmatprep.subr.mxu0 0.0
    %386 = vmatpush1.msra.mxu0 %v358
    %387 = vmatprep.subr.mxu0 0.0
    %388 = vmatpush1.msra.mxu0 %v359
    %389 = vmatprep.subr.mxu0 0.0
    %390 = vmatpush1.msra.mxu0 %v360
    %391 = vmatprep.subr.mxu0 0.0
    %392 = vmatpush1.msra.mxu0 %v361
    %393 = vmatprep.subr.mxu0 0.0
    %394 = vmatpush1.msra.mxu0 %v362
    %395 = vmatprep.subr.mxu0 0.0
    %396 = vmatpush1.msra.mxu0 0.0
    %397 = vmatprep.subr.mxu0 0.0
    %398 = vmatpush1.msra.mxu0 0.0
    %399 = vmatprep.subr.mxu0 0.0
    %400 = vmatpush1.msra.mxu0 0.0
    %401 = vmatprep.subr.mxu0 0.0
    %402 = vmatpush1.msra.mxu0 0.0
    %403 = vmatprep.subr.mxu0 0.0
    %404 = vmatpush1.msra.mxu0 0.0
    %405 = vmatprep.subr.mxu0 0.0
    %406 = vmatpush1.msra.mxu0 0.0
    %407 = vmatprep.subr.mxu0 0.0
    %408 = vmatpush1.msra.mxu0 0.0
    %409 = vmatprep.subr.mxu0 0.0
    %410 = vmatpush1.msra.mxu0 0.0
    %411 = vmatprep.subr.mxu0 0.0
    %412 = vmatpush1.msra.mxu0 0.0
    %413 = vmatprep.subr.mxu0 0.0
    %414 = vmatpush1.msra.mxu0 0.0
    %415 = vmatprep.subr.mxu0 0.0
    %416 = vmatpush1.msra.mxu0 0.0
    %417 = vmatprep.subr.mxu0 0.0
    %418 = vmatpush1.msra.mxu0 0.0
    %419 = vmatprep.subr.mxu0 0.0
    %420 = vmatpush1.msra.mxu0 0.0
    %421 = vmatprep.subr.mxu0 0.0
    %422 = vmatpush1.msra.mxu0 0.0
    %423 = vmatprep.subr.mxu0 0.0
    %424 = vmatpush1.msra.mxu0 0.0
    %425 = vmatprep.subr.mxu0 0.0
    %426 = vmatpush1.msra.mxu0 0.0
    %427 = vmatprep.mubr.f32.mxu0 0.0
    %428 = vmatmul.mubr.f32.gmra.mrb[0].mxu0 %v343
    %v429 = vpop.f32.mrb[0].mxu0
    %v430 = vadd.f32 0.0, %v429
    %v431 = vpop.f32.mrb[0].mxu0
    %432 = vmatprep.mubr.f32.mxu0 0.0
    %433 = vmatmul.mubr.f32.gmra.mrb[0].mxu0 %v344
    %v434 = vpop.f32.mrb[0].mxu0
    %v435 = vadd.f32 0.0, %v434
    %v436 = vpop.f32.mrb[0].mxu0
    %437 = vmatprep.mubr.f32.mxu0 0.0
    %438 = vmatmul.mubr.f32.gmra.mrb[0].mxu0 %v345
    %v439 = vpop.f32.mrb[0].mxu0
    %v440 = vadd.f32 0.0, %v439
    %v441 = vpop.f32.mrb[0].mxu0
    %442 = vmatprep.mubr.f32.mxu0 0.0
    %443 = vmatmul.mubr.f32.gmra.mrb[0].mxu0 %v346
    %v444 = vpop.f32.mrb[0].mxu0
    %v445 = vadd.f32 0.0, %v444
    %v446 = vpop.f32.mrb[0].mxu0
    %447 = vdwg.mxu0
    %v448 = vpack.c.bf16 %v435, %v430
    %v449 = vpack.c.bf16 %v445, %v440
    %v452 = vunpack.c.l.b16 %v448
    %v453 = vunpack.c.h.b16 %v448
    %v454 = vunpack.c.l.b16 %v449
    %v455 = vunpack.c.h.b16 %v449
    %v456 = vpack.c.b16 %v452, %v452
    %v457 = vpack.c.b16 %v453, %v453
    %v458 = vpack.c.b16 %v454, %v454
    %v459 = vpack.c.b16 %v455, %v455
    %vm464 = vcmask 125952
    %465 = vst.msk [vmem:[%s6] sm:$0xf] %vm464, %v456
    %466 = vst.msk [vmem:[%s6 + $0x4] sm:$0xf] %vm464, %v457
    %467 = vst.msk [vmem:[%s6 + $0x8] sm:$0xf] %vm464, %v458
    %468 = vst.msk [vmem:[%s6 + $0xc] sm:$0xf] %vm464, %v459
    %v469 = vsub.f32 %v430, %v119
    %v470 = vsub.f32 %v435, %v122
    %v471 = vsub.f32 %v440, %v127
    %v472 = vsub.f32 %v445, %v130
    %v473 = vmul.f32 %v469, %v339
    %v474 = vmul.f32 %v470, %v340
    %v475 = vmul.f32 %v471, %v341
    %v476 = vmul.f32 %v472, %v342
    %v477 = vld [vmem:[#allocation3] sm:$0x1]
    %v478 = vmul.f32 %v473, %v473
    %v479 = vmul.f32 %v474, %v474
    %v480 = vmul.f32 %v475, %v475
    %v481 = vmul.f32 %v476, %v476
    %v482 = vsel %vm137, %v478, 0.0
    %483 = vadd.xlane.f32.xlu0 %v482
    %v484 = vpop.xlane.xlu0 %483
    %v485 = vsel %vm137, %v479, 0.0
    %486 = vadd.xlane.f32.xlu0 %v485
    %v487 = vpop.xlane.xlu0 %486
    %v488 = vsel %vm137, %v480, 0.0
    %489 = vadd.xlane.f32.xlu0 %v488
    %v490 = vpop.xlane.xlu0 %489
    %v491 = vsel %vm137, %v481, 0.0
    %492 = vadd.xlane.f32.xlu0 %v491
    %v493 = vpop.xlane.xlu0 %492
    %v494 = vadd.f32 %v484, %v487
    %v495 = vadd.f32 %v494, %v490
    %v496 = vadd.f32 %v495, %v493
    %v497 = vrot.slane %v496, 4
    %v498 = vadd.f32 %v496, %v497
    %v499 = vrot.slane %v498, 2
    %v500 = vadd.f32 %v498, %v499
    %v501 = vrot.slane %v500, 1
    %v502 = vadd.f32 %v500, %v501
    %v503 = vadd.f32 %v477, %v502
    %vm504 = vcmask 0
    %505 = vst.msk [vmem:[#allocation3] sm:$0x1] %vm504, %v503
    %v506 = vld [vmem:[#allocation2] sm:$0x1]
    %v507 = vadd.f32 %v343, %v344
    %v508 = vadd.f32 %v507, %v345
    %v509 = vadd.f32 %v508, %v346
    %v510 = vrot.slane %v509, 4
    %v511 = vadd.f32 %v509, %v510
    %v512 = vrot.slane %v511, 2
    %v513 = vadd.f32 %v511, %v512
    %v514 = vrot.slane %v513, 1
    %v515 = vadd.f32 %v513, %v514
    %v516 = vadd.f32 %v506, %v515
    %517 = vst [vmem:[#allocation2] sm:$0x1] %v516
    // Predicated region
    $region30: #{vqvae_forward.16} parent=1 // pred_check
      %p518 = pneg %p29
    $region31: #{vqvae_forward.16} parent=1 // pred_check_branch
      %520 = sbr.rel (%p518) target = $region33
    $region32: #{vqvae_forward.16} parent=1 // pred_region
      %v521 = vld [vmem:[#allocation3] sm:$0x1]
      %v522 = vmul.f32 %v521, 1.25
      %v523 = vrcp.pop 512.0
      %v524 = vmul.f32 %v522, %v523
      %525 = vst.msk [vmem:[#allocation4] sm:$0x1] %vm504, %v524
      %v526 = vld [vmem:[#allocation2] sm:$0x1]
      %v527 = vrcp.pop 32.0
      %v528 = vmul.f32 %v526, %v527
      %v529 = vadd.f32 %v528, 1e-10
      %v530 = vlog2.pop %v529
      %v531 = vmul.f32 %v530, 0.6931472
      %v532 = vmul.f32 %v528, %v531
      %vm533 = vcmask 1040384
      %v534 = vsel %vm533, %v532, 0.0
      %535 = vadd.xlane.f32.xlu0 %v534
      %v536 = vpop.xlane.xlu0 %535
      %v537 = vsub.f32 0.0, %v536
      %v538 = vmul.f32 %v537, 1.442695
      %v539 = vpow.pop %v538
      %540 = vst.msk [vmem:[#allocation6] sm:$0x1] %vm504, %v539
    $region33: #{vqvae_forward.16} parent=1 // pred_fallthru
      _
    // Predicated region
    $region34: #{vqvae_forward.16} parent=1 // pred_check
      _
    $region35: #{vqvae_forward.16} parent=1 // pred_check_branch
      %542 = sbr.rel (0) target = $region37
    $region36: #{vqvae_forward.16} parent=1 // pred_region
      _
    $region37: #{vqvae_forward.16} parent=1 // pred_fallthru
      _
    // Predicated region
    $region38: #{vqvae_forward.16} parent=1 // pred_check
      _
    $region39: #{vqvae_forward.16} parent=1 // pred_check_branch
      %544 = sbr.rel (0) target = $region41
    $region40: #{vqvae_forward.16} parent=1 // pred_region
      %s546 = ssub.s32 16, 16
      %547 = vsyncadd [#allocation5], %s546
      %s549 = sshll.u32 [#allocation4], 4
      %s550 = int_to_ptr.vmem [resolvable:$true] %s549
      %552 = dma.vmem_to_hbm [thread:$0]  %s550, 16, %s7, [#allocation5]
    $region41: #{vqvae_forward.16} parent=1 // pred_fallthru
      _
    // Predicated region
    $region42: #{vqvae_forward.16} parent=1 // pred_check
      _
    $region43: #{vqvae_forward.16} parent=1 // pred_check_branch
      %554 = sbr.rel (0) target = $region45
    $region44: #{vqvae_forward.16} parent=1 // pred_region
      %s556 = ssub.s32 16, 16
      %557 = vsyncadd [#allocation7], %s556
      %s559 = sshll.u32 [#allocation6], 4
      %s560 = int_to_ptr.vmem [resolvable:$true] %s559
      %562 = dma.vmem_to_hbm [thread:$0]  %s560, 16, %s8, [#allocation7]
    $region45: #{vqvae_forward.16} parent=1 // pred_fallthru
      _
    // Predicated region
    $region46: #{vqvae_forward.16} parent=1 // pred_check
      _
    $region47: #{vqvae_forward.16} parent=1 // pred_check_branch
      %564 = sbr.rel (0) target = $region49
    $region48: #{vqvae_forward.16} parent=1 // pred_region
      _
    $region49: #{vqvae_forward.16} parent=1 // pred_fallthru
      _
    // Predicated region
    $region50: #{vqvae_forward.16} parent=1 // pred_check
      _
    $region51: #{vqvae_forward.16} parent=1 // pred_check_branch
      %566 = sbr.rel (0) target = $region53
    $region52: #{vqvae_forward.16} parent=1 // pred_region
      %567 = dma.done [#allocation5], 16
    $region53: #{vqvae_forward.16} parent=1 // pred_fallthru
      _
    // Predicated region
    $region54: #{vqvae_forward.16} parent=1 // pred_check
      _
    $region55: #{vqvae_forward.16} parent=1 // pred_check_branch
      %569 = sbr.rel (0) target = $region57
    $region56: #{vqvae_forward.16} parent=1 // pred_region
      %570 = dma.done [#allocation7], 16
    $region57: #{vqvae_forward.16} parent=1 // pred_fallthru
      _
    %571 = vsyncpa [#allocation5], 1
    %572 = vsyncpa [#allocation7], 1

// kernel: vqvae_forward.17
$region0: #{vqvae_forward.17}
  #allocation0 [shape = 'u32[]', space=smem, size = 0x4, offset = 0x4, fixed_abs, tag = 'smem constant byte address 0x4 - core index']
  #allocation1 [shape = 'u32[144,128]{1,0:T(1,128)}', space=vmem, size = 0x12000, scoped, tag = 'internal scratch']
  %s0 = inlined_call_operand.vmem [shape: bf16[32,144], index: 0, kind: input, shape index: {}]
  %s1 = inlined_call_operand.vmem [shape: bf16[144,32], index: 1, kind: input, shape index: {}]
  %s2 = inlined_call_operand.vmem [shape: f32[1,32], index: 2, kind: input, shape index: {}]
  %s3 = inlined_call_operand.vmem [shape: bf16[32,32], index: 3, kind: output, shape index: {}]
  %s4 = sld [smem:[#allocation0]]
  $region22: #{vqvae_forward.17} parent=0
    _
  %s6 = ssub.s32 1, %s4
  %s7 = scalar_select 0, %s6, %s4
  // Predicated region
  $region2: #{vqvae_forward.17} parent=0 // pred_check
    _
  $region3: #{vqvae_forward.17} parent=0 // pred_check_branch
    %9 = sbr.rel (0) target = $region5
  $region4: #{vqvae_forward.17} parent=0 // pred_region
    _
  $region5: #{vqvae_forward.17} parent=0 // pred_fallthru
    _
  // Predicated region
  $region6: #{vqvae_forward.17} parent=0 // pred_check
    _
  $region7: #{vqvae_forward.17} parent=0 // pred_check_branch
    %11 = sbr.rel (0) target = $region9
  $region8: #{vqvae_forward.17} parent=0 // pred_region
    _
  $region9: #{vqvae_forward.17} parent=0 // pred_fallthru
    _
  // Predicated region
  $region10: #{vqvae_forward.17} parent=0 // pred_check
    _
  $region11: #{vqvae_forward.17} parent=0 // pred_check_branch
    %13 = sbr.rel (0) target = $region13
  $region12: #{vqvae_forward.17} parent=0 // pred_region
    _
  $region13: #{vqvae_forward.17} parent=0 // pred_fallthru
    _
  %v15 = vld [vmem:[%s0] sm:$0xff]
  %v16 = vld [vmem:[%s0 + $0x8] sm:$0xff]
  %v17 = vld [vmem:[%s0 + $0x10] sm:$0xff]
  %v18 = vld [vmem:[%s0 + $0x18] sm:$0xff]
  %v19 = vld [vmem:[%s1] sm:$0xf]
  %v20 = vld [vmem:[%s1 + $0x4] sm:$0xf]
  %v21 = vld [vmem:[%s1 + $0x8] sm:$0xf]
  %v22 = vld [vmem:[%s1 + $0xc] sm:$0xf]
  %v23 = vld [vmem:[%s1 + $0x10] sm:$0xf]
  %v24 = vld [vmem:[%s1 + $0x14] sm:$0xf]
  %v25 = vld [vmem:[%s1 + $0x18] sm:$0xf]
  %v26 = vld [vmem:[%s1 + $0x1c] sm:$0xf]
  %v27 = vld [vmem:[%s1 + $0x20] sm:$0xf]
  %v28 = vld [vmem:[%s1 + $0x24] sm:$0xf]
  %v29 = vld [vmem:[%s1 + $0x28] sm:$0xf]
  %v30 = vld [vmem:[%s1 + $0x2c] sm:$0xf]
  %v31 = vld [vmem:[%s1 + $0x30] sm:$0xf]
  %v32 = vld [vmem:[%s1 + $0x34] sm:$0xf]
  %v33 = vld [vmem:[%s1 + $0x38] sm:$0xf]
  %v34 = vld [vmem:[%s1 + $0x3c] sm:$0xf]
  %v35 = vld [vmem:[%s1 + $0x40] sm:$0xf]
  %v36 = vld [vmem:[%s1 + $0x44] sm:$0xf]
  %v37 = vld [vmem:[%s2] sm:$0x1]
  %v39 = vlaneseq
  %v40 = vshrl.u32 %v39, 7
  %v41 = vsub.s32 0, %v40
  %v42 = vrot.slane %v37, %v41
  %v48 = vunpack.c.l.b16 %v15
  %v49 = vunpack.c.h.b16 %v15
  %v50 = vunpack.c.l.b16 %v16
  %v51 = vunpack.c.h.b16 %v16
  %v52 = vunpack.c.l.b16 %v17
  %v53 = vunpack.c.h.b16 %v17
  %v54 = vunpack.c.l.b16 %v18
  %v55 = vunpack.c.h.b16 %v18
  %v56 = vpack.c.b16 %v50, %v48
  %v57 = vpack.c.b16 %v51, %v49
  %v58 = vpack.c.b16 %v54, %v52
  %v59 = vpack.c.b16 %v55, %v53
  %v80 = vunpack.c.l.b16 %v19
  %v81 = vunpack.c.l.b16 %v20
  %v82 = vunpack.c.l.b16 %v21
  %v83 = vunpack.c.l.b16 %v22
  %v84 = vunpack.c.l.b16 %v23
  %v85 = vunpack.c.l.b16 %v24
  %v86 = vunpack.c.l.b16 %v25
  %v87 = vunpack.c.l.b16 %v26
  %v88 = vunpack.c.l.b16 %v27
  %v89 = vunpack.c.l.b16 %v28
  %v90 = vunpack.c.l.b16 %v29
  %v91 = vunpack.c.l.b16 %v30
  %v92 = vunpack.c.l.b16 %v31
  %v93 = vunpack.c.l.b16 %v32
  %v94 = vunpack.c.l.b16 %v33
  %v95 = vunpack.c.l.b16 %v34
  %v96 = vunpack.c.l.b16 %v35
  %v97 = vunpack.c.l.b16 %v36
  %v98 = vpack.c.b16 %v81, %v80
  %v99 = vpack.c.b16 %v83, %v82
  %v100 = vpack.c.b16 %v85, %v84
  %v101 = vpack.c.b16 %v87, %v86
  %v102 = vpack.c.b16 %v89, %v88
  %v103 = vpack.c.b16 %v91, %v90
  %v104 = vpack.c.b16 %v93, %v92
  %v105 = vpack.c.b16 %v95, %v94
  %v106 = vpack.c.b16 %v97, %v96
  %vm116 = vcmask 130048
  %v118 = vsel %vm116, %v57, 0
  %v121 = vsel %vm116, %v59, 0
  %123 = vmatprep.subr.bf16.mxu0 0
  %124 = vmatpush1.bf16.msra.mxu0 %v98
  %125 = vmatprep.subr.bf16.mxu0 0
  %126 = vmatpush1.bf16.msra.mxu0 %v99
  %127 = vmatprep.subr.bf16.mxu0 0
  %128 = vmatpush1.bf16.msra.mxu0 %v100
  %129 = vmatprep.subr.bf16.mxu0 0
  %130 = vmatpush1.bf16.msra.mxu0 %v101
  %131 = vmatprep.subr.bf16.mxu0 0
  %132 = vmatpush1.bf16.msra.mxu0 %v102
  %133 = vmatprep.subr.bf16.mxu0 0
  %134 = vmatpush1.bf16.msra.mxu0 %v103
  %135 = vmatprep.subr.bf16.mxu0 0
  %136 = vmatpush1.bf16.msra.mxu0 %v104
  %137 = vmatprep.subr.bf16.mxu0 0
  %138 = vmatpush1.bf16.msra.mxu0 %v105
  %139 = vmatprep.subr.bf16.mxu0 0
  %140 = vmatpush1.bf16.msra.mxu0 %v106
  %141 = vmatprep.subr.bf16.mxu0 0
  %142 = vmatpush1.bf16.msra.mxu0 0
  %143 = vmatprep.subr.bf16.mxu0 0
  %144 = vmatpush1.bf16.msra.mxu0 0
  %145 = vmatprep.subr.bf16.mxu0 0
  %146 = vmatpush1.bf16.msra.mxu0 0
  %147 = vmatprep.subr.bf16.mxu0 0
  %148 = vmatpush1.bf16.msra.mxu0 0
  %149 = vmatprep.subr.bf16.mxu0 0
  %150 = vmatpush1.bf16.msra.mxu0 0
  %151 = vmatprep.subr.bf16.mxu0 0
  %152 = vmatpush1.bf16.msra.mxu0 0
  %153 = vmatprep.subr.bf16.mxu0 0
  %154 = vmatpush1.bf16.msra.mxu0 0
  %155 = vmatprep.mubr.bf16.mxu0 %v118
  %156 = vmatmul.mubr.bf16.gmra.mrb[0].mxu0 %v56
  %v157 = vpop.f32.mrb[0].mxu0
  %v158 = vadd.f32 %v42, %v157
  %v159 = vpop.f32.mrb[0].mxu0
  %v160 = vpop.f32.mrb[0].mxu0
  %v161 = vadd.f32 %v42, %v160
  %v162 = vpop.f32.mrb[0].mxu0
  %163 = vmatprep.mubr.bf16.mxu0 %v121
  %164 = vmatmul.mubr.bf16.gmra.mrb[0].mxu0 %v58
  %v165 = vpop.f32.mrb[0].mxu0
  %v166 = vadd.f32 %v42, %v165
  %v167 = vpop.f32.mrb[0].mxu0
  %v168 = vpop.f32.mrb[0].mxu0
  %v169 = vadd.f32 %v42, %v168
  %v170 = vpop.f32.mrb[0].mxu0
  %171 = vdwg.mxu0
  %v172 = vpack.c.bf16 %v161, %v158
  %v173 = vpack.c.bf16 %v169, %v166
  %v176 = vunpack.c.l.b16 %v172
  %v177 = vunpack.c.h.b16 %v172
  %v178 = vunpack.c.l.b16 %v173
  %v179 = vunpack.c.h.b16 %v173
  %v180 = vpack.c.b16 %v176, %v176
  %v181 = vpack.c.b16 %v177, %v177
  %v182 = vpack.c.b16 %v178, %v178
  %v183 = vpack.c.b16 %v179, %v179
  %vm188 = vcmask 257024
  %189 = vst.msk [vmem:[%s3] sm:$0xf] %vm188, %v180
  %190 = vst.msk [vmem:[%s3 + $0x4] sm:$0xf] %vm188, %v181
  %191 = vst.msk [vmem:[%s3 + $0x8] sm:$0xf] %vm188, %v182
  %192 = vst.msk [vmem:[%s3 + $0xc] sm:$0xf] %vm188, %v183
  // Predicated region
  $region14: #{vqvae_forward.17} parent=0 // pred_check
    _
  $region15: #{vqvae_forward.17} parent=0 // pred_check_branch
    %194 = sbr.rel (0) target = $region17
  $region16: #{vqvae_forward.17} parent=0 // pred_region
    _
  $region17: #{vqvae_forward.17} parent=0 // pred_fallthru
    _
  // Predicated region
  $region18: #{vqvae_forward.17} parent=0 // pred_check
    _
  $region19: #{vqvae_forward.17} parent=0 // pred_check_branch
    %196 = sbr.rel (0) target = $region21
  $region20: #{vqvae_forward.17} parent=0 // pred_region
    _
  $region21: #{vqvae_forward.17} parent=0 // pred_fallthru
    _

// kernel: vqvae_forward.20
$region0: #{vqvae_forward.20}
  #allocation0 [shape = 'u32[]', space=smem, size = 0x4, offset = 0x4, fixed_abs, tag = 'smem constant byte address 0x4 - core index']
  #allocation1 [shape = 'u32[144,128]{1,0:T(1,128)}', space=vmem, size = 0x12000, scoped, tag = 'internal scratch']
  %s0 = inlined_call_operand.vmem [shape: bf16[32,288], index: 0, kind: input, shape index: {}]
  %s1 = inlined_call_operand.vmem [shape: bf16[288,64], index: 1, kind: input, shape index: {}]
  %s2 = inlined_call_operand.vmem [shape: f32[1,64], index: 2, kind: input, shape index: {}]
  %s3 = inlined_call_operand.vmem [shape: bf16[32,64], index: 3, kind: output, shape index: {}]
  %s4 = sld [smem:[#allocation0]]
  $region22: #{vqvae_forward.20} parent=0
    _
  %s6 = ssub.s32 1, %s4
  %s7 = scalar_select 0, %s6, %s4
  // Predicated region
  $region2: #{vqvae_forward.20} parent=0 // pred_check
    _
  $region3: #{vqvae_forward.20} parent=0 // pred_check_branch
    %9 = sbr.rel (0) target = $region5
  $region4: #{vqvae_forward.20} parent=0 // pred_region
    _
  $region5: #{vqvae_forward.20} parent=0 // pred_fallthru
    _
  // Predicated region
  $region6: #{vqvae_forward.20} parent=0 // pred_check
    _
  $region7: #{vqvae_forward.20} parent=0 // pred_check_branch
    %11 = sbr.rel (0) target = $region9
  $region8: #{vqvae_forward.20} parent=0 // pred_region
    _
  $region9: #{vqvae_forward.20} parent=0 // pred_fallthru
    _
  // Predicated region
  $region10: #{vqvae_forward.20} parent=0 // pred_check
    _
  $region11: #{vqvae_forward.20} parent=0 // pred_check_branch
    %13 = sbr.rel (0) target = $region13
  $region12: #{vqvae_forward.20} parent=0 // pred_region
    _
  $region13: #{vqvae_forward.20} parent=0 // pred_fallthru
    _
  %v15 = vld [vmem:[%s0] sm:$0xff]
  %v16 = vld [vmem:[%s0 + $0x8] sm:$0xf]
  %v17 = vld [vmem:[%s0 + $0xc] sm:$0xff]
  %v18 = vld [vmem:[%s0 + $0x14] sm:$0xf]
  %v19 = vld [vmem:[%s0 + $0x18] sm:$0xff]
  %v20 = vld [vmem:[%s0 + $0x20] sm:$0xf]
  %v21 = vld [vmem:[%s0 + $0x24] sm:$0xff]
  %v22 = vld [vmem:[%s0 + $0x2c] sm:$0xf]
  %v23 = vmax.bf16 %v15, 0
  %v24 = vmax.bf16 %v16, 0
  %v25 = vmax.bf16 %v17, 0
  %v26 = vmax.bf16 %v18, 0
  %v27 = vmax.bf16 %v19, 0
  %v28 = vmax.bf16 %v20, 0
  %v29 = vmax.bf16 %v21, 0
  %v30 = vmax.bf16 %v22, 0
  %v31 = vld [vmem:[%s1] sm:$0xf]
  %v32 = vld [vmem:[%s1 + $0x4] sm:$0xf]
  %v33 = vld [vmem:[%s1 + $0x8] sm:$0xf]
  %v34 = vld [vmem:[%s1 + $0xc] sm:$0xf]
  %v35 = vld [vmem:[%s1 + $0x10] sm:$0xf]
  %v36 = vld [vmem:[%s1 + $0x14] sm:$0xf]
  %v37 = vld [vmem:[%s1 + $0x18] sm:$0xf]
  %v38 = vld [vmem:[%s1 + $0x1c] sm:$0xf]
  %v39 = vld [vmem:[%s1 + $0x20] sm:$0xf]
  %v40 = vld [vmem:[%s1 + $0x24] sm:$0xf]
  %v41 = vld [vmem:[%s1 + $0x28] sm:$0xf]
  %v42 = vld [vmem:[%s1 + $0x2c] sm:$0xf]
  %v43 = vld [vmem:[%s1 + $0x30] sm:$0xf]
  %v44 = vld [vmem:[%s1 + $0x34] sm:$0xf]
  %v45 = vld [vmem:[%s1 + $0x38] sm:$0xf]
  %v46 = vld [vmem:[%s1 + $0x3c] sm:$0xf]
  %v47 = vld [vmem:[%s1 + $0x40] sm:$0xf]
  %v48 = vld [vmem:[%s1 + $0x44] sm:$0xf]
  %v49 = vld [vmem:[%s1 + $0x48] sm:$0xf]
  %v50 = vld [vmem:[%s1 + $0x4c] sm:$0xf]
  %v51 = vld [vmem:[%s1 + $0x50] sm:$0xf]
  %v52 = vld [vmem:[%s1 + $0x54] sm:$0xf]
  %v53 = vld [vmem:[%s1 + $0x58] sm:$0xf]
  %v54 = vld [vmem:[%s1 + $0x5c] sm:$0xf]
  %v55 = vld [vmem:[%s1 + $0x60] sm:$0xf]
  %v56 = vld [vmem:[%s1 + $0x64] sm:$0xf]
  %v57 = vld [vmem:[%s1 + $0x68] sm:$0xf]
  %v58 = vld [vmem:[%s1 + $0x6c] sm:$0xf]
  %v59 = vld [vmem:[%s1 + $0x70] sm:$0xf]
  %v60 = vld [vmem:[%s1 + $0x74] sm:$0xf]
  %v61 = vld [vmem:[%s1 + $0x78] sm:$0xf]
  %v62 = vld [vmem:[%s1 + $0x7c] sm:$0xf]
  %v63 = vld [vmem:[%s1 + $0x80] sm:$0xf]
  %v64 = vld [vmem:[%s1 + $0x84] sm:$0xf]
  %v65 = vld [vmem:[%s1 + $0x88] sm:$0xf]
  %v66 = vld [vmem:[%s1 + $0x8c] sm:$0xf]
  %v67 = vld [vmem:[%s2] sm:$0x1]
  %v69 = vlaneseq
  %v70 = vshrl.u32 %v69, 7
  %v71 = vsub.s32 0, %v70
  %v72 = vrot.slane %v67, %v71
  %v82 = vunpack.c.l.b16 %v23
  %v83 = vunpack.c.h.b16 %v23
  %v84 = vunpack.c.l.b16 %v24
  %v85 = vunpack.c.l.b16 %v25
  %v86 = vunpack.c.h.b16 %v25
  %v87 = vunpack.c.l.b16 %v26
  %v88 = vunpack.c.l.b16 %v27
  %v89 = vunpack.c.h.b16 %v27
  %v90 = vunpack.c.l.b16 %v28
  %v91 = vunpack.c.l.b16 %v29
  %v92 = vunpack.c.h.b16 %v29
  %v93 = vunpack.c.l.b16 %v30
  %v94 = vpack.c.b16 %v85, %v82
  %v95 = vpack.c.b16 %v86, %v83
  %v96 = vpack.c.b16 %v87, %v84
  %v97 = vpack.c.b16 %v91, %v88
  %v98 = vpack.c.b16 %v92, %v89
  %v99 = vpack.c.b16 %v93, %v90
  %v140 = vunpack.c.l.b16 %v31
  %v141 = vunpack.c.l.b16 %v32
  %v142 = vunpack.c.l.b16 %v33
  %v143 = vunpack.c.l.b16 %v34
  %v144 = vunpack.c.l.b16 %v35
  %v145 = vunpack.c.l.b16 %v36
  %v146 = vunpack.c.l.b16 %v37
  %v147 = vunpack.c.l.b16 %v38
  %v148 = vunpack.c.l.b16 %v39
  %v149 = vunpack.c.l.b16 %v40
  %v150 = vunpack.c.l.b16 %v41
  %v151 = vunpack.c.l.b16 %v42
  %v152 = vunpack.c.l.b16 %v43
  %v153 = vunpack.c.l.b16 %v44
  %v154 = vunpack.c.l.b16 %v45
  %v155 = vunpack.c.l.b16 %v46
  %v156 = vunpack.c.l.b16 %v47
  %v157 = vunpack.c.l.b16 %v48
  %v158 = vunpack.c.l.b16 %v49
  %v159 = vunpack.c.l.b16 %v50
  %v160 = vunpack.c.l.b16 %v51
  %v161 = vunpack.c.l.b16 %v52
  %v162 = vunpack.c.l.b16 %v53
  %v163 = vunpack.c.l.b16 %v54
  %v164 = vunpack.c.l.b16 %v55
  %v165 = vunpack.c.l.b16 %v56
  %v166 = vunpack.c.l.b16 %v57
  %v167 = vunpack.c.l.b16 %v58
  %v168 = vunpack.c.l.b16 %v59
  %v169 = vunpack.c.l.b16 %v60
  %v170 = vunpack.c.l.b16 %v61
  %v171 = vunpack.c.l.b16 %v62
  %v172 = vunpack.c.l.b16 %v63
  %v173 = vunpack.c.l.b16 %v64
  %v174 = vunpack.c.l.b16 %v65
  %v175 = vunpack.c.l.b16 %v66
  %v176 = vpack.c.b16 %v141, %v140
  %v177 = vpack.c.b16 %v143, %v142
  %v178 = vpack.c.b16 %v145, %v144
  %v179 = vpack.c.b16 %v147, %v146
  %v180 = vpack.c.b16 %v149, %v148
  %v181 = vpack.c.b16 %v151, %v150
  %v182 = vpack.c.b16 %v153, %v152
  %v183 = vpack.c.b16 %v155, %v154
  %v184 = vpack.c.b16 %v157, %v156
  %v185 = vpack.c.b16 %v159, %v158
  %v186 = vpack.c.b16 %v161, %v160
  %v187 = vpack.c.b16 %v163, %v162
  %v188 = vpack.c.b16 %v165, %v164
  %v189 = vpack.c.b16 %v167, %v166
  %v190 = vpack.c.b16 %v169, %v168
  %v191 = vpack.c.b16 %v171, %v170
  %v192 = vpack.c.b16 %v173, %v172
  %v193 = vpack.c.b16 %v175, %v174
  %vm212 = vcmask 261120
  %v214 = vsel %vm212, %v96, 0
  %v217 = vsel %vm212, %v99, 0
  %219 = vmatprep.subr.bf16.mxu0 0
  %220 = vmatpush1.bf16.msra.mxu0 %v176
  %221 = vmatprep.subr.bf16.mxu0 0
  %222 = vmatpush1.bf16.msra.mxu0 %v177
  %223 = vmatprep.subr.bf16.mxu0 0
  %224 = vmatpush1.bf16.msra.mxu0 %v178
  %225 = vmatprep.subr.bf16.mxu0 0
  %226 = vmatpush1.bf16.msra.mxu0 %v179
  %227 = vmatprep.subr.bf16.mxu0 0
  %228 = vmatpush1.bf16.msra.mxu0 %v180
  %229 = vmatprep.subr.bf16.mxu0 0
  %230 = vmatpush1.bf16.msra.mxu0 %v181
  %231 = vmatprep.subr.bf16.mxu0 0
  %232 = vmatpush1.bf16.msra.mxu0 %v182
  %233 = vmatprep.subr.bf16.mxu0 0
  %234 = vmatpush1.bf16.msra.mxu0 %v183
  %235 = vmatprep.subr.bf16.mxu0 0
  %236 = vmatpush1.bf16.msra.mxu0 %v184
  %237 = vmatprep.subr.bf16.mxu0 0
  %238 = vmatpush1.bf16.msra.mxu0 %v185
  %239 = vmatprep.subr.bf16.mxu0 0
  %240 = vmatpush1.bf16.msra.mxu0 %v186
  %241 = vmatprep.subr.bf16.mxu0 0
  %242 = vmatpush1.bf16.msra.mxu0 %v187
  %243 = vmatprep.subr.bf16.mxu0 0
  %244 = vmatpush1.bf16.msra.mxu0 %v188
  %245 = vmatprep.subr.bf16.mxu0 0
  %246 = vmatpush1.bf16.msra.mxu0 %v189
  %247 = vmatprep.subr.bf16.mxu0 0
  %248 = vmatpush1.bf16.msra.mxu0 %v190
  %249 = vmatprep.subr.bf16.mxu0 0
  %250 = vmatpush1.bf16.msra.mxu0 %v191
  %251 = vmatprep.mubr.bf16.mxu0 %v95
  %252 = vmatmul.mubr.bf16.gmra.mrb[0].mxu0 %v94
  %v253 = vpop.f32.mrb[0].mxu0
  %v254 = vadd.f32 %v72, %v253
  %v255 = vpop.f32.mrb[0].mxu0
  %v256 = vpop.f32.mrb[0].mxu0
  %v257 = vadd.f32 %v72, %v256
  %v258 = vpop.f32.mrb[0].mxu0
  %259 = vmatprep.mubr.bf16.mxu0 %v98
  %260 = vmatmul.mubr.bf16.gmra.mrb[0].mxu0 %v97
  %v261 = vpop.f32.mrb[0].mxu0
  %v262 = vadd.f32 %v72, %v261
  %v263 = vpop.f32.mrb[0].mxu0
  %v264 = vpop.f32.mrb[0].mxu0
  %v265 = vadd.f32 %v72, %v264
  %v266 = vpop.f32.mrb[0].mxu0
  %267 = vdwg.mxu0
  %268 = vmatprep.subr.bf16.mxu0 0
  %269 = vmatpush1.bf16.msra.mxu0 %v192
  %270 = vmatprep.subr.bf16.mxu0 0
  %271 = vmatpush1.bf16.msra.mxu0 %v193
  %272 = vmatprep.subr.bf16.mxu0 0
  %273 = vmatpush1.bf16.msra.mxu0 0
  %274 = vmatprep.subr.bf16.mxu0 0
  %275 = vmatpush1.bf16.msra.mxu0 0
  %276 = vmatprep.subr.bf16.mxu0 0
  %277 = vmatpush1.bf16.msra.mxu0 0
  %278 = vmatprep.subr.bf16.mxu0 0
  %279 = vmatpush1.bf16.msra.mxu0 0
  %280 = vmatprep.subr.bf16.mxu0 0
  %281 = vmatpush1.bf16.msra.mxu0 0
  %282 = vmatprep.subr.bf16.mxu0 0
  %283 = vmatpush1.bf16.msra.mxu0 0
  %284 = vmatprep.subr.bf16.mxu0 0
  %285 = vmatpush1.bf16.msra.mxu0 0
  %286 = vmatprep.subr.bf16.mxu0 0
  %287 = vmatpush1.bf16.msra.mxu0 0
  %288 = vmatprep.subr.bf16.mxu0 0
  %289 = vmatpush1.bf16.msra.mxu0 0
  %290 = vmatprep.subr.bf16.mxu0 0
  %291 = vmatpush1.bf16.msra.mxu0 0
  %292 = vmatprep.subr.bf16.mxu0 0
  %293 = vmatpush1.bf16.msra.mxu0 0
  %294 = vmatprep.subr.bf16.mxu0 0
  %295 = vmatpush1.bf16.msra.mxu0 0
  %296 = vmatprep.subr.bf16.mxu0 0
  %297 = vmatpush1.bf16.msra.mxu0 0
  %298 = vmatprep.subr.bf16.mxu0 0
  %299 = vmatpush1.bf16.msra.mxu0 0
  %300 = vmatprep.mubr.bf16.mxu0 0
  %301 = vmatmul.mubr.bf16.gmra.mrb[0].mxu0 %v214
  %v302 = vpop.f32.mrb[0].mxu0
  %v303 = vadd.f32 %v254, %v302
  %v304 = vpop.f32.mrb[0].mxu0
  %v305 = vpop.f32.mrb[0].mxu0
  %v306 = vadd.f32 %v257, %v305
  %v307 = vpop.f32.mrb[0].mxu0
  %308 = vmatprep.mubr.bf16.mxu0 0
  %309 = vmatmul.mubr.bf16.gmra.mrb[0].mxu0 %v217
  %v310 = vpop.f32.mrb[0].mxu0
  %v311 = vadd.f32 %v262, %v310
  %v312 = vpop.f32.mrb[0].mxu0
  %v313 = vpop.f32.mrb[0].mxu0
  %v314 = vadd.f32 %v265, %v313
  %v315 = vpop.f32.mrb[0].mxu0
  %316 = vdwg.mxu0
  %v317 = vmax.f32 %v303, 0.0
  %v318 = vmax.f32 %v306, 0.0
  %v319 = vmax.f32 %v311, 0.0
  %v320 = vmax.f32 %v314, 0.0
  %v321 = vpack.c.bf16 %v318, %v317
  %v322 = vpack.c.bf16 %v320, %v319
  %v325 = vunpack.c.l.b16 %v321
  %v326 = vunpack.c.h.b16 %v321
  %v327 = vunpack.c.l.b16 %v322
  %v328 = vunpack.c.h.b16 %v322
  %v329 = vpack.c.b16 %v325, %v325
  %v330 = vpack.c.b16 %v326, %v326
  %v331 = vpack.c.b16 %v327, %v327
  %v332 = vpack.c.b16 %v328, %v328
  %vm337 = vcmask 519168
  %338 = vst.msk [vmem:[%s3] sm:$0xf] %vm337, %v329
  %339 = vst.msk [vmem:[%s3 + $0x4] sm:$0xf] %vm337, %v330
  %340 = vst.msk [vmem:[%s3 + $0x8] sm:$0xf] %vm337, %v331
  %341 = vst.msk [vmem:[%s3 + $0xc] sm:$0xf] %vm337, %v332
  // Predicated region
  $region14: #{vqvae_forward.20} parent=0 // pred_check
    _
  $region15: #{vqvae_forward.20} parent=0 // pred_check_branch
    %343 = sbr.rel (0) target = $region17
  $region16: #{vqvae_forward.20} parent=0 // pred_region
    _
  $region17: #{vqvae_forward.20} parent=0 // pred_fallthru
    _
  // Predicated region
  $region18: #{vqvae_forward.20} parent=0 // pred_check
    _
  $region19: #{vqvae_forward.20} parent=0 // pred_check_branch
    %345 = sbr.rel (0) target = $region21
  $region20: #{vqvae_forward.20} parent=0 // pred_region
    _
  $region21: #{vqvae_forward.20} parent=0 // pred_fallthru
    _

// kernel: vqvae_forward.21
$region0: #{vqvae_forward.21}
  #allocation0 [shape = 'u32[]', space=smem, size = 0x4, offset = 0x4, fixed_abs, tag = 'smem constant byte address 0x4 - core index']
  #allocation1 [shape = 'u32[144,128]{1,0:T(1,128)}', space=vmem, size = 0x12000, scoped, tag = 'internal scratch']
  %s0 = inlined_call_operand.vmem [shape: bf16[128,144], index: 0, kind: input, shape index: {}]
  %s1 = inlined_call_operand.vmem [shape: bf16[144,12], index: 1, kind: input, shape index: {}]
  %s2 = inlined_call_operand.vmem [shape: f32[1,12], index: 2, kind: input, shape index: {}]
  %s3 = inlined_call_operand.vmem [shape: f32[128,12], index: 3, kind: output, shape index: {}]
  %s4 = sld [smem:[#allocation0]]
  $region22: #{vqvae_forward.21} parent=0
    _
  %s6 = ssub.s32 1, %s4
  %s7 = scalar_select 0, %s6, %s4
  // Predicated region
  $region2: #{vqvae_forward.21} parent=0 // pred_check
    _
  $region3: #{vqvae_forward.21} parent=0 // pred_check_branch
    %9 = sbr.rel (0) target = $region5
  $region4: #{vqvae_forward.21} parent=0 // pred_region
    _
  $region5: #{vqvae_forward.21} parent=0 // pred_fallthru
    _
  // Predicated region
  $region6: #{vqvae_forward.21} parent=0 // pred_check
    _
  $region7: #{vqvae_forward.21} parent=0 // pred_check_branch
    %11 = sbr.rel (0) target = $region9
  $region8: #{vqvae_forward.21} parent=0 // pred_region
    _
  $region9: #{vqvae_forward.21} parent=0 // pred_fallthru
    _
  // Predicated region
  $region10: #{vqvae_forward.21} parent=0 // pred_check
    _
  $region11: #{vqvae_forward.21} parent=0 // pred_check_branch
    %13 = sbr.rel (0) target = $region13
  $region12: #{vqvae_forward.21} parent=0 // pred_region
    _
  $region13: #{vqvae_forward.21} parent=0 // pred_fallthru
    _
  %v15 = vld [vmem:[%s0] sm:$0xff]
  %v16 = vld [vmem:[%s0 + $0x8] sm:$0xff]
  %v17 = vld [vmem:[%s0 + $0x10] sm:$0xff]
  %v18 = vld [vmem:[%s0 + $0x18] sm:$0xff]
  %v19 = vld [vmem:[%s0 + $0x20] sm:$0xff]
  %v20 = vld [vmem:[%s0 + $0x28] sm:$0xff]
  %v21 = vld [vmem:[%s0 + $0x30] sm:$0xff]
  %v22 = vld [vmem:[%s0 + $0x38] sm:$0xff]
  %v23 = vld [vmem:[%s0 + $0x40] sm:$0xff]
  %v24 = vld [vmem:[%s0 + $0x48] sm:$0xff]
  %v25 = vld [vmem:[%s0 + $0x50] sm:$0xff]
  %v26 = vld [vmem:[%s0 + $0x58] sm:$0xff]
  %v27 = vld [vmem:[%s0 + $0x60] sm:$0xff]
  %v28 = vld [vmem:[%s0 + $0x68] sm:$0xff]
  %v29 = vld [vmem:[%s0 + $0x70] sm:$0xff]
  %v30 = vld [vmem:[%s0 + $0x78] sm:$0xff]
  %v31 = vld [vmem:[%s1] sm:$0xf]
  %v32 = vld [vmem:[%s1 + $0x4] sm:$0xf]
  %v33 = vld [vmem:[%s1 + $0x8] sm:$0xf]
  %v34 = vld [vmem:[%s1 + $0xc] sm:$0xf]
  %v35 = vld [vmem:[%s1 + $0x10] sm:$0xf]
  %v36 = vld [vmem:[%s1 + $0x14] sm:$0xf]
  %v37 = vld [vmem:[%s1 + $0x18] sm:$0xf]
  %v38 = vld [vmem:[%s1 + $0x1c] sm:$0xf]
  %v39 = vld [vmem:[%s1 + $0x20] sm:$0xf]
  %v40 = vld [vmem:[%s1 + $0x24] sm:$0xf]
  %v41 = vld [vmem:[%s1 + $0x28] sm:$0xf]
  %v42 = vld [vmem:[%s1 + $0x2c] sm:$0xf]
  %v43 = vld [vmem:[%s1 + $0x30] sm:$0xf]
  %v44 = vld [vmem:[%s1 + $0x34] sm:$0xf]
  %v45 = vld [vmem:[%s1 + $0x38] sm:$0xf]
  %v46 = vld [vmem:[%s1 + $0x3c] sm:$0xf]
  %v47 = vld [vmem:[%s1 + $0x40] sm:$0xf]
  %v48 = vld [vmem:[%s1 + $0x44] sm:$0xf]
  %v49 = vld [vmem:[%s2] sm:$0x1]
  %v51 = vlaneseq
  %v52 = vshrl.u32 %v51, 7
  %v53 = vsub.s32 0, %v52
  %v54 = vrot.slane %v49, %v53
  %v72 = vunpack.c.l.b16 %v15
  %v73 = vunpack.c.h.b16 %v15
  %v74 = vunpack.c.l.b16 %v16
  %v75 = vunpack.c.h.b16 %v16
  %v76 = vunpack.c.l.b16 %v17
  %v77 = vunpack.c.h.b16 %v17
  %v78 = vunpack.c.l.b16 %v18
  %v79 = vunpack.c.h.b16 %v18
  %v80 = vunpack.c.l.b16 %v19
  %v81 = vunpack.c.h.b16 %v19
  %v82 = vunpack.c.l.b16 %v20
  %v83 = vunpack.c.h.b16 %v20
  %v84 = vunpack.c.l.b16 %v21
  %v85 = vunpack.c.h.b16 %v21
  %v86 = vunpack.c.l.b16 %v22
  %v87 = vunpack.c.h.b16 %v22
  %v88 = vunpack.c.l.b16 %v23
  %v89 = vunpack.c.h.b16 %v23
  %v90 = vunpack.c.l.b16 %v24
  %v91 = vunpack.c.h.b16 %v24
  %v92 = vunpack.c.l.b16 %v25
  %v93 = vunpack.c.h.b16 %v25
  %v94 = vunpack.c.l.b16 %v26
  %v95 = vunpack.c.h.b16 %v26
  %v96 = vunpack.c.l.b16 %v27
  %v97 = vunpack.c.h.b16 %v27
  %v98 = vunpack.c.l.b16 %v28
  %v99 = vunpack.c.h.b16 %v28
  %v100 = vunpack.c.l.b16 %v29
  %v101 = vunpack.c.h.b16 %v29
  %v102 = vunpack.c.l.b16 %v30
  %v103 = vunpack.c.h.b16 %v30
  %v104 = vpack.c.b16 %v74, %v72
  %v105 = vpack.c.b16 %v75, %v73
  %v106 = vpack.c.b16 %v78, %v76
  %v107 = vpack.c.b16 %v79, %v77
  %v108 = vpack.c.b16 %v82, %v80
  %v109 = vpack.c.b16 %v83, %v81
  %v110 = vpack.c.b16 %v86, %v84
  %v111 = vpack.c.b16 %v87, %v85
  %v112 = vpack.c.b16 %v90, %v88
  %v113 = vpack.c.b16 %v91, %v89
  %v114 = vpack.c.b16 %v94, %v92
  %v115 = vpack.c.b16 %v95, %v93
  %v116 = vpack.c.b16 %v98, %v96
  %v117 = vpack.c.b16 %v99, %v97
  %v118 = vpack.c.b16 %v102, %v100
  %v119 = vpack.c.b16 %v103, %v101
  %v146 = vunpack.c.l.b16 %v31
  %v147 = vunpack.c.l.b16 %v32
  %v148 = vunpack.c.l.b16 %v33
  %v149 = vunpack.c.l.b16 %v34
  %v150 = vunpack.c.l.b16 %v35
  %v151 = vunpack.c.l.b16 %v36
  %v152 = vunpack.c.l.b16 %v37
  %v153 = vunpack.c.l.b16 %v38
  %v154 = vunpack.c.l.b16 %v39
  %v155 = vunpack.c.l.b16 %v40
  %v156 = vunpack.c.l.b16 %v41
  %v157 = vunpack.c.l.b16 %v42
  %v158 = vunpack.c.l.b16 %v43
  %v159 = vunpack.c.l.b16 %v44
  %v160 = vunpack.c.l.b16 %v45
  %v161 = vunpack.c.l.b16 %v46
  %v162 = vunpack.c.l.b16 %v47
  %v163 = vunpack.c.l.b16 %v48
  %v164 = vpack.c.b16 %v147, %v146
  %v165 = vpack.c.b16 %v149, %v148
  %v166 = vpack.c.b16 %v151, %v150
  %v167 = vpack.c.b16 %v153, %v152
  %v168 = vpack.c.b16 %v155, %v154
  %v169 = vpack.c.b16 %v157, %v156
  %v170 = vpack.c.b16 %v159, %v158
  %v171 = vpack.c.b16 %v161, %v160
  %v172 = vpack.c.b16 %v163, %v162
  %vm182 = vcmask 130048
  %v184 = vsel %vm182, %v105, 0
  %v187 = vsel %vm182, %v107, 0
  %v190 = vsel %vm182, %v109, 0
  %v193 = vsel %vm182, %v111, 0
  %v196 = vsel %vm182, %v113, 0
  %v199 = vsel %vm182, %v115, 0
  %v202 = vsel %vm182, %v117, 0
  %v205 = vsel %vm182, %v119, 0
  %207 = vmatprep.subr.bf16.mxu0 0
  %208 = vmatpush1.bf16.msra.mxu0 %v164
  %209 = vmatprep.subr.bf16.mxu0 0
  %210 = vmatpush1.bf16.msra.mxu0 %v165
  %211 = vmatprep.subr.bf16.mxu0 0
  %212 = vmatpush1.bf16.msra.mxu0 %v166
  %213 = vmatprep.subr.bf16.mxu0 0
  %214 = vmatpush1.bf16.msra.mxu0 %v167
  %215 = vmatprep.subr.bf16.mxu0 0
  %216 = vmatpush1.bf16.msra.mxu0 %v168
  %217 = vmatprep.subr.bf16.mxu0 0
  %218 = vmatpush1.bf16.msra.mxu0 %v169
  %219 = vmatprep.subr.bf16.mxu0 0
  %220 = vmatpush1.bf16.msra.mxu0 %v170
  %221 = vmatprep.subr.bf16.mxu0 0
  %222 = vmatpush1.bf16.msra.mxu0 %v171
  %223 = vmatprep.subr.bf16.mxu0 0
  %224 = vmatpush1.bf16.msra.mxu0 %v172
  %225 = vmatprep.subr.bf16.mxu0 0
  %226 = vmatpush1.bf16.msra.mxu0 0
  %227 = vmatprep.subr.bf16.mxu0 0
  %228 = vmatpush1.bf16.msra.mxu0 0
  %229 = vmatprep.subr.bf16.mxu0 0
  %230 = vmatpush1.bf16.msra.mxu0 0
  %231 = vmatprep.subr.bf16.mxu0 0
  %232 = vmatpush1.bf16.msra.mxu0 0
  %233 = vmatprep.subr.bf16.mxu0 0
  %234 = vmatpush1.bf16.msra.mxu0 0
  %235 = vmatprep.subr.bf16.mxu0 0
  %236 = vmatpush1.bf16.msra.mxu0 0
  %237 = vmatprep.subr.bf16.mxu0 0
  %238 = vmatpush1.bf16.msra.mxu0 0
  %239 = vmatprep.mubr.bf16.mxu0 %v184
  %240 = vmatmul.mubr.bf16.gmra.mrb[0].mxu0 %v104
  %v241 = vpop.f32.mrb[0].mxu0
  %v242 = vadd.f32 %v54, %v241
  %v243 = vpop.f32.mrb[0].mxu0
  %v244 = vpop.f32.mrb[0].mxu0
  %v245 = vadd.f32 %v54, %v244
  %v246 = vpop.f32.mrb[0].mxu0
  %247 = vmatprep.mubr.bf16.mxu0 %v187
  %248 = vmatmul.mubr.bf16.gmra.mrb[0].mxu0 %v106
  %v249 = vpop.f32.mrb[0].mxu0
  %v250 = vadd.f32 %v54, %v249
  %v251 = vpop.f32.mrb[0].mxu0
  %v252 = vpop.f32.mrb[0].mxu0
  %v253 = vadd.f32 %v54, %v252
  %v254 = vpop.f32.mrb[0].mxu0
  %255 = vmatprep.mubr.bf16.mxu0 %v190
  %256 = vmatmul.mubr.bf16.gmra.mrb[0].mxu0 %v108
  %v257 = vpop.f32.mrb[0].mxu0
  %v258 = vadd.f32 %v54, %v257
  %v259 = vpop.f32.mrb[0].mxu0
  %v260 = vpop.f32.mrb[0].mxu0
  %v261 = vadd.f32 %v54, %v260
  %v262 = vpop.f32.mrb[0].mxu0
  %263 = vmatprep.mubr.bf16.mxu0 %v193
  %264 = vmatmul.mubr.bf16.gmra.mrb[0].mxu0 %v110
  %v265 = vpop.f32.mrb[0].mxu0
  %v266 = vadd.f32 %v54, %v265
  %v267 = vpop.f32.mrb[0].mxu0
  %v268 = vpop.f32.mrb[0].mxu0
  %v269 = vadd.f32 %v54, %v268
  %v270 = vpop.f32.mrb[0].mxu0
  %271 = vmatprep.mubr.bf16.mxu0 %v196
  %272 = vmatmul.mubr.bf16.gmra.mrb[0].mxu0 %v112
  %v273 = vpop.f32.mrb[0].mxu0
  %v274 = vadd.f32 %v54, %v273
  %v275 = vpop.f32.mrb[0].mxu0
  %v276 = vpop.f32.mrb[0].mxu0
  %v277 = vadd.f32 %v54, %v276
  %v278 = vpop.f32.mrb[0].mxu0
  %279 = vmatprep.mubr.bf16.mxu0 %v199
  %280 = vmatmul.mubr.bf16.gmra.mrb[0].mxu0 %v114
  %v281 = vpop.f32.mrb[0].mxu0
  %v282 = vadd.f32 %v54, %v281
  %v283 = vpop.f32.mrb[0].mxu0
  %v284 = vpop.f32.mrb[0].mxu0
  %v285 = vadd.f32 %v54, %v284
  %v286 = vpop.f32.mrb[0].mxu0
  %287 = vmatprep.mubr.bf16.mxu0 %v202
  %288 = vmatmul.mubr.bf16.gmra.mrb[0].mxu0 %v116
  %v289 = vpop.f32.mrb[0].mxu0
  %v290 = vadd.f32 %v54, %v289
  %v291 = vpop.f32.mrb[0].mxu0
  %v292 = vpop.f32.mrb[0].mxu0
  %v293 = vadd.f32 %v54, %v292
  %v294 = vpop.f32.mrb[0].mxu0
  %295 = vmatprep.mubr.bf16.mxu0 %v205
  %296 = vmatmul.mubr.bf16.gmra.mrb[0].mxu0 %v118
  %v297 = vpop.f32.mrb[0].mxu0
  %v298 = vadd.f32 %v54, %v297
  %v299 = vpop.f32.mrb[0].mxu0
  %v300 = vpop.f32.mrb[0].mxu0
  %v301 = vadd.f32 %v54, %v300
  %v302 = vpop.f32.mrb[0].mxu0
  %303 = vdwg.mxu0
  %vm304 = vcmask 97280
  %305 = vst.msk [vmem:[%s3] sm:$0xff] %vm304, %v242
  %306 = vst.msk [vmem:[%s3 + $0x8] sm:$0xff] %vm304, %v245
  %307 = vst.msk [vmem:[%s3 + $0x10] sm:$0xff] %vm304, %v250
  %308 = vst.msk [vmem:[%s3 + $0x18] sm:$0xff] %vm304, %v253
  %309 = vst.msk [vmem:[%s3 + $0x20] sm:$0xff] %vm304, %v258
  %310 = vst.msk [vmem:[%s3 + $0x28] sm:$0xff] %vm304, %v261
  %311 = vst.msk [vmem:[%s3 + $0x30] sm:$0xff] %vm304, %v266
  %312 = vst.msk [vmem:[%s3 + $0x38] sm:$0xff] %vm304, %v269
  %313 = vst.msk [vmem:[%s3 + $0x40] sm:$0xff] %vm304, %v274
  %314 = vst.msk [vmem:[%s3 + $0x48] sm:$0xff] %vm304, %v277
  %315 = vst.msk [vmem:[%s3 + $0x50] sm:$0xff] %vm304, %v282
  %316 = vst.msk [vmem:[%s3 + $0x58] sm:$0xff] %vm304, %v285
  %317 = vst.msk [vmem:[%s3 + $0x60] sm:$0xff] %vm304, %v290
  %318 = vst.msk [vmem:[%s3 + $0x68] sm:$0xff] %vm304, %v293
  %319 = vst.msk [vmem:[%s3 + $0x70] sm:$0xff] %vm304, %v298
  %320 = vst.msk [vmem:[%s3 + $0x78] sm:$0xff] %vm304, %v301
  // Predicated region
  $region14: #{vqvae_forward.21} parent=0 // pred_check
    _
  $region15: #{vqvae_forward.21} parent=0 // pred_check_branch
    %322 = sbr.rel (0) target = $region17
  $region16: #{vqvae_forward.21} parent=0 // pred_region
    _
  $region17: #{vqvae_forward.21} parent=0 // pred_fallthru
    _
  // Predicated region
  $region18: #{vqvae_forward.21} parent=0 // pred_check
    _
  $region19: #{vqvae_forward.21} parent=0 // pred_check_branch
    %324 = sbr.rel (0) target = $region21
  $region20: #{vqvae_forward.21} parent=0 // pred_region
    _
  $region21: #{vqvae_forward.21} parent=0 // pred_fallthru
    _

</llo_original>
